<compile_context>
chip_gen: v7x
topology: tpu7x:2x2x1
jax: 0.10.0
libtpu: 0.0.40
codegen_flags: <defaults>
</compile_context>

<pallas_src>
from functools import partial

import jax
import jax.numpy as jnp
from jax.experimental import pallas as pl
from jax.experimental.pallas import tpu as pltpu


_VMEM_LIMIT_BYTES = 32 * 1024 * 1024   # conservative for v7x's 64 MiB VMEM


def _round_up(n, m):
    return ((n + m - 1) // m) * m


def _invariant_spec(shape, single_buffer):
    """BlockSpec for an input whose block never changes across the grid.

    Single-buffered (pl.Buffered(1)) when requested/supported; otherwise the
    default double-buffered spec (correct either way, just 2x VMEM)."""
    index_map = lambda i: (0,) * len(shape)
    if single_buffer:
        try:
            return pl.BlockSpec(shape, index_map, pipeline_mode=pl.Buffered(1))
        except (AttributeError, TypeError):
            pass   # pipeline_mode / Buffered unavailable on this jax build
    return pl.BlockSpec(shape, index_map)


# ---------------------------------------------------------------------------
# Fused kernel: per grid step = input projection for a whole chunk of
# timesteps (one MXU matmul) + `chunk` sequential GRU timesteps.
# ---------------------------------------------------------------------------
def _gru_fused_kernel(x_ref, h0_ref, wih_ref, whh_ref, bfold_ref, bnh_ref,
                      out_ref, h_scratch, gi_scratch):
    """x_ref:     (C, Bp, Dp)     layer-input chunk (C timesteps)
       h0_ref:    (Bp, Hp)        initial hidden state        (grid-invariant)
       wih_ref:   (Dp, 3*Hp)      W_ih^T, gate-major [r|z|n]  (matmul dtype)
       whh_ref:   (Hp, 3*Hp)      W_hh^T, gate-major [r|z|n]  (matmul dtype)
       bfold_ref: (1, 3*Hp) f32   b_ih + b_hh[r|z] folded
       bnh_ref:   (1, Hp)   f32   b_hn (stays inside r*(.) per PyTorch)
       out_ref:   (C, Bp, Hp)     layer outputs for this chunk
       h_scratch: (Bp, Hp) f32    hidden state carried across grid steps
       gi_scratch:(C*Bp, 3*Hp) f32 chunk input projection (never leaves VMEM)
    """
    C, Bp, Dp = x_ref.shape
    Hp = h_scratch.shape[-1]

    @pl.when(pl.program_id(0) == 0)
    def _():
        h_scratch[...] = h0_ref[...].astype(jnp.float32)

    # --- fused input projection for the whole chunk: one MXU matmul --------
    xm = x_ref[...].reshape(C * Bp, Dp).astype(wih_ref.dtype)
    gi_scratch[...] = (
        jnp.dot(xm, wih_ref[...], preferred_element_type=jnp.float32)
        + bfold_ref[...])

    # --- invariants hoisted out of the (partially unrolled) time loop ------
    whh = whh_ref[...]
    b_n = jnp.broadcast_to(bnh_ref[...], (Bp, Hp))   # hoisted broadcast (no CSE)

    def step(c, carry):
        h = h_scratch[...]
        row = pl.multiple_of(c * Bp, Bp)             # sublane-aligned dynamic slice
        gi = gi_scratch[pl.ds(row, Bp), :]
        gh = jnp.dot(h.astype(whh.dtype), whh,
                     preferred_element_type=jnp.float32)
        r = jax.nn.sigmoid(gi[:, :Hp] + gh[:, :Hp])
        z = jax.nn.sigmoid(gi[:, Hp:2 * Hp] + gh[:, Hp:2 * Hp])
        n = jnp.tanh(gi[:, 2 * Hp:] + r * (gh[:, 2 * Hp:] + b_n))
        h_new = n + z * (h - n)                      # == (1-z)*n + z*h
        h_scratch[...] = h_new
        out_ref[c] = h_new.astype(out_ref.dtype)
        return carry

    # Partial unroll keeps code size / vreg pressure bounded for large chunks.
    jax.lax.fori_loop(0, C, step, 0, unroll=min(8, C))


# ---------------------------------------------------------------------------
# Per-layer parameter prep: transpose, fold biases, pad to (8,128) tiles.
# ---------------------------------------------------------------------------
def _prep_layer_params(w_ih, w_hh, b_ih, b_hh, H, D_in, Hp, D_in_p, matmul_dtype):
    # Fold b_ih (all gates) + b_hh for r,z into the projection bias.  b_hn must
    # stay separate: n = tanh(W_in x + b_in + r * (W_hn h + b_hn)).
    b_fold = b_ih.astype(jnp.float32) + jnp.concatenate(
        [b_hh[:2 * H].astype(jnp.float32), jnp.zeros((H,), jnp.float32)])
    b_fold = jnp.pad(b_fold.reshape(3, H), ((0, 0), (0, Hp - H)))
    b_fold = b_fold.reshape(1, 3 * Hp)                                 # (1, 3Hp)

    b_nh = jnp.pad(b_hh[2 * H:].astype(jnp.float32), ((0, Hp - H),))
    b_nh = b_nh.reshape(1, Hp)                                         # (1, Hp)

    # W_ih (3H, D_in) -> (D_in_p, 3*Hp), gate-major columns [r|z|n], each gate
    # padded to Hp so gate slices land on lane boundaries.
    w = jnp.transpose(w_ih.reshape(3, H, D_in), (2, 0, 1))             # (D_in,3,H)
    w = jnp.pad(w, ((0, D_in_p - D_in), (0, 0), (0, Hp - H)))
    wih_t_p = w.reshape(D_in_p, 3 * Hp).astype(matmul_dtype)

    # W_hh (3H, H) -> (Hp, 3*Hp)
    w = jnp.transpose(w_hh.reshape(3, H, H), (2, 0, 1))                # (H,3,H)
    w = jnp.pad(w, ((0, Hp - H), (0, 0), (0, Hp - H)))
    whh_t_p = w.reshape(Hp, 3 * Hp).astype(matmul_dtype)

    return wih_t_p, whh_t_p, b_fold, b_nh


# ---------------------------------------------------------------------------
# One GRU layer on padded, aligned tensors
# ---------------------------------------------------------------------------
def _gru_layer_padded(x_p, h0_p, wih_t_p, whh_t_p, b_fold_p, b_nh_p, chunk,
                      out_dtype, single_buffer_weights):
    T_p, B_p, D_in_p = x_p.shape
    Hp = h0_p.shape[-1]
    G = 3 * Hp
    n_chunks = T_p // chunk

    return pl.pallas_call(
        _gru_fused_kernel,
        out_shape=jax.ShapeDtypeStruct((T_p, B_p, Hp), out_dtype),
        grid_spec=pltpu.PrefetchScalarGridSpec(
            num_scalar_prefetch=0,
            grid=(n_chunks,),
            in_specs=[
                pl.BlockSpec((chunk, B_p, D_in_p), lambda i: (i, 0, 0)),  # x chunk
                _invariant_spec((B_p, Hp), single_buffer_weights),        # h0
                _invariant_spec((D_in_p, G), single_buffer_weights),      # W_ih^T
                _invariant_spec((Hp, G), single_buffer_weights),          # W_hh^T
                _invariant_spec((1, G), single_buffer_weights),           # folded bias
                _invariant_spec((1, Hp), single_buffer_weights),          # b_hn
            ],
            out_specs=pl.BlockSpec((chunk, B_p, Hp), lambda i: (i, 0, 0)),
            scratch_shapes=[
                pltpu.VMEM((B_p, Hp), jnp.float32),          # hidden-state carry
                pltpu.VMEM((chunk * B_p, G), jnp.float32),   # chunk input projection
            ],
        ),
        compiler_params=pltpu.CompilerParams(
            dimension_semantics=("arbitrary",),   # time is strictly sequential
            vmem_limit_bytes=_VMEM_LIMIT_BYTES),
    )(x_p, h0_p, wih_t_p, whh_t_p, b_fold_p, b_nh_p)


# ---------------------------------------------------------------------------
# Full multi-layer GRU forward (torch.nn.GRU semantics)
# ---------------------------------------------------------------------------
@partial(jax.jit,
         static_argnames=("chunk", "matmul_dtype", "single_buffer_weights"))
def gru_model_forward(inp, h_0, params, chunk=32, matmul_dtype=jnp.bfloat16,
                      single_buffer_weights=True):
    """inp: (T, B, input_size); h_0: (num_layers, B, H);
    params: list of (w_ih, w_hh, b_ih, b_hh) per layer (PyTorch layout).
    Returns (output (T, B, H), h_n (num_layers, B, H)).
    matmul_dtype=bf16 is the MXU-native fast path; gate math is always f32."""
    T, B, input_size = inp.shape
    H = h_0.shape[-1]
    dtype = inp.dtype

    Hp = _round_up(H, 128)
    B_p = _round_up(B, 8)
    # Big chunks amortize per-grid-step overhead, but don't pad T far past
    # round_up(T, 8) (padded tail timesteps are wasted serial work).
    chunk = max(1, min(chunk, _round_up(T, 8)))
    T_p = _round_up(T, chunk)

    x_p = None
    h_last = []
    for layer_idx, (w_ih, w_hh, b_ih, b_hh) in enumerate(params):
        if layer_idx == 0:
            D_in = input_size
            D_in_p = _round_up(D_in, 128)
            x_p = jnp.pad(inp, ((0, T_p - T), (0, B_p - B), (0, D_in_p - D_in)))
        else:
            D_in, D_in_p = H, Hp           # previous layer output already padded

        h0_p = jnp.pad(h_0[layer_idx], ((0, B_p - B), (0, Hp - H)))
        wih_t_p, whh_t_p, b_fold_p, b_nh_p = _prep_layer_params(
            w_ih, w_hh, b_ih, b_hh, H, D_in, Hp, D_in_p, matmul_dtype)

        x_p = _gru_layer_padded(x_p, h0_p, wih_t_p, whh_t_p, b_fold_p, b_nh_p,
                                chunk, dtype, single_buffer_weights)
        # h_n for this layer is just its output at the last *real* timestep.
        h_last.append(x_p[T - 1, :B, :H])

    output = x_p[:T, :B, :H]
    h_n = jnp.stack(h_last, axis=0).astype(h_0.dtype)
    return output, h_n


# ---------------------------------------------------------------------------
# Pure-JAX reference (lax.scan), matching torch.nn.GRU gate equations
# ---------------------------------------------------------------------------
def _gru_reference(inp, h_0, params):
    x = inp
    h_finals = []
    for l, (w_ih, w_hh, b_ih, b_hh) in enumerate(params):
        H = w_hh.shape[1]

        def step(h, x_t):
            gi = x_t @ w_ih.T + b_ih
            gh = h @ w_hh.T + b_hh
            i_r, i_z, i_n = gi[:, :H], gi[:, H:2 * H], gi[:, 2 * H:]
            h_r, h_z, h_n = gh[:, :H], gh[:, H:2 * H], gh[:, 2 * H:]
            r = jax.nn.sigmoid(i_r + h_r)
            z = jax.nn.sigmoid(i_z + h_z)
            n = jnp.tanh(i_n + r * h_n)
            h_new = (1.0 - z) * n + z * h
            return h_new, h_new

        h_last, outs = jax.lax.scan(step, h_0[l], x)
        x = outs
        h_finals.append(h_last)
    return x, jnp.stack(h_finals, axis=0)


def init_gru_params(key, input_size, hidden_size, num_layers):
    """Deterministic init, same shapes / uniform range as torch.nn.GRU."""
    params = []
    bound = 1.0 / jnp.sqrt(jnp.float32(hidden_size))
    for l in range(num_layers):
        d_in = input_size if l == 0 else hidden_size
        key, k1, k2, k3, k4 = jax.random.split(key, 5)
        w_ih = jax.random.uniform(k1, (3 * hidden_size, d_in),
                                  jnp.float32, -bound, bound)
        w_hh = jax.random.uniform(k2, (3 * hidden_size, hidden_size),
                                  jnp.float32, -bound, bound)
        b_ih = jax.random.uniform(k3, (3 * hidden_size,),
                                  jnp.float32, -bound, bound)
        b_hh = jax.random.uniform(k4, (3 * hidden_size,),
                                  jnp.float32, -bound, bound)
        params.append((w_ih, w_hh, b_ih, b_hh))
    return params


if __name__ == "__main__":
    # Shapes consistent with nn.GRU(input_size, hidden_size, num_layers)
    seq_len, batch, input_size, hidden_size, num_layers = 8, 2, 4, 32, 2

    key = jax.random.PRNGKey(0)
    k_in, k_h, k_p = jax.random.split(key, 3)

    inp = jax.random.normal(k_in, (seq_len, batch, input_size), jnp.float32)
    h_0 = jax.random.normal(k_h, (num_layers, batch, hidden_size), jnp.float32)
    params = init_gru_params(k_p, input_size, hidden_size, num_layers)

    ref_out, ref_hn = _gru_reference(inp, h_0, params)

    # 1) Exact-math path (f32 matmuls) vs f32 reference.  If this jax/libtpu
    #    build rejects pl.Buffered(1) single-buffering, fall back to default
    #    double-buffered invariant weights (correctness unaffected).
    sbw = True
    try:
        out_f32, hn_f32 = gru_model_forward(
            inp, h_0, params, matmul_dtype=jnp.float32, single_buffer_weights=sbw)
        out_f32 = jax.block_until_ready(out_f32)
    except Exception:
        sbw = False
        out_f32, hn_f32 = gru_model_forward(
            inp, h_0, params, matmul_dtype=jnp.float32, single_buffer_weights=sbw)
        out_f32 = jax.block_until_ready(out_f32)
    hn_f32 = jax.block_until_ready(hn_f32)
    assert jnp.allclose(out_f32, ref_out, atol=1e-5, rtol=1e-5)
    assert jnp.allclose(hn_f32, ref_hn, atol=1e-5, rtol=1e-5)

    # 2) Default bf16-MXU fast path (gate math still f32): looser tolerance.
    out_bf, hn_bf = gru_model_forward(inp, h_0, params, single_buffer_weights=sbw)
    out_bf = jax.block_until_ready(out_bf)
    hn_bf = jax.block_until_ready(hn_bf)
    assert jnp.allclose(out_bf, ref_out, atol=5e-2, rtol=5e-2)
    assert jnp.allclose(hn_bf, ref_hn, atol=5e-2, rtol=5e-2)

    # 3) Multi-chunk path (hidden state carried across grid steps) + ragged
    #    T/B/input_size padding paths.
    T2, B2, D2 = 20, 3, 10
    k1, k2, k3 = jax.random.split(jax.random.PRNGKey(1), 3)
    inp2 = jax.random.normal(k1, (T2, B2, D2), jnp.float32)
    h02 = jax.random.normal(k2, (num_layers, B2, hidden_size), jnp.float32)
    params2 = init_gru_params(k3, D2, hidden_size, num_layers)
    out2, hn2 = gru_model_forward(inp2, h02, params2, chunk=8,
                                  matmul_dtype=jnp.float32,
                                  single_buffer_weights=sbw)
    out2 = jax.block_until_ready(out2)
    hn2 = jax.block_until_ready(hn2)
    ref2_out, ref2_hn = _gru_reference(inp2, h02, params2)
    assert jnp.allclose(out2, ref2_out, atol=1e-5, rtol=1e-5)
    assert jnp.allclose(hn2, ref2_hn, atol=1e-5, rtol=1e-5)

    print("KERNEL_OK")
</pallas_src>

<mosaic_0001>
module attributes {stable_mosaic.version = 11 : i64} {
  func.func @_gru_fused_kernel(%arg0: i32, %arg1: memref<8x8x128xf32, #tpu.memory_space<vmem>>, %arg2: memref<8x128xf32, #tpu.memory_space<vmem>>, %arg3: memref<128x384xf32, #tpu.memory_space<vmem>>, %arg4: memref<128x384xf32, #tpu.memory_space<vmem>>, %arg5: memref<1x384xf32, #tpu.memory_space<vmem>>, %arg6: memref<1x128xf32, #tpu.memory_space<vmem>>, %arg7: memref<8x8x128xf32, #tpu.memory_space<vmem>>, %arg8: memref<8x128xf32, #tpu.memory_space<vmem>>, %arg9: memref<64x384xf32, #tpu.memory_space<vmem>>) attributes {dimension_semantics = [#tpu.dimension_semantics<arbitrary>], iteration_bounds = array<i64: 1>, scalar_prefetch = 0 : i64, scratch_operands = 2 : i64, tpu.core_type = #tpu.core_type<tc>, window_params = [{transform_indices = @transform_0, window_bounds = array<i64: 8, 8, 128>}, {pipeline_mode = #tpu.pipeline_mode<synchronous>, transform_indices = @transform_1, window_bounds = array<i64: 8, 128>}, {pipeline_mode = #tpu.pipeline_mode<synchronous>, transform_indices = @transform_2, window_bounds = array<i64: 128, 384>}, {pipeline_mode = #tpu.pipeline_mode<synchronous>, transform_indices = @transform_3, window_bounds = array<i64: 128, 384>}, {pipeline_mode = #tpu.pipeline_mode<synchronous>, transform_indices = @transform_4, window_bounds = array<i64: 1, 384>}, {pipeline_mode = #tpu.pipeline_mode<synchronous>, transform_indices = @transform_5, window_bounds = array<i64: 1, 128>}, {transform_indices = @transform_6, window_bounds = array<i64: 8, 8, 128>}]} {
    %c0_i32 = arith.constant 0 : i32
    %0 = arith.cmpi eq, %arg0, %c0_i32 : i32
    %1 = arith.extui %0 : i1 to i32
    %c0_i32_0 = arith.constant 0 : i32
    %2 = arith.cmpi ne, %1, %c0_i32_0 : i32
    scf.if %2 {
      %c0_102 = arith.constant 0 : index
      %c0_103 = arith.constant 0 : index
      %303 = vector.load %arg2[%c0_102, %c0_103] : memref<8x128xf32, #tpu.memory_space<vmem>>, vector<8x128xf32>
      %c0_104 = arith.constant 0 : index
      %c0_105 = arith.constant 0 : index
      %304 = vector.load %arg8[%c0_104, %c0_105] : memref<8x128xf32, #tpu.memory_space<vmem>>, vector<8x128xf32>
      tpu.vector_store %arg8[%c0_104, %c0_105], %303 {strides = array<i32>} : memref<8x128xf32, #tpu.memory_space<vmem>>, vector<8x128xf32>,
    } else {
    }
    %c0 = arith.constant 0 : index
    %c0_1 = arith.constant 0 : index
    %c0_2 = arith.constant 0 : index
    %3 = vector.load %arg1[%c0, %c0_1, %c0_2] : memref<8x8x128xf32, #tpu.memory_space<vmem>>, vector<8x8x128xf32>
    %4 = vector.shape_cast %3 : vector<8x8x128xf32> to vector<64x128xf32>
    %c0_3 = arith.constant 0 : index
    %c0_4 = arith.constant 0 : index
    %5 = vector.load %arg3[%c0_3, %c0_4] : memref<128x384xf32, #tpu.memory_space<vmem>>, vector<128x384xf32>
    %cst = arith.constant dense<0.000000e+00> : vector<64x384xf32>
    %6 = tpu.matmul %4, %5, %cst {dimension_numbers = #tpu.dot_dimension_numbers<[1], [0], [0], [1], [0, 0, 1, 1], [], []>} : vector<64x128xf32>, vector<128x384xf32>, vector<64x384xf32> -> vector<64x384xf32>
    %c0_5 = arith.constant 0 : index
    %c0_6 = arith.constant 0 : index
    %7 = vector.load %arg5[%c0_5, %c0_6] : memref<1x384xf32, #tpu.memory_space<vmem>>, vector<1x384xf32>
    %8 = vector.broadcast %7 : vector<1x384xf32> to vector<64x384xf32>
    %9 = arith.addf %6, %8 : vector<64x384xf32>
    %c0_7 = arith.constant 0 : index
    %c0_8 = arith.constant 0 : index
    %10 = vector.load %arg9[%c0_7, %c0_8] : memref<64x384xf32, #tpu.memory_space<vmem>>, vector<64x384xf32>
    tpu.vector_store %arg9[%c0_7, %c0_8], %9 {strides = array<i32>} : memref<64x384xf32, #tpu.memory_space<vmem>>, vector<64x384xf32>,
    %c0_9 = arith.constant 0 : index
    %c0_10 = arith.constant 0 : index
    %11 = vector.load %arg4[%c0_9, %c0_10] : memref<128x384xf32, #tpu.memory_space<vmem>>, vector<128x384xf32>
    %c0_11 = arith.constant 0 : index
    %c0_12 = arith.constant 0 : index
    %12 = vector.load %arg6[%c0_11, %c0_12] : memref<1x128xf32, #tpu.memory_space<vmem>>, vector<1x128xf32>
    %13 = vector.shape_cast %12 : vector<1x128xf32> to vector<1x128xf32>
    %14 = vector.broadcast %13 : vector<1x128xf32> to vector<8x128xf32>
    %c0_i32_13 = arith.constant 0 : i32
    %c0_14 = arith.constant 0 : index
    %c0_15 = arith.constant 0 : index
    %15 = vector.load %arg8[%c0_14, %c0_15] : memref<8x128xf32, #tpu.memory_space<vmem>>, vector<8x128xf32>
    %c8_i32 = arith.constant 8 : i32
    %16 = arith.muli %c0_i32_13, %c8_i32 : i32
    %17 = tpu.assume_multiple %16, 8 : i32
    %18 = arith.index_cast %17 : i32 to index
    %c0_16 = arith.constant 0 : index
    %19 = vector.load %arg9[%18, %c0_16] : memref<64x384xf32, #tpu.memory_space<vmem>>, vector<8x384xf32>
    %cst_17 = arith.constant dense<0.000000e+00> : vector<8x384xf32>
    %20 = tpu.matmul %15, %11, %cst_17 {dimension_numbers = #tpu.dot_dimension_numbers<[1], [0], [0], [1], [0, 0, 1, 1], [], []>} : vector<8x128xf32>, vector<128x384xf32>, vector<8x384xf32> -> vector<8x384xf32>
    %21 = vector.extract_strided_slice %19 {offsets = [0, 0], sizes = [8, 128], strides = [1, 1]} : vector<8x384xf32> to vector<8x128xf32>
    %22 = vector.extract_strided_slice %20 {offsets = [0, 0], sizes = [8, 128], strides = [1, 1]} : vector<8x384xf32> to vector<8x128xf32>
    %23 = arith.addf %21, %22 : vector<8x128xf32>
    %24 = arith.negf %23 : vector<8x128xf32>
    %25 = math.exp %24 : vector<8x128xf32>
    %cst_18 = arith.constant 1.000000e+00 : f32
    %26 = vector.broadcast %cst_18 : f32 to vector<8x128xf32>
    %27 = arith.addf %26, %25 : vector<8x128xf32>
    %28 = arith.divf %26, %27 : vector<8x128xf32>
    %29 = vector.extract_strided_slice %19 {offsets = [0, 128], sizes = [8, 128], strides = [1, 1]} : vector<8x384xf32> to vector<8x128xf32>
    %30 = vector.extract_strided_slice %20 {offsets = [0, 128], sizes = [8, 128], strides = [1, 1]} : vector<8x384xf32> to vector<8x128xf32>
    %31 = arith.addf %29, %30 : vector<8x128xf32>
    %32 = arith.negf %31 : vector<8x128xf32>
    %33 = math.exp %32 : vector<8x128xf32>
    %cst_19 = arith.constant 1.000000e+00 : f32
    %34 = vector.broadcast %cst_19 : f32 to vector<8x128xf32>
    %35 = arith.addf %34, %33 : vector<8x128xf32>
    %36 = arith.divf %34, %35 : vector<8x128xf32>
    %37 = vector.extract_strided_slice %19 {offsets = [0, 256], sizes = [8, 128], strides = [1, 1]} : vector<8x384xf32> to vector<8x128xf32>
    %38 = vector.extract_strided_slice %20 {offsets = [0, 256], sizes = [8, 128], strides = [1, 1]} : vector<8x384xf32> to vector<8x128xf32>
    %39 = arith.addf %38, %14 : vector<8x128xf32>
    %40 = arith.mulf %28, %39 : vector<8x128xf32>
    %41 = arith.addf %37, %40 : vector<8x128xf32>
    %42 = math.tanh %41 : vector<8x128xf32>
    %43 = arith.subf %15, %42 : vector<8x128xf32>
    %44 = arith.mulf %36, %43 : vector<8x128xf32>
    %45 = arith.addf %42, %44 : vector<8x128xf32>
    %c0_20 = arith.constant 0 : index
    %c0_21 = arith.constant 0 : index
    %46 = vector.load %arg8[%c0_20, %c0_21] : memref<8x128xf32, #tpu.memory_space<vmem>>, vector<8x128xf32>
    tpu.vector_store %arg8[%c0_20, %c0_21], %45 {strides = array<i32>} : memref<8x128xf32, #tpu.memory_space<vmem>>, vector<8x128xf32>,
    %47 = arith.index_cast %c0_i32_13 : i32 to index
    %c0_22 = arith.constant 0 : index
    %c0_23 = arith.constant 0 : index
    %48 = vector.load %arg7[%47, %c0_22, %c0_23] : memref<8x8x128xf32, #tpu.memory_space<vmem>>, vector<1x8x128xf32>
    %49 = vector.shape_cast %48 : vector<1x8x128xf32> to vector<8x128xf32>
    %50 = vector.shape_cast %45 : vector<8x128xf32> to vector<1x8x128xf32>
    tpu.vector_store %arg7[%47, %c0_22, %c0_23], %50 {strides = array<i32>} : memref<8x8x128xf32, #tpu.memory_space<vmem>>, vector<1x8x128xf32>,
    %c1_i32 = arith.constant 1 : i32
    %c0_24 = arith.constant 0 : index
    %c0_25 = arith.constant 0 : index
    %51 = vector.load %arg8[%c0_24, %c0_25] : memref<8x128xf32, #tpu.memory_space<vmem>>, vector<8x128xf32>
    %c8_i32_26 = arith.constant 8 : i32
    %52 = arith.muli %c1_i32, %c8_i32_26 : i32
    %53 = tpu.assume_multiple %52, 8 : i32
    %54 = arith.index_cast %53 : i32 to index
    %c0_27 = arith.constant 0 : index
    %55 = vector.load %arg9[%54, %c0_27] : memref<64x384xf32, #tpu.memory_space<vmem>>, vector<8x384xf32>
    %cst_28 = arith.constant dense<0.000000e+00> : vector<8x384xf32>
    %56 = tpu.matmul %51, %11, %cst_28 {dimension_numbers = #tpu.dot_dimension_numbers<[1], [0], [0], [1], [0, 0, 1, 1], [], []>} : vector<8x128xf32>, vector<128x384xf32>, vector<8x384xf32> -> vector<8x384xf32>
    %57 = vector.extract_strided_slice %55 {offsets = [0, 0], sizes = [8, 128], strides = [1, 1]} : vector<8x384xf32> to vector<8x128xf32>
    %58 = vector.extract_strided_slice %56 {offsets = [0, 0], sizes = [8, 128], strides = [1, 1]} : vector<8x384xf32> to vector<8x128xf32>
    %59 = arith.addf %57, %58 : vector<8x128xf32>
    %60 = arith.negf %59 : vector<8x128xf32>
    %61 = math.exp %60 : vector<8x128xf32>
    %cst_29 = arith.constant 1.000000e+00 : f32
    %62 = vector.broadcast %cst_29 : f32 to vector<8x128xf32>
    %63 = arith.addf %62, %61 : vector<8x128xf32>
    %64 = arith.divf %62, %63 : vector<8x128xf32>
    %65 = vector.extract_strided_slice %55 {offsets = [0, 128], sizes = [8, 128], strides = [1, 1]} : vector<8x384xf32> to vector<8x128xf32>
    %66 = vector.extract_strided_slice %56 {offsets = [0, 128], sizes = [8, 128], strides = [1, 1]} : vector<8x384xf32> to vector<8x128xf32>
    %67 = arith.addf %65, %66 : vector<8x128xf32>
    %68 = arith.negf %67 : vector<8x128xf32>
    %69 = math.exp %68 : vector<8x128xf32>
    %cst_30 = arith.constant 1.000000e+00 : f32
    %70 = vector.broadcast %cst_30 : f32 to vector<8x128xf32>
    %71 = arith.addf %70, %69 : vector<8x128xf32>
    %72 = arith.divf %70, %71 : vector<8x128xf32>
    %73 = vector.extract_strided_slice %55 {offsets = [0, 256], sizes = [8, 128], strides = [1, 1]} : vector<8x384xf32> to vector<8x128xf32>
    %74 = vector.extract_strided_slice %56 {offsets = [0, 256], sizes = [8, 128], strides = [1, 1]} : vector<8x384xf32> to vector<8x128xf32>
    %75 = arith.addf %74, %14 : vector<8x128xf32>
    %76 = arith.mulf %64, %75 : vector<8x128xf32>
    %77 = arith.addf %73, %76 : vector<8x128xf32>
    %78 = math.tanh %77 : vector<8x128xf32>
    %79 = arith.subf %51, %78 : vector<8x128xf32>
    %80 = arith.mulf %72, %79 : vector<8x128xf32>
    %81 = arith.addf %78, %80 : vector<8x128xf32>
    %c0_31 = arith.constant 0 : index
    %c0_32 = arith.constant 0 : index
    %82 = vector.load %arg8[%c0_31, %c0_32] : memref<8x128xf32, #tpu.memory_space<vmem>>, vector<8x128xf32>
    tpu.vector_store %arg8[%c0_31, %c0_32], %81 {strides = array<i32>} : memref<8x128xf32, #tpu.memory_space<vmem>>, vector<8x128xf32>,
    %83 = arith.index_cast %c1_i32 : i32 to index
    %c0_33 = arith.constant 0 : index
    %c0_34 = arith.constant 0 : index
    %84 = vector.load %arg7[%83, %c0_33, %c0_34] : memref<8x8x128xf32, #tpu.memory_space<vmem>>, vector<1x8x128xf32>
    %85 = vector.shape_cast %84 : vector<1x8x128xf32> to vector<8x128xf32>
    %86 = vector.shape_cast %81 : vector<8x128xf32> to vector<1x8x128xf32>
    tpu.vector_store %arg7[%83, %c0_33, %c0_34], %86 {strides = array<i32>} : memref<8x8x128xf32, #tpu.memory_space<vmem>>, vector<1x8x128xf32>,
    %c2_i32 = arith.constant 2 : i32
    %c0_35 = arith.constant 0 : index
    %c0_36 = arith.constant 0 : index
    %87 = vector.load %arg8[%c0_35, %c0_36] : memref<8x128xf32, #tpu.memory_space<vmem>>, vector<8x128xf32>
    %c8_i32_37 = arith.constant 8 : i32
    %88 = arith.muli %c2_i32, %c8_i32_37 : i32
    %89 = tpu.assume_multiple %88, 8 : i32
    %90 = arith.index_cast %89 : i32 to index
    %c0_38 = arith.constant 0 : index
    %91 = vector.load %arg9[%90, %c0_38] : memref<64x384xf32, #tpu.memory_space<vmem>>, vector<8x384xf32>
    %cst_39 = arith.constant dense<0.000000e+00> : vector<8x384xf32>
    %92 = tpu.matmul %87, %11, %cst_39 {dimension_numbers = #tpu.dot_dimension_numbers<[1], [0], [0], [1], [0, 0, 1, 1], [], []>} : vector<8x128xf32>, vector<128x384xf32>, vector<8x384xf32> -> vector<8x384xf32>
    %93 = vector.extract_strided_slice %91 {offsets = [0, 0], sizes = [8, 128], strides = [1, 1]} : vector<8x384xf32> to vector<8x128xf32>
    %94 = vector.extract_strided_slice %92 {offsets = [0, 0], sizes = [8, 128], strides = [1, 1]} : vector<8x384xf32> to vector<8x128xf32>
    %95 = arith.addf %93, %94 : vector<8x128xf32>
    %96 = arith.negf %95 : vector<8x128xf32>
    %97 = math.exp %96 : vector<8x128xf32>
    %cst_40 = arith.constant 1.000000e+00 : f32
    %98 = vector.broadcast %cst_40 : f32 to vector<8x128xf32>
    %99 = arith.addf %98, %97 : vector<8x128xf32>
    %100 = arith.divf %98, %99 : vector<8x128xf32>
    %101 = vector.extract_strided_slice %91 {offsets = [0, 128], sizes = [8, 128], strides = [1, 1]} : vector<8x384xf32> to vector<8x128xf32>
    %102 = vector.extract_strided_slice %92 {offsets = [0, 128], sizes = [8, 128], strides = [1, 1]} : vector<8x384xf32> to vector<8x128xf32>
    %103 = arith.addf %101, %102 : vector<8x128xf32>
    %104 = arith.negf %103 : vector<8x128xf32>
    %105 = math.exp %104 : vector<8x128xf32>
    %cst_41 = arith.constant 1.000000e+00 : f32
    %106 = vector.broadcast %cst_41 : f32 to vector<8x128xf32>
    %107 = arith.addf %106, %105 : vector<8x128xf32>
    %108 = arith.divf %106, %107 : vector<8x128xf32>
    %109 = vector.extract_strided_slice %91 {offsets = [0, 256], sizes = [8, 128], strides = [1, 1]} : vector<8x384xf32> to vector<8x128xf32>
    %110 = vector.extract_strided_slice %92 {offsets = [0, 256], sizes = [8, 128], strides = [1, 1]} : vector<8x384xf32> to vector<8x128xf32>
    %111 = arith.addf %110, %14 : vector<8x128xf32>
    %112 = arith.mulf %100, %111 : vector<8x128xf32>
    %113 = arith.addf %109, %112 : vector<8x128xf32>
    %114 = math.tanh %113 : vector<8x128xf32>
    %115 = arith.subf %87, %114 : vector<8x128xf32>
    %116 = arith.mulf %108, %115 : vector<8x128xf32>
    %117 = arith.addf %114, %116 : vector<8x128xf32>
    %c0_42 = arith.constant 0 : index
    %c0_43 = arith.constant 0 : index
    %118 = vector.load %arg8[%c0_42, %c0_43] : memref<8x128xf32, #tpu.memory_space<vmem>>, vector<8x128xf32>
    tpu.vector_store %arg8[%c0_42, %c0_43], %117 {strides = array<i32>} : memref<8x128xf32, #tpu.memory_space<vmem>>, vector<8x128xf32>,
    %119 = arith.index_cast %c2_i32 : i32 to index
    %c0_44 = arith.constant 0 : index
    %c0_45 = arith.constant 0 : index
    %120 = vector.load %arg7[%119, %c0_44, %c0_45] : memref<8x8x128xf32, #tpu.memory_space<vmem>>, vector<1x8x128xf32>
    %121 = vector.shape_cast %120 : vector<1x8x128xf32> to vector<8x128xf32>
    %122 = vector.shape_cast %117 : vector<8x128xf32> to vector<1x8x128xf32>
    tpu.vector_store %arg7[%119, %c0_44, %c0_45], %122 {strides = array<i32>} : memref<8x8x128xf32, #tpu.memory_space<vmem>>, vector<1x8x128xf32>,
    %c3_i32 = arith.constant 3 : i32
    %c0_46 = arith.constant 0 : index
    %c0_47 = arith.constant 0 : index
    %123 = vector.load %arg8[%c0_46, %c0_47] : memref<8x128xf32, #tpu.memory_space<vmem>>, vector<8x128xf32>
    %c8_i32_48 = arith.constant 8 : i32
    %124 = arith.muli %c3_i32, %c8_i32_48 : i32
    %125 = tpu.assume_multiple %124, 8 : i32
    %126 = arith.index_cast %125 : i32 to index
    %c0_49 = arith.constant 0 : index
    %127 = vector.load %arg9[%126, %c0_49] : memref<64x384xf32, #tpu.memory_space<vmem>>, vector<8x384xf32>
    %cst_50 = arith.constant dense<0.000000e+00> : vector<8x384xf32>
    %128 = tpu.matmul %123, %11, %cst_50 {dimension_numbers = #tpu.dot_dimension_numbers<[1], [0], [0], [1], [0, 0, 1, 1], [], []>} : vector<8x128xf32>, vector<128x384xf32>, vector<8x384xf32> -> vector<8x384xf32>
    %129 = vector.extract_strided_slice %127 {offsets = [0, 0], sizes = [8, 128], strides = [1, 1]} : vector<8x384xf32> to vector<8x128xf32>
    %130 = vector.extract_strided_slice %128 {offsets = [0, 0], sizes = [8, 128], strides = [1, 1]} : vector<8x384xf32> to vector<8x128xf32>
    %131 = arith.addf %129, %130 : vector<8x128xf32>
    %132 = arith.negf %131 : vector<8x128xf32>
    %133 = math.exp %132 : vector<8x128xf32>
    %cst_51 = arith.constant 1.000000e+00 : f32
    %134 = vector.broadcast %cst_51 : f32 to vector<8x128xf32>
    %135 = arith.addf %134, %133 : vector<8x128xf32>
    %136 = arith.divf %134, %135 : vector<8x128xf32>
    %137 = vector.extract_strided_slice %127 {offsets = [0, 128], sizes = [8, 128], strides = [1, 1]} : vector<8x384xf32> to vector<8x128xf32>
    %138 = vector.extract_strided_slice %128 {offsets = [0, 128], sizes = [8, 128], strides = [1, 1]} : vector<8x384xf32> to vector<8x128xf32>
    %139 = arith.addf %137, %138 : vector<8x128xf32>
    %140 = arith.negf %139 : vector<8x128xf32>
    %141 = math.exp %140 : vector<8x128xf32>
    %cst_52 = arith.constant 1.000000e+00 : f32
    %142 = vector.broadcast %cst_52 : f32 to vector<8x128xf32>
    %143 = arith.addf %142, %141 : vector<8x128xf32>
    %144 = arith.divf %142, %143 : vector<8x128xf32>
    %145 = vector.extract_strided_slice %127 {offsets = [0, 256], sizes = [8, 128], strides = [1, 1]} : vector<8x384xf32> to vector<8x128xf32>
    %146 = vector.extract_strided_slice %128 {offsets = [0, 256], sizes = [8, 128], strides = [1, 1]} : vector<8x384xf32> to vector<8x128xf32>
    %147 = arith.addf %146, %14 : vector<8x128xf32>
    %148 = arith.mulf %136, %147 : vector<8x128xf32>
    %149 = arith.addf %145, %148 : vector<8x128xf32>
    %150 = math.tanh %149 : vector<8x128xf32>
    %151 = arith.subf %123, %150 : vector<8x128xf32>
    %152 = arith.mulf %144, %151 : vector<8x128xf32>
    %153 = arith.addf %150, %152 : vector<8x128xf32>
    %c0_53 = arith.constant 0 : index
    %c0_54 = arith.constant 0 : index
    %154 = vector.load %arg8[%c0_53, %c0_54] : memref<8x128xf32, #tpu.memory_space<vmem>>, vector<8x128xf32>
    tpu.vector_store %arg8[%c0_53, %c0_54], %153 {strides = array<i32>} : memref<8x128xf32, #tpu.memory_space<vmem>>, vector<8x128xf32>,
    %155 = arith.index_cast %c3_i32 : i32 to index
    %c0_55 = arith.constant 0 : index
    %c0_56 = arith.constant 0 : index
    %156 = vector.load %arg7[%155, %c0_55, %c0_56] : memref<8x8x128xf32, #tpu.memory_space<vmem>>, vector<1x8x128xf32>
    %157 = vector.shape_cast %156 : vector<1x8x128xf32> to vector<8x128xf32>
    %158 = vector.shape_cast %153 : vector<8x128xf32> to vector<1x8x128xf32>
    tpu.vector_store %arg7[%155, %c0_55, %c0_56], %158 {strides = array<i32>} : memref<8x8x128xf32, #tpu.memory_space<vmem>>, vector<1x8x128xf32>,
    %c4_i32 = arith.constant 4 : i32
    %c0_57 = arith.constant 0 : index
    %c0_58 = arith.constant 0 : index
    %159 = vector.load %arg8[%c0_57, %c0_58] : memref<8x128xf32, #tpu.memory_space<vmem>>, vector<8x128xf32>
    %c8_i32_59 = arith.constant 8 : i32
    %160 = arith.muli %c4_i32, %c8_i32_59 : i32
    %161 = tpu.assume_multiple %160, 8 : i32
    %162 = arith.index_cast %161 : i32 to index
    %c0_60 = arith.constant 0 : index
    %163 = vector.load %arg9[%162, %c0_60] : memref<64x384xf32, #tpu.memory_space<vmem>>, vector<8x384xf32>
    %cst_61 = arith.constant dense<0.000000e+00> : vector<8x384xf32>
    %164 = tpu.matmul %159, %11, %cst_61 {dimension_numbers = #tpu.dot_dimension_numbers<[1], [0], [0], [1], [0, 0, 1, 1], [], []>} : vector<8x128xf32>, vector<128x384xf32>, vector<8x384xf32> -> vector<8x384xf32>
    %165 = vector.extract_strided_slice %163 {offsets = [0, 0], sizes = [8, 128], strides = [1, 1]} : vector<8x384xf32> to vector<8x128xf32>
    %166 = vector.extract_strided_slice %164 {offsets = [0, 0], sizes = [8, 128], strides = [1, 1]} : vector<8x384xf32> to vector<8x128xf32>
    %167 = arith.addf %165, %166 : vector<8x128xf32>
    %168 = arith.negf %167 : vector<8x128xf32>
    %169 = math.exp %168 : vector<8x128xf32>
    %cst_62 = arith.constant 1.000000e+00 : f32
    %170 = vector.broadcast %cst_62 : f32 to vector<8x128xf32>
    %171 = arith.addf %170, %169 : vector<8x128xf32>
    %172 = arith.divf %170, %171 : vector<8x128xf32>
    %173 = vector.extract_strided_slice %163 {offsets = [0, 128], sizes = [8, 128], strides = [1, 1]} : vector<8x384xf32> to vector<8x128xf32>
    %174 = vector.extract_strided_slice %164 {offsets = [0, 128], sizes = [8, 128], strides = [1, 1]} : vector<8x384xf32> to vector<8x128xf32>
    %175 = arith.addf %173, %174 : vector<8x128xf32>
    %176 = arith.negf %175 : vector<8x128xf32>
    %177 = math.exp %176 : vector<8x128xf32>
    %cst_63 = arith.constant 1.000000e+00 : f32
    %178 = vector.broadcast %cst_63 : f32 to vector<8x128xf32>
    %179 = arith.addf %178, %177 : vector<8x128xf32>
    %180 = arith.divf %178, %179 : vector<8x128xf32>
    %181 = vector.extract_strided_slice %163 {offsets = [0, 256], sizes = [8, 128], strides = [1, 1]} : vector<8x384xf32> to vector<8x128xf32>
    %182 = vector.extract_strided_slice %164 {offsets = [0, 256], sizes = [8, 128], strides = [1, 1]} : vector<8x384xf32> to vector<8x128xf32>
    %183 = arith.addf %182, %14 : vector<8x128xf32>
    %184 = arith.mulf %172, %183 : vector<8x128xf32>
    %185 = arith.addf %181, %184 : vector<8x128xf32>
    %186 = math.tanh %185 : vector<8x128xf32>
    %187 = arith.subf %159, %186 : vector<8x128xf32>
    %188 = arith.mulf %180, %187 : vector<8x128xf32>
    %189 = arith.addf %186, %188 : vector<8x128xf32>
    %c0_64 = arith.constant 0 : index
    %c0_65 = arith.constant 0 : index
    %190 = vector.load %arg8[%c0_64, %c0_65] : memref<8x128xf32, #tpu.memory_space<vmem>>, vector<8x128xf32>
    tpu.vector_store %arg8[%c0_64, %c0_65], %189 {strides = array<i32>} : memref<8x128xf32, #tpu.memory_space<vmem>>, vector<8x128xf32>,
    %191 = arith.index_cast %c4_i32 : i32 to index
    %c0_66 = arith.constant 0 : index
    %c0_67 = arith.constant 0 : index
    %192 = vector.load %arg7[%191, %c0_66, %c0_67] : memref<8x8x128xf32, #tpu.memory_space<vmem>>, vector<1x8x128xf32>
    %193 = vector.shape_cast %192 : vector<1x8x128xf32> to vector<8x128xf32>
    %194 = vector.shape_cast %189 : vector<8x128xf32> to vector<1x8x128xf32>
    tpu.vector_store %arg7[%191, %c0_66, %c0_67], %194 {strides = array<i32>} : memref<8x8x128xf32, #tpu.memory_space<vmem>>, vector<1x8x128xf32>,
    %c5_i32 = arith.constant 5 : i32
    %c0_68 = arith.constant 0 : index
    %c0_69 = arith.constant 0 : index
    %195 = vector.load %arg8[%c0_68, %c0_69] : memref<8x128xf32, #tpu.memory_space<vmem>>, vector<8x128xf32>
    %c8_i32_70 = arith.constant 8 : i32
    %196 = arith.muli %c5_i32, %c8_i32_70 : i32
    %197 = tpu.assume_multiple %196, 8 : i32
    %198 = arith.index_cast %197 : i32 to index
    %c0_71 = arith.constant 0 : index
    %199 = vector.load %arg9[%198, %c0_71] : memref<64x384xf32, #tpu.memory_space<vmem>>, vector<8x384xf32>
    %cst_72 = arith.constant dense<0.000000e+00> : vector<8x384xf32>
    %200 = tpu.matmul %195, %11, %cst_72 {dimension_numbers = #tpu.dot_dimension_numbers<[1], [0], [0], [1], [0, 0, 1, 1], [], []>} : vector<8x128xf32>, vector<128x384xf32>, vector<8x384xf32> -> vector<8x384xf32>
    %201 = vector.extract_strided_slice %199 {offsets = [0, 0], sizes = [8, 128], strides = [1, 1]} : vector<8x384xf32> to vector<8x128xf32>
    %202 = vector.extract_strided_slice %200 {offsets = [0, 0], sizes = [8, 128], strides = [1, 1]} : vector<8x384xf32> to vector<8x128xf32>
    %203 = arith.addf %201, %202 : vector<8x128xf32>
    %204 = arith.negf %203 : vector<8x128xf32>
    %205 = math.exp %204 : vector<8x128xf32>
    %cst_73 = arith.constant 1.000000e+00 : f32
    %206 = vector.broadcast %cst_73 : f32 to vector<8x128xf32>
    %207 = arith.addf %206, %205 : vector<8x128xf32>
    %208 = arith.divf %206, %207 : vector<8x128xf32>
    %209 = vector.extract_strided_slice %199 {offsets = [0, 128], sizes = [8, 128], strides = [1, 1]} : vector<8x384xf32> to vector<8x128xf32>
    %210 = vector.extract_strided_slice %200 {offsets = [0, 128], sizes = [8, 128], strides = [1, 1]} : vector<8x384xf32> to vector<8x128xf32>
    %211 = arith.addf %209, %210 : vector<8x128xf32>
    %212 = arith.negf %211 : vector<8x128xf32>
    %213 = math.exp %212 : vector<8x128xf32>
    %cst_74 = arith.constant 1.000000e+00 : f32
    %214 = vector.broadcast %cst_74 : f32 to vector<8x128xf32>
    %215 = arith.addf %214, %213 : vector<8x128xf32>
    %216 = arith.divf %214, %215 : vector<8x128xf32>
    %217 = vector.extract_strided_slice %199 {offsets = [0, 256], sizes = [8, 128], strides = [1, 1]} : vector<8x384xf32> to vector<8x128xf32>
    %218 = vector.extract_strided_slice %200 {offsets = [0, 256], sizes = [8, 128], strides = [1, 1]} : vector<8x384xf32> to vector<8x128xf32>
    %219 = arith.addf %218, %14 : vector<8x128xf32>
    %220 = arith.mulf %208, %219 : vector<8x128xf32>
    %221 = arith.addf %217, %220 : vector<8x128xf32>
    %222 = math.tanh %221 : vector<8x128xf32>
    %223 = arith.subf %195, %222 : vector<8x128xf32>
    %224 = arith.mulf %216, %223 : vector<8x128xf32>
    %225 = arith.addf %222, %224 : vector<8x128xf32>
    %c0_75 = arith.constant 0 : index
    %c0_76 = arith.constant 0 : index
    %226 = vector.load %arg8[%c0_75, %c0_76] : memref<8x128xf32, #tpu.memory_space<vmem>>, vector<8x128xf32>
    tpu.vector_store %arg8[%c0_75, %c0_76], %225 {strides = array<i32>} : memref<8x128xf32, #tpu.memory_space<vmem>>, vector<8x128xf32>,
    %227 = arith.index_cast %c5_i32 : i32 to index
    %c0_77 = arith.constant 0 : index
    %c0_78 = arith.constant 0 : index
    %228 = vector.load %arg7[%227, %c0_77, %c0_78] : memref<8x8x128xf32, #tpu.memory_space<vmem>>, vector<1x8x128xf32>
    %229 = vector.shape_cast %228 : vector<1x8x128xf32> to vector<8x128xf32>
    %230 = vector.shape_cast %225 : vector<8x128xf32> to vector<1x8x128xf32>
    tpu.vector_store %arg7[%227, %c0_77, %c0_78], %230 {strides = array<i32>} : memref<8x8x128xf32, #tpu.memory_space<vmem>>, vector<1x8x128xf32>,
    %c6_i32 = arith.constant 6 : i32
    %c0_79 = arith.constant 0 : index
    %c0_80 = arith.constant 0 : index
    %231 = vector.load %arg8[%c0_79, %c0_80] : memref<8x128xf32, #tpu.memory_space<vmem>>, vector<8x128xf32>
    %c8_i32_81 = arith.constant 8 : i32
    %232 = arith.muli %c6_i32, %c8_i32_81 : i32
    %233 = tpu.assume_multiple %232, 8 : i32
    %234 = arith.index_cast %233 : i32 to index
    %c0_82 = arith.constant 0 : index
    %235 = vector.load %arg9[%234, %c0_82] : memref<64x384xf32, #tpu.memory_space<vmem>>, vector<8x384xf32>
    %cst_83 = arith.constant dense<0.000000e+00> : vector<8x384xf32>
    %236 = tpu.matmul %231, %11, %cst_83 {dimension_numbers = #tpu.dot_dimension_numbers<[1], [0], [0], [1], [0, 0, 1, 1], [], []>} : vector<8x128xf32>, vector<128x384xf32>, vector<8x384xf32> -> vector<8x384xf32>
    %237 = vector.extract_strided_slice %235 {offsets = [0, 0], sizes = [8, 128], strides = [1, 1]} : vector<8x384xf32> to vector<8x128xf32>
    %238 = vector.extract_strided_slice %236 {offsets = [0, 0], sizes = [8, 128], strides = [1, 1]} : vector<8x384xf32> to vector<8x128xf32>
    %239 = arith.addf %237, %238 : vector<8x128xf32>
    %240 = arith.negf %239 : vector<8x128xf32>
    %241 = math.exp %240 : vector<8x128xf32>
    %cst_84 = arith.constant 1.000000e+00 : f32
    %242 = vector.broadcast %cst_84 : f32 to vector<8x128xf32>
    %243 = arith.addf %242, %241 : vector<8x128xf32>
    %244 = arith.divf %242, %243 : vector<8x128xf32>
    %245 = vector.extract_strided_slice %235 {offsets = [0, 128], sizes = [8, 128], strides = [1, 1]} : vector<8x384xf32> to vector<8x128xf32>
    %246 = vector.extract_strided_slice %236 {offsets = [0, 128], sizes = [8, 128], strides = [1, 1]} : vector<8x384xf32> to vector<8x128xf32>
    %247 = arith.addf %245, %246 : vector<8x128xf32>
    %248 = arith.negf %247 : vector<8x128xf32>
    %249 = math.exp %248 : vector<8x128xf32>
    %cst_85 = arith.constant 1.000000e+00 : f32
    %250 = vector.broadcast %cst_85 : f32 to vector<8x128xf32>
    %251 = arith.addf %250, %249 : vector<8x128xf32>
    %252 = arith.divf %250, %251 : vector<8x128xf32>
    %253 = vector.extract_strided_slice %235 {offsets = [0, 256], sizes = [8, 128], strides = [1, 1]} : vector<8x384xf32> to vector<8x128xf32>
    %254 = vector.extract_strided_slice %236 {offsets = [0, 256], sizes = [8, 128], strides = [1, 1]} : vector<8x384xf32> to vector<8x128xf32>
    %255 = arith.addf %254, %14 : vector<8x128xf32>
    %256 = arith.mulf %244, %255 : vector<8x128xf32>
    %257 = arith.addf %253, %256 : vector<8x128xf32>
    %258 = math.tanh %257 : vector<8x128xf32>
    %259 = arith.subf %231, %258 : vector<8x128xf32>
    %260 = arith.mulf %252, %259 : vector<8x128xf32>
    %261 = arith.addf %258, %260 : vector<8x128xf32>
    %c0_86 = arith.constant 0 : index
    %c0_87 = arith.constant 0 : index
    %262 = vector.load %arg8[%c0_86, %c0_87] : memref<8x128xf32, #tpu.memory_space<vmem>>, vector<8x128xf32>
    tpu.vector_store %arg8[%c0_86, %c0_87], %261 {strides = array<i32>} : memref<8x128xf32, #tpu.memory_space<vmem>>, vector<8x128xf32>,
    %263 = arith.index_cast %c6_i32 : i32 to index
    %c0_88 = arith.constant 0 : index
    %c0_89 = arith.constant 0 : index
    %264 = vector.load %arg7[%263, %c0_88, %c0_89] : memref<8x8x128xf32, #tpu.memory_space<vmem>>, vector<1x8x128xf32>
    %265 = vector.shape_cast %264 : vector<1x8x128xf32> to vector<8x128xf32>
    %266 = vector.shape_cast %261 : vector<8x128xf32> to vector<1x8x128xf32>
    tpu.vector_store %arg7[%263, %c0_88, %c0_89], %266 {strides = array<i32>} : memref<8x8x128xf32, #tpu.memory_space<vmem>>, vector<1x8x128xf32>,
    %c7_i32 = arith.constant 7 : i32
    %c0_90 = arith.constant 0 : index
    %c0_91 = arith.constant 0 : index
    %267 = vector.load %arg8[%c0_90, %c0_91] : memref<8x128xf32, #tpu.memory_space<vmem>>, vector<8x128xf32>
    %c8_i32_92 = arith.constant 8 : i32
    %268 = arith.muli %c7_i32, %c8_i32_92 : i32
    %269 = tpu.assume_multiple %268, 8 : i32
    %270 = arith.index_cast %269 : i32 to index
    %c0_93 = arith.constant 0 : index
    %271 = vector.load %arg9[%270, %c0_93] : memref<64x384xf32, #tpu.memory_space<vmem>>, vector<8x384xf32>
    %cst_94 = arith.constant dense<0.000000e+00> : vector<8x384xf32>
    %272 = tpu.matmul %267, %11, %cst_94 {dimension_numbers = #tpu.dot_dimension_numbers<[1], [0], [0], [1], [0, 0, 1, 1], [], []>} : vector<8x128xf32>, vector<128x384xf32>, vector<8x384xf32> -> vector<8x384xf32>
    %273 = vector.extract_strided_slice %271 {offsets = [0, 0], sizes = [8, 128], strides = [1, 1]} : vector<8x384xf32> to vector<8x128xf32>
    %274 = vector.extract_strided_slice %272 {offsets = [0, 0], sizes = [8, 128], strides = [1, 1]} : vector<8x384xf32> to vector<8x128xf32>
    %275 = arith.addf %273, %274 : vector<8x128xf32>
    %276 = arith.negf %275 : vector<8x128xf32>
    %277 = math.exp %276 : vector<8x128xf32>
    %cst_95 = arith.constant 1.000000e+00 : f32
    %278 = vector.broadcast %cst_95 : f32 to vector<8x128xf32>
    %279 = arith.addf %278, %277 : vector<8x128xf32>
    %280 = arith.divf %278, %279 : vector<8x128xf32>
    %281 = vector.extract_strided_slice %271 {offsets = [0, 128], sizes = [8, 128], strides = [1, 1]} : vector<8x384xf32> to vector<8x128xf32>
    %282 = vector.extract_strided_slice %272 {offsets = [0, 128], sizes = [8, 128], strides = [1, 1]} : vector<8x384xf32> to vector<8x128xf32>
    %283 = arith.addf %281, %282 : vector<8x128xf32>
    %284 = arith.negf %283 : vector<8x128xf32>
    %285 = math.exp %284 : vector<8x128xf32>
    %cst_96 = arith.constant 1.000000e+00 : f32
    %286 = vector.broadcast %cst_96 : f32 to vector<8x128xf32>
    %287 = arith.addf %286, %285 : vector<8x128xf32>
    %288 = arith.divf %286, %287 : vector<8x128xf32>
    %289 = vector.extract_strided_slice %271 {offsets = [0, 256], sizes = [8, 128], strides = [1, 1]} : vector<8x384xf32> to vector<8x128xf32>
    %290 = vector.extract_strided_slice %272 {offsets = [0, 256], sizes = [8, 128], strides = [1, 1]} : vector<8x384xf32> to vector<8x128xf32>
    %291 = arith.addf %290, %14 : vector<8x128xf32>
    %292 = arith.mulf %280, %291 : vector<8x128xf32>
    %293 = arith.addf %289, %292 : vector<8x128xf32>
    %294 = math.tanh %293 : vector<8x128xf32>
    %295 = arith.subf %267, %294 : vector<8x128xf32>
    %296 = arith.mulf %288, %295 : vector<8x128xf32>
    %297 = arith.addf %294, %296 : vector<8x128xf32>
    %c0_97 = arith.constant 0 : index
    %c0_98 = arith.constant 0 : index
    %298 = vector.load %arg8[%c0_97, %c0_98] : memref<8x128xf32, #tpu.memory_space<vmem>>, vector<8x128xf32>
    tpu.vector_store %arg8[%c0_97, %c0_98], %297 {strides = array<i32>} : memref<8x128xf32, #tpu.memory_space<vmem>>, vector<8x128xf32>,
    %299 = arith.index_cast %c7_i32 : i32 to index
    %c0_99 = arith.constant 0 : index
    %c0_100 = arith.constant 0 : index
    %300 = vector.load %arg7[%299, %c0_99, %c0_100] : memref<8x8x128xf32, #tpu.memory_space<vmem>>, vector<1x8x128xf32>
    %301 = vector.shape_cast %300 : vector<1x8x128xf32> to vector<8x128xf32>
    %302 = vector.shape_cast %297 : vector<8x128xf32> to vector<1x8x128xf32>
    tpu.vector_store %arg7[%299, %c0_99, %c0_100], %302 {strides = array<i32>} : memref<8x8x128xf32, #tpu.memory_space<vmem>>, vector<1x8x128xf32>,
    %c8_i32_101 = arith.constant 8 : i32
    return
  }
  func.func @transform_0(%arg0: i32) -> (i32, i32, i32) {
    %c0_i32 = arith.constant 0 : i32
    %c0_i32_0 = arith.constant 0 : i32
    %c0_i32_1 = arith.constant 0 : i32
    return %arg0, %c0_i32, %c0_i32_0 : i32, i32, i32
  }
  func.func @transform_1(%arg0: i32) -> (i32, i32) {
    %c0_i32 = arith.constant 0 : i32
    %c0_i32_0 = arith.constant 0 : i32
    %c0_i32_1 = arith.constant 0 : i32
    return %c0_i32, %c0_i32_0 : i32, i32
  }
  func.func @transform_2(%arg0: i32) -> (i32, i32) {
    %c0_i32 = arith.constant 0 : i32
    %c0_i32_0 = arith.constant 0 : i32
    %c0_i32_1 = arith.constant 0 : i32
    return %c0_i32, %c0_i32_0 : i32, i32
  }
  func.func @transform_3(%arg0: i32) -> (i32, i32) {
    %c0_i32 = arith.constant 0 : i32
    %c0_i32_0 = arith.constant 0 : i32
    %c0_i32_1 = arith.constant 0 : i32
    return %c0_i32, %c0_i32_0 : i32, i32
  }
  func.func @transform_4(%arg0: i32) -> (i32, i32) {
    %c0_i32 = arith.constant 0 : i32
    %c0_i32_0 = arith.constant 0 : i32
    %c0_i32_1 = arith.constant 0 : i32
    return %c0_i32, %c0_i32_0 : i32, i32
  }
  func.func @transform_5(%arg0: i32) -> (i32, i32) {
    %c0_i32 = arith.constant 0 : i32
    %c0_i32_0 = arith.constant 0 : i32
    %c0_i32_1 = arith.constant 0 : i32
    return %c0_i32, %c0_i32_0 : i32, i32
  }
  func.func @transform_6(%arg0: i32) -> (i32, i32, i32) {
    %c0_i32 = arith.constant 0 : i32
    %c0_i32_0 = arith.constant 0 : i32
    %c0_i32_1 = arith.constant 0 : i32
    return %arg0, %c0_i32, %c0_i32_0 : i32, i32, i32
  }
}

module attributes {stable_mosaic.version = 11 : i64} {
  func.func @_gru_fused_kernel(%arg0: i32, %arg1: memref<8x8x128xf32, #tpu.memory_space<vmem>>, %arg2: memref<8x128xf32, #tpu.memory_space<vmem>>, %arg3: memref<128x384xf32, #tpu.memory_space<vmem>>, %arg4: memref<128x384xf32, #tpu.memory_space<vmem>>, %arg5: memref<1x384xf32, #tpu.memory_space<vmem>>, %arg6: memref<1x128xf32, #tpu.memory_space<vmem>>, %arg7: memref<8x8x128xf32, #tpu.memory_space<vmem>>, %arg8: memref<8x128xf32, #tpu.memory_space<vmem>>, %arg9: memref<64x384xf32, #tpu.memory_space<vmem>>) attributes {dimension_semantics = [#tpu.dimension_semantics<arbitrary>], iteration_bounds = array<i64: 1>, scalar_prefetch = 0 : i64, scratch_operands = 2 : i64, tpu.core_type = #tpu.core_type<tc>, window_params = [{transform_indices = @transform_0, window_bounds = array<i64: 8, 8, 128>}, {pipeline_mode = #tpu.pipeline_mode<synchronous>, transform_indices = @transform_1, window_bounds = array<i64: 8, 128>}, {pipeline_mode = #tpu.pipeline_mode<synchronous>, transform_indices = @transform_2, window_bounds = array<i64: 128, 384>}, {pipeline_mode = #tpu.pipeline_mode<synchronous>, transform_indices = @transform_3, window_bounds = array<i64: 128, 384>}, {pipeline_mode = #tpu.pipeline_mode<synchronous>, transform_indices = @transform_4, window_bounds = array<i64: 1, 384>}, {pipeline_mode = #tpu.pipeline_mode<synchronous>, transform_indices = @transform_5, window_bounds = array<i64: 1, 128>}, {transform_indices = @transform_6, window_bounds = array<i64: 8, 8, 128>}]} {
    %c0_i32 = arith.constant 0 : i32
    %0 = arith.cmpi eq, %arg0, %c0_i32 : i32
    %1 = arith.extui %0 : i1 to i32
    %c0_i32_0 = arith.constant 0 : i32
    %2 = arith.cmpi ne, %1, %c0_i32_0 : i32
    scf.if %2 {
      %c0_102 = arith.constant 0 : index
      %c0_103 = arith.constant 0 : index
      %303 = vector.load %arg2[%c0_102, %c0_103] : memref<8x128xf32, #tpu.memory_space<vmem>>, vector<8x128xf32>
      %c0_104 = arith.constant 0 : index
      %c0_105 = arith.constant 0 : index
      %304 = vector.load %arg8[%c0_104, %c0_105] : memref<8x128xf32, #tpu.memory_space<vmem>>, vector<8x128xf32>
      tpu.vector_store %arg8[%c0_104, %c0_105], %303 {strides = array<i32>} : memref<8x128xf32, #tpu.memory_space<vmem>>, vector<8x128xf32>,
    } else {
    }
    %c0 = arith.constant 0 : index
    %c0_1 = arith.constant 0 : index
    %c0_2 = arith.constant 0 : index
    %3 = vector.load %arg1[%c0, %c0_1, %c0_2] : memref<8x8x128xf32, #tpu.memory_space<vmem>>, vector<8x8x128xf32>
    %4 = vector.shape_cast %3 : vector<8x8x128xf32> to vector<64x128xf32>
    %c0_3 = arith.constant 0 : index
    %c0_4 = arith.constant 0 : index
    %5 = vector.load %arg3[%c0_3, %c0_4] : memref<128x384xf32, #tpu.memory_space<vmem>>, vector<128x384xf32>
    %cst = arith.constant dense<0.000000e+00> : vector<64x384xf32>
    %6 = tpu.matmul %4, %5, %cst {dimension_numbers = #tpu.dot_dimension_numbers<[1], [0], [0], [1], [0, 0, 1, 1], [], []>} : vector<64x128xf32>, vector<128x384xf32>, vector<64x384xf32> -> vector<64x384xf32>
    %c0_5 = arith.constant 0 : index
    %c0_6 = arith.constant 0 : index
    %7 = vector.load %arg5[%c0_5, %c0_6] : memref<1x384xf32, #tpu.memory_space<vmem>>, vector<1x384xf32>
    %8 = vector.broadcast %7 : vector<1x384xf32> to vector<64x384xf32>
    %9 = arith.addf %6, %8 : vector<64x384xf32>
    %c0_7 = arith.constant 0 : index
    %c0_8 = arith.constant 0 : index
    %10 = vector.load %arg9[%c0_7, %c0_8] : memref<64x384xf32, #tpu.memory_space<vmem>>, vector<64x384xf32>
    tpu.vector_store %arg9[%c0_7, %c0_8], %9 {strides = array<i32>} : memref<64x384xf32, #tpu.memory_space<vmem>>, vector<64x384xf32>,
    %c0_9 = arith.constant 0 : index
    %c0_10 = arith.constant 0 : index
    %11 = vector.load %arg4[%c0_9, %c0_10] : memref<128x384xf32, #tpu.memory_space<vmem>>, vector<128x384xf32>
    %c0_11 = arith.constant 0 : index
    %c0_12 = arith.constant 0 : index
    %12 = vector.load %arg6[%c0_11, %c0_12] : memref<1x128xf32, #tpu.memory_space<vmem>>, vector<1x128xf32>
    %13 = vector.shape_cast %12 : vector<1x128xf32> to vector<1x128xf32>
    %14 = vector.broadcast %13 : vector<1x128xf32> to vector<8x128xf32>
    %c0_i32_13 = arith.constant 0 : i32
    %c0_14 = arith.constant 0 : index
    %c0_15 = arith.constant 0 : index
    %15 = vector.load %arg8[%c0_14, %c0_15] : memref<8x128xf32, #tpu.memory_space<vmem>>, vector<8x128xf32>
    %c8_i32 = arith.constant 8 : i32
    %16 = arith.muli %c0_i32_13, %c8_i32 : i32
    %17 = tpu.assume_multiple %16, 8 : i32
    %18 = arith.index_cast %17 : i32 to index
    %c0_16 = arith.constant 0 : index
    %19 = vector.load %arg9[%18, %c0_16] : memref<64x384xf32, #tpu.memory_space<vmem>>, vector<8x384xf32>
    %cst_17 = arith.constant dense<0.000000e+00> : vector<8x384xf32>
    %20 = tpu.matmul %15, %11, %cst_17 {dimension_numbers = #tpu.dot_dimension_numbers<[1], [0], [0], [1], [0, 0, 1, 1], [], []>} : vector<8x128xf32>, vector<128x384xf32>, vector<8x384xf32> -> vector<8x384xf32>
    %21 = vector.extract_strided_slice %19 {offsets = [0, 0], sizes = [8, 128], strides = [1, 1]} : vector<8x384xf32> to vector<8x128xf32>
    %22 = vector.extract_strided_slice %20 {offsets = [0, 0], sizes = [8, 128], strides = [1, 1]} : vector<8x384xf32> to vector<8x128xf32>
    %23 = arith.addf %21, %22 : vector<8x128xf32>
    %24 = arith.negf %23 : vector<8x128xf32>
    %25 = math.exp %24 : vector<8x128xf32>
    %cst_18 = arith.constant 1.000000e+00 : f32
    %26 = vector.broadcast %cst_18 : f32 to vector<8x128xf32>
    %27 = arith.addf %26, %25 : vector<8x128xf32>
    %28 = arith.divf %26, %27 : vector<8x128xf32>
    %29 = vector.extract_strided_slice %19 {offsets = [0, 128], sizes = [8, 128], strides = [1, 1]} : vector<8x384xf32> to vector<8x128xf32>
    %30 = vector.extract_strided_slice %20 {offsets = [0, 128], sizes = [8, 128], strides = [1, 1]} : vector<8x384xf32> to vector<8x128xf32>
    %31 = arith.addf %29, %30 : vector<8x128xf32>
    %32 = arith.negf %31 : vector<8x128xf32>
    %33 = math.exp %32 : vector<8x128xf32>
    %cst_19 = arith.constant 1.000000e+00 : f32
    %34 = vector.broadcast %cst_19 : f32 to vector<8x128xf32>
    %35 = arith.addf %34, %33 : vector<8x128xf32>
    %36 = arith.divf %34, %35 : vector<8x128xf32>
    %37 = vector.extract_strided_slice %19 {offsets = [0, 256], sizes = [8, 128], strides = [1, 1]} : vector<8x384xf32> to vector<8x128xf32>
    %38 = vector.extract_strided_slice %20 {offsets = [0, 256], sizes = [8, 128], strides = [1, 1]} : vector<8x384xf32> to vector<8x128xf32>
    %39 = arith.addf %38, %14 : vector<8x128xf32>
    %40 = arith.mulf %28, %39 : vector<8x128xf32>
    %41 = arith.addf %37, %40 : vector<8x128xf32>
    %42 = math.tanh %41 : vector<8x128xf32>
    %43 = arith.subf %15, %42 : vector<8x128xf32>
    %44 = arith.mulf %36, %43 : vector<8x128xf32>
    %45 = arith.addf %42, %44 : vector<8x128xf32>
    %c0_20 = arith.constant 0 : index
    %c0_21 = arith.constant 0 : index
    %46 = vector.load %arg8[%c0_20, %c0_21] : memref<8x128xf32, #tpu.memory_space<vmem>>, vector<8x128xf32>
    tpu.vector_store %arg8[%c0_20, %c0_21], %45 {strides = array<i32>} : memref<8x128xf32, #tpu.memory_space<vmem>>, vector<8x128xf32>,
    %47 = arith.index_cast %c0_i32_13 : i32 to index
    %c0_22 = arith.constant 0 : index
    %c0_23 = arith.constant 0 : index
    %48 = vector.load %arg7[%47, %c0_22, %c0_23] : memref<8x8x128xf32, #tpu.memory_space<vmem>>, vector<1x8x128xf32>
    %49 = vector.shape_cast %48 : vector<1x8x128xf32> to vector<8x128xf32>
    %50 = vector.shape_cast %45 : vector<8x128xf32> to vector<1x8x128xf32>
    tpu.vector_store %arg7[%47, %c0_22, %c0_23], %50 {strides = array<i32>} : memref<8x8x128xf32, #tpu.memory_space<vmem>>, vector<1x8x128xf32>,
    %c1_i32 = arith.constant 1 : i32
    %c0_24 = arith.constant 0 : index
    %c0_25 = arith.constant 0 : index
    %51 = vector.load %arg8[%c0_24, %c0_25] : memref<8x128xf32, #tpu.memory_space<vmem>>, vector<8x128xf32>
    %c8_i32_26 = arith.constant 8 : i32
    %52 = arith.muli %c1_i32, %c8_i32_26 : i32
    %53 = tpu.assume_multiple %52, 8 : i32
    %54 = arith.index_cast %53 : i32 to index
    %c0_27 = arith.constant 0 : index
    %55 = vector.load %arg9[%54, %c0_27] : memref<64x384xf32, #tpu.memory_space<vmem>>, vector<8x384xf32>
    %cst_28 = arith.constant dense<0.000000e+00> : vector<8x384xf32>
    %56 = tpu.matmul %51, %11, %cst_28 {dimension_numbers = #tpu.dot_dimension_numbers<[1], [0], [0], [1], [0, 0, 1, 1], [], []>} : vector<8x128xf32>, vector<128x384xf32>, vector<8x384xf32> -> vector<8x384xf32>
    %57 = vector.extract_strided_slice %55 {offsets = [0, 0], sizes = [8, 128], strides = [1, 1]} : vector<8x384xf32> to vector<8x128xf32>
    %58 = vector.extract_strided_slice %56 {offsets = [0, 0], sizes = [8, 128], strides = [1, 1]} : vector<8x384xf32> to vector<8x128xf32>
    %59 = arith.addf %57, %58 : vector<8x128xf32>
    %60 = arith.negf %59 : vector<8x128xf32>
    %61 = math.exp %60 : vector<8x128xf32>
    %cst_29 = arith.constant 1.000000e+00 : f32
    %62 = vector.broadcast %cst_29 : f32 to vector<8x128xf32>
    %63 = arith.addf %62, %61 : vector<8x128xf32>
    %64 = arith.divf %62, %63 : vector<8x128xf32>
    %65 = vector.extract_strided_slice %55 {offsets = [0, 128], sizes = [8, 128], strides = [1, 1]} : vector<8x384xf32> to vector<8x128xf32>
    %66 = vector.extract_strided_slice %56 {offsets = [0, 128], sizes = [8, 128], strides = [1, 1]} : vector<8x384xf32> to vector<8x128xf32>
    %67 = arith.addf %65, %66 : vector<8x128xf32>
    %68 = arith.negf %67 : vector<8x128xf32>
    %69 = math.exp %68 : vector<8x128xf32>
    %cst_30 = arith.constant 1.000000e+00 : f32
    %70 = vector.broadcast %cst_30 : f32 to vector<8x128xf32>
    %71 = arith.addf %70, %69 : vector<8x128xf32>
    %72 = arith.divf %70, %71 : vector<8x128xf32>
    %73 = vector.extract_strided_slice %55 {offsets = [0, 256], sizes = [8, 128], strides = [1, 1]} : vector<8x384xf32> to vector<8x128xf32>
    %74 = vector.extract_strided_slice %56 {offsets = [0, 256], sizes = [8, 128], strides = [1, 1]} : vector<8x384xf32> to vector<8x128xf32>
    %75 = arith.addf %74, %14 : vector<8x128xf32>
    %76 = arith.mulf %64, %75 : vector<8x128xf32>
    %77 = arith.addf %73, %76 : vector<8x128xf32>
    %78 = math.tanh %77 : vector<8x128xf32>
    %79 = arith.subf %51, %78 : vector<8x128xf32>
    %80 = arith.mulf %72, %79 : vector<8x128xf32>
    %81 = arith.addf %78, %80 : vector<8x128xf32>
    %c0_31 = arith.constant 0 : index
    %c0_32 = arith.constant 0 : index
    %82 = vector.load %arg8[%c0_31, %c0_32] : memref<8x128xf32, #tpu.memory_space<vmem>>, vector<8x128xf32>
    tpu.vector_store %arg8[%c0_31, %c0_32], %81 {strides = array<i32>} : memref<8x128xf32, #tpu.memory_space<vmem>>, vector<8x128xf32>,
    %83 = arith.index_cast %c1_i32 : i32 to index
    %c0_33 = arith.constant 0 : index
    %c0_34 = arith.constant 0 : index
    %84 = vector.load %arg7[%83, %c0_33, %c0_34] : memref<8x8x128xf32, #tpu.memory_space<vmem>>, vector<1x8x128xf32>
    %85 = vector.shape_cast %84 : vector<1x8x128xf32> to vector<8x128xf32>
    %86 = vector.shape_cast %81 : vector<8x128xf32> to vector<1x8x128xf32>
    tpu.vector_store %arg7[%83, %c0_33, %c0_34], %86 {strides = array<i32>} : memref<8x8x128xf32, #tpu.memory_space<vmem>>, vector<1x8x128xf32>,
    %c2_i32 = arith.constant 2 : i32
    %c0_35 = arith.constant 0 : index
    %c0_36 = arith.constant 0 : index
    %87 = vector.load %arg8[%c0_35, %c0_36] : memref<8x128xf32, #tpu.memory_space<vmem>>, vector<8x128xf32>
    %c8_i32_37 = arith.constant 8 : i32
    %88 = arith.muli %c2_i32, %c8_i32_37 : i32
    %89 = tpu.assume_multiple %88, 8 : i32
    %90 = arith.index_cast %89 : i32 to index
    %c0_38 = arith.constant 0 : index
    %91 = vector.load %arg9[%90, %c0_38] : memref<64x384xf32, #tpu.memory_space<vmem>>, vector<8x384xf32>
    %cst_39 = arith.constant dense<0.000000e+00> : vector<8x384xf32>
    %92 = tpu.matmul %87, %11, %cst_39 {dimension_numbers = #tpu.dot_dimension_numbers<[1], [0], [0], [1], [0, 0, 1, 1], [], []>} : vector<8x128xf32>, vector<128x384xf32>, vector<8x384xf32> -> vector<8x384xf32>
    %93 = vector.extract_strided_slice %91 {offsets = [0, 0], sizes = [8, 128], strides = [1, 1]} : vector<8x384xf32> to vector<8x128xf32>
    %94 = vector.extract_strided_slice %92 {offsets = [0, 0], sizes = [8, 128], strides = [1, 1]} : vector<8x384xf32> to vector<8x128xf32>
    %95 = arith.addf %93, %94 : vector<8x128xf32>
    %96 = arith.negf %95 : vector<8x128xf32>
    %97 = math.exp %96 : vector<8x128xf32>
    %cst_40 = arith.constant 1.000000e+00 : f32
    %98 = vector.broadcast %cst_40 : f32 to vector<8x128xf32>
    %99 = arith.addf %98, %97 : vector<8x128xf32>
    %100 = arith.divf %98, %99 : vector<8x128xf32>
    %101 = vector.extract_strided_slice %91 {offsets = [0, 128], sizes = [8, 128], strides = [1, 1]} : vector<8x384xf32> to vector<8x128xf32>
    %102 = vector.extract_strided_slice %92 {offsets = [0, 128], sizes = [8, 128], strides = [1, 1]} : vector<8x384xf32> to vector<8x128xf32>
    %103 = arith.addf %101, %102 : vector<8x128xf32>
    %104 = arith.negf %103 : vector<8x128xf32>
    %105 = math.exp %104 : vector<8x128xf32>
    %cst_41 = arith.constant 1.000000e+00 : f32
    %106 = vector.broadcast %cst_41 : f32 to vector<8x128xf32>
    %107 = arith.addf %106, %105 : vector<8x128xf32>
    %108 = arith.divf %106, %107 : vector<8x128xf32>
    %109 = vector.extract_strided_slice %91 {offsets = [0, 256], sizes = [8, 128], strides = [1, 1]} : vector<8x384xf32> to vector<8x128xf32>
    %110 = vector.extract_strided_slice %92 {offsets = [0, 256], sizes = [8, 128], strides = [1, 1]} : vector<8x384xf32> to vector<8x128xf32>
    %111 = arith.addf %110, %14 : vector<8x128xf32>
    %112 = arith.mulf %100, %111 : vector<8x128xf32>
    %113 = arith.addf %109, %112 : vector<8x128xf32>
    %114 = math.tanh %113 : vector<8x128xf32>
    %115 = arith.subf %87, %114 : vector<8x128xf32>
    %116 = arith.mulf %108, %115 : vector<8x128xf32>
    %117 = arith.addf %114, %116 : vector<8x128xf32>
    %c0_42 = arith.constant 0 : index
    %c0_43 = arith.constant 0 : index
    %118 = vector.load %arg8[%c0_42, %c0_43] : memref<8x128xf32, #tpu.memory_space<vmem>>, vector<8x128xf32>
    tpu.vector_store %arg8[%c0_42, %c0_43], %117 {strides = array<i32>} : memref<8x128xf32, #tpu.memory_space<vmem>>, vector<8x128xf32>,
    %119 = arith.index_cast %c2_i32 : i32 to index
    %c0_44 = arith.constant 0 : index
    %c0_45 = arith.constant 0 : index
    %120 = vector.load %arg7[%119, %c0_44, %c0_45] : memref<8x8x128xf32, #tpu.memory_space<vmem>>, vector<1x8x128xf32>
    %121 = vector.shape_cast %120 : vector<1x8x128xf32> to vector<8x128xf32>
    %122 = vector.shape_cast %117 : vector<8x128xf32> to vector<1x8x128xf32>
    tpu.vector_store %arg7[%119, %c0_44, %c0_45], %122 {strides = array<i32>} : memref<8x8x128xf32, #tpu.memory_space<vmem>>, vector<1x8x128xf32>,
    %c3_i32 = arith.constant 3 : i32
    %c0_46 = arith.constant 0 : index
    %c0_47 = arith.constant 0 : index
    %123 = vector.load %arg8[%c0_46, %c0_47] : memref<8x128xf32, #tpu.memory_space<vmem>>, vector<8x128xf32>
    %c8_i32_48 = arith.constant 8 : i32
    %124 = arith.muli %c3_i32, %c8_i32_48 : i32
    %125 = tpu.assume_multiple %124, 8 : i32
    %126 = arith.index_cast %125 : i32 to index
    %c0_49 = arith.constant 0 : index
    %127 = vector.load %arg9[%126, %c0_49] : memref<64x384xf32, #tpu.memory_space<vmem>>, vector<8x384xf32>
    %cst_50 = arith.constant dense<0.000000e+00> : vector<8x384xf32>
    %128 = tpu.matmul %123, %11, %cst_50 {dimension_numbers = #tpu.dot_dimension_numbers<[1], [0], [0], [1], [0, 0, 1, 1], [], []>} : vector<8x128xf32>, vector<128x384xf32>, vector<8x384xf32> -> vector<8x384xf32>
    %129 = vector.extract_strided_slice %127 {offsets = [0, 0], sizes = [8, 128], strides = [1, 1]} : vector<8x384xf32> to vector<8x128xf32>
    %130 = vector.extract_strided_slice %128 {offsets = [0, 0], sizes = [8, 128], strides = [1, 1]} : vector<8x384xf32> to vector<8x128xf32>
    %131 = arith.addf %129, %130 : vector<8x128xf32>
    %132 = arith.negf %131 : vector<8x128xf32>
    %133 = math.exp %132 : vector<8x128xf32>
    %cst_51 = arith.constant 1.000000e+00 : f32
    %134 = vector.broadcast %cst_51 : f32 to vector<8x128xf32>
    %135 = arith.addf %134, %133 : vector<8x128xf32>
    %136 = arith.divf %134, %135 : vector<8x128xf32>
    %137 = vector.extract_strided_slice %127 {offsets = [0, 128], sizes = [8, 128], strides = [1, 1]} : vector<8x384xf32> to vector<8x128xf32>
    %138 = vector.extract_strided_slice %128 {offsets = [0, 128], sizes = [8, 128], strides = [1, 1]} : vector<8x384xf32> to vector<8x128xf32>
    %139 = arith.addf %137, %138 : vector<8x128xf32>
    %140 = arith.negf %139 : vector<8x128xf32>
    %141 = math.exp %140 : vector<8x128xf32>
    %cst_52 = arith.constant 1.000000e+00 : f32
    %142 = vector.broadcast %cst_52 : f32 to vector<8x128xf32>
    %143 = arith.addf %142, %141 : vector<8x128xf32>
    %144 = arith.divf %142, %143 : vector<8x128xf32>
    %145 = vector.extract_strided_slice %127 {offsets = [0, 256], sizes = [8, 128], strides = [1, 1]} : vector<8x384xf32> to vector<8x128xf32>
    %146 = vector.extract_strided_slice %128 {offsets = [0, 256], sizes = [8, 128], strides = [1, 1]} : vector<8x384xf32> to vector<8x128xf32>
    %147 = arith.addf %146, %14 : vector<8x128xf32>
    %148 = arith.mulf %136, %147 : vector<8x128xf32>
    %149 = arith.addf %145, %148 : vector<8x128xf32>
    %150 = math.tanh %149 : vector<8x128xf32>
    %151 = arith.subf %123, %150 : vector<8x128xf32>
    %152 = arith.mulf %144, %151 : vector<8x128xf32>
    %153 = arith.addf %150, %152 : vector<8x128xf32>
    %c0_53 = arith.constant 0 : index
    %c0_54 = arith.constant 0 : index
    %154 = vector.load %arg8[%c0_53, %c0_54] : memref<8x128xf32, #tpu.memory_space<vmem>>, vector<8x128xf32>
    tpu.vector_store %arg8[%c0_53, %c0_54], %153 {strides = array<i32>} : memref<8x128xf32, #tpu.memory_space<vmem>>, vector<8x128xf32>,
    %155 = arith.index_cast %c3_i32 : i32 to index
    %c0_55 = arith.constant 0 : index
    %c0_56 = arith.constant 0 : index
    %156 = vector.load %arg7[%155, %c0_55, %c0_56] : memref<8x8x128xf32, #tpu.memory_space<vmem>>, vector<1x8x128xf32>
    %157 = vector.shape_cast %156 : vector<1x8x128xf32> to vector<8x128xf32>
    %158 = vector.shape_cast %153 : vector<8x128xf32> to vector<1x8x128xf32>
    tpu.vector_store %arg7[%155, %c0_55, %c0_56], %158 {strides = array<i32>} : memref<8x8x128xf32, #tpu.memory_space<vmem>>, vector<1x8x128xf32>,
    %c4_i32 = arith.constant 4 : i32
    %c0_57 = arith.constant 0 : index
    %c0_58 = arith.constant 0 : index
    %159 = vector.load %arg8[%c0_57, %c0_58] : memref<8x128xf32, #tpu.memory_space<vmem>>, vector<8x128xf32>
    %c8_i32_59 = arith.constant 8 : i32
    %160 = arith.muli %c4_i32, %c8_i32_59 : i32
    %161 = tpu.assume_multiple %160, 8 : i32
    %162 = arith.index_cast %161 : i32 to index
    %c0_60 = arith.constant 0 : index
    %163 = vector.load %arg9[%162, %c0_60] : memref<64x384xf32, #tpu.memory_space<vmem>>, vector<8x384xf32>
    %cst_61 = arith.constant dense<0.000000e+00> : vector<8x384xf32>
    %164 = tpu.matmul %159, %11, %cst_61 {dimension_numbers = #tpu.dot_dimension_numbers<[1], [0], [0], [1], [0, 0, 1, 1], [], []>} : vector<8x128xf32>, vector<128x384xf32>, vector<8x384xf32> -> vector<8x384xf32>
    %165 = vector.extract_strided_slice %163 {offsets = [0, 0], sizes = [8, 128], strides = [1, 1]} : vector<8x384xf32> to vector<8x128xf32>
    %166 = vector.extract_strided_slice %164 {offsets = [0, 0], sizes = [8, 128], strides = [1, 1]} : vector<8x384xf32> to vector<8x128xf32>
    %167 = arith.addf %165, %166 : vector<8x128xf32>
    %168 = arith.negf %167 : vector<8x128xf32>
    %169 = math.exp %168 : vector<8x128xf32>
    %cst_62 = arith.constant 1.000000e+00 : f32
    %170 = vector.broadcast %cst_62 : f32 to vector<8x128xf32>
    %171 = arith.addf %170, %169 : vector<8x128xf32>
    %172 = arith.divf %170, %171 : vector<8x128xf32>
    %173 = vector.extract_strided_slice %163 {offsets = [0, 128], sizes = [8, 128], strides = [1, 1]} : vector<8x384xf32> to vector<8x128xf32>
    %174 = vector.extract_strided_slice %164 {offsets = [0, 128], sizes = [8, 128], strides = [1, 1]} : vector<8x384xf32> to vector<8x128xf32>
    %175 = arith.addf %173, %174 : vector<8x128xf32>
    %176 = arith.negf %175 : vector<8x128xf32>
    %177 = math.exp %176 : vector<8x128xf32>
    %cst_63 = arith.constant 1.000000e+00 : f32
    %178 = vector.broadcast %cst_63 : f32 to vector<8x128xf32>
    %179 = arith.addf %178, %177 : vector<8x128xf32>
    %180 = arith.divf %178, %179 : vector<8x128xf32>
    %181 = vector.extract_strided_slice %163 {offsets = [0, 256], sizes = [8, 128], strides = [1, 1]} : vector<8x384xf32> to vector<8x128xf32>
    %182 = vector.extract_strided_slice %164 {offsets = [0, 256], sizes = [8, 128], strides = [1, 1]} : vector<8x384xf32> to vector<8x128xf32>
    %183 = arith.addf %182, %14 : vector<8x128xf32>
    %184 = arith.mulf %172, %183 : vector<8x128xf32>
    %185 = arith.addf %181, %184 : vector<8x128xf32>
    %186 = math.tanh %185 : vector<8x128xf32>
    %187 = arith.subf %159, %186 : vector<8x128xf32>
    %188 = arith.mulf %180, %187 : vector<8x128xf32>
    %189 = arith.addf %186, %188 : vector<8x128xf32>
    %c0_64 = arith.constant 0 : index
    %c0_65 = arith.constant 0 : index
    %190 = vector.load %arg8[%c0_64, %c0_65] : memref<8x128xf32, #tpu.memory_space<vmem>>, vector<8x128xf32>
    tpu.vector_store %arg8[%c0_64, %c0_65], %189 {strides = array<i32>} : memref<8x128xf32, #tpu.memory_space<vmem>>, vector<8x128xf32>,
    %191 = arith.index_cast %c4_i32 : i32 to index
    %c0_66 = arith.constant 0 : index
    %c0_67 = arith.constant 0 : index
    %192 = vector.load %arg7[%191, %c0_66, %c0_67] : memref<8x8x128xf32, #tpu.memory_space<vmem>>, vector<1x8x128xf32>
    %193 = vector.shape_cast %192 : vector<1x8x128xf32> to vector<8x128xf32>
    %194 = vector.shape_cast %189 : vector<8x128xf32> to vector<1x8x128xf32>
    tpu.vector_store %arg7[%191, %c0_66, %c0_67], %194 {strides = array<i32>} : memref<8x8x128xf32, #tpu.memory_space<vmem>>, vector<1x8x128xf32>,
    %c5_i32 = arith.constant 5 : i32
    %c0_68 = arith.constant 0 : index
    %c0_69 = arith.constant 0 : index
    %195 = vector.load %arg8[%c0_68, %c0_69] : memref<8x128xf32, #tpu.memory_space<vmem>>, vector<8x128xf32>
    %c8_i32_70 = arith.constant 8 : i32
    %196 = arith.muli %c5_i32, %c8_i32_70 : i32
    %197 = tpu.assume_multiple %196, 8 : i32
    %198 = arith.index_cast %197 : i32 to index
    %c0_71 = arith.constant 0 : index
    %199 = vector.load %arg9[%198, %c0_71] : memref<64x384xf32, #tpu.memory_space<vmem>>, vector<8x384xf32>
    %cst_72 = arith.constant dense<0.000000e+00> : vector<8x384xf32>
    %200 = tpu.matmul %195, %11, %cst_72 {dimension_numbers = #tpu.dot_dimension_numbers<[1], [0], [0], [1], [0, 0, 1, 1], [], []>} : vector<8x128xf32>, vector<128x384xf32>, vector<8x384xf32> -> vector<8x384xf32>
    %201 = vector.extract_strided_slice %199 {offsets = [0, 0], sizes = [8, 128], strides = [1, 1]} : vector<8x384xf32> to vector<8x128xf32>
    %202 = vector.extract_strided_slice %200 {offsets = [0, 0], sizes = [8, 128], strides = [1, 1]} : vector<8x384xf32> to vector<8x128xf32>
    %203 = arith.addf %201, %202 : vector<8x128xf32>
    %204 = arith.negf %203 : vector<8x128xf32>
    %205 = math.exp %204 : vector<8x128xf32>
    %cst_73 = arith.constant 1.000000e+00 : f32
    %206 = vector.broadcast %cst_73 : f32 to vector<8x128xf32>
    %207 = arith.addf %206, %205 : vector<8x128xf32>
    %208 = arith.divf %206, %207 : vector<8x128xf32>
    %209 = vector.extract_strided_slice %199 {offsets = [0, 128], sizes = [8, 128], strides = [1, 1]} : vector<8x384xf32> to vector<8x128xf32>
    %210 = vector.extract_strided_slice %200 {offsets = [0, 128], sizes = [8, 128], strides = [1, 1]} : vector<8x384xf32> to vector<8x128xf32>
    %211 = arith.addf %209, %210 : vector<8x128xf32>
    %212 = arith.negf %211 : vector<8x128xf32>
    %213 = math.exp %212 : vector<8x128xf32>
    %cst_74 = arith.constant 1.000000e+00 : f32
    %214 = vector.broadcast %cst_74 : f32 to vector<8x128xf32>
    %215 = arith.addf %214, %213 : vector<8x128xf32>
    %216 = arith.divf %214, %215 : vector<8x128xf32>
    %217 = vector.extract_strided_slice %199 {offsets = [0, 256], sizes = [8, 128], strides = [1, 1]} : vector<8x384xf32> to vector<8x128xf32>
    %218 = vector.extract_strided_slice %200 {offsets = [0, 256], sizes = [8, 128], strides = [1, 1]} : vector<8x384xf32> to vector<8x128xf32>
    %219 = arith.addf %218, %14 : vector<8x128xf32>
    %220 = arith.mulf %208, %219 : vector<8x128xf32>
    %221 = arith.addf %217, %220 : vector<8x128xf32>
    %222 = math.tanh %221 : vector<8x128xf32>
    %223 = arith.subf %195, %222 : vector<8x128xf32>
    %224 = arith.mulf %216, %223 : vector<8x128xf32>
    %225 = arith.addf %222, %224 : vector<8x128xf32>
    %c0_75 = arith.constant 0 : index
    %c0_76 = arith.constant 0 : index
    %226 = vector.load %arg8[%c0_75, %c0_76] : memref<8x128xf32, #tpu.memory_space<vmem>>, vector<8x128xf32>
    tpu.vector_store %arg8[%c0_75, %c0_76], %225 {strides = array<i32>} : memref<8x128xf32, #tpu.memory_space<vmem>>, vector<8x128xf32>,
    %227 = arith.index_cast %c5_i32 : i32 to index
    %c0_77 = arith.constant 0 : index
    %c0_78 = arith.constant 0 : index
    %228 = vector.load %arg7[%227, %c0_77, %c0_78] : memref<8x8x128xf32, #tpu.memory_space<vmem>>, vector<1x8x128xf32>
    %229 = vector.shape_cast %228 : vector<1x8x128xf32> to vector<8x128xf32>
    %230 = vector.shape_cast %225 : vector<8x128xf32> to vector<1x8x128xf32>
    tpu.vector_store %arg7[%227, %c0_77, %c0_78], %230 {strides = array<i32>} : memref<8x8x128xf32, #tpu.memory_space<vmem>>, vector<1x8x128xf32>,
    %c6_i32 = arith.constant 6 : i32
    %c0_79 = arith.constant 0 : index
    %c0_80 = arith.constant 0 : index
    %231 = vector.load %arg8[%c0_79, %c0_80] : memref<8x128xf32, #tpu.memory_space<vmem>>, vector<8x128xf32>
    %c8_i32_81 = arith.constant 8 : i32
    %232 = arith.muli %c6_i32, %c8_i32_81 : i32
    %233 = tpu.assume_multiple %232, 8 : i32
    %234 = arith.index_cast %233 : i32 to index
    %c0_82 = arith.constant 0 : index
    %235 = vector.load %arg9[%234, %c0_82] : memref<64x384xf32, #tpu.memory_space<vmem>>, vector<8x384xf32>
    %cst_83 = arith.constant dense<0.000000e+00> : vector<8x384xf32>
    %236 = tpu.matmul %231, %11, %cst_83 {dimension_numbers = #tpu.dot_dimension_numbers<[1], [0], [0], [1], [0, 0, 1, 1], [], []>} : vector<8x128xf32>, vector<128x384xf32>, vector<8x384xf32> -> vector<8x384xf32>
    %237 = vector.extract_strided_slice %235 {offsets = [0, 0], sizes = [8, 128], strides = [1, 1]} : vector<8x384xf32> to vector<8x128xf32>
    %238 = vector.extract_strided_slice %236 {offsets = [0, 0], sizes = [8, 128], strides = [1, 1]} : vector<8x384xf32> to vector<8x128xf32>
    %239 = arith.addf %237, %238 : vector<8x128xf32>
    %240 = arith.negf %239 : vector<8x128xf32>
    %241 = math.exp %240 : vector<8x128xf32>
    %cst_84 = arith.constant 1.000000e+00 : f32
    %242 = vector.broadcast %cst_84 : f32 to vector<8x128xf32>
    %243 = arith.addf %242, %241 : vector<8x128xf32>
    %244 = arith.divf %242, %243 : vector<8x128xf32>
    %245 = vector.extract_strided_slice %235 {offsets = [0, 128], sizes = [8, 128], strides = [1, 1]} : vector<8x384xf32> to vector<8x128xf32>
    %246 = vector.extract_strided_slice %236 {offsets = [0, 128], sizes = [8, 128], strides = [1, 1]} : vector<8x384xf32> to vector<8x128xf32>
    %247 = arith.addf %245, %246 : vector<8x128xf32>
    %248 = arith.negf %247 : vector<8x128xf32>
    %249 = math.exp %248 : vector<8x128xf32>
    %cst_85 = arith.constant 1.000000e+00 : f32
    %250 = vector.broadcast %cst_85 : f32 to vector<8x128xf32>
    %251 = arith.addf %250, %249 : vector<8x128xf32>
    %252 = arith.divf %250, %251 : vector<8x128xf32>
    %253 = vector.extract_strided_slice %235 {offsets = [0, 256], sizes = [8, 128], strides = [1, 1]} : vector<8x384xf32> to vector<8x128xf32>
    %254 = vector.extract_strided_slice %236 {offsets = [0, 256], sizes = [8, 128], strides = [1, 1]} : vector<8x384xf32> to vector<8x128xf32>
    %255 = arith.addf %254, %14 : vector<8x128xf32>
    %256 = arith.mulf %244, %255 : vector<8x128xf32>
    %257 = arith.addf %253, %256 : vector<8x128xf32>
    %258 = math.tanh %257 : vector<8x128xf32>
    %259 = arith.subf %231, %258 : vector<8x128xf32>
    %260 = arith.mulf %252, %259 : vector<8x128xf32>
    %261 = arith.addf %258, %260 : vector<8x128xf32>
    %c0_86 = arith.constant 0 : index
    %c0_87 = arith.constant 0 : index
    %262 = vector.load %arg8[%c0_86, %c0_87] : memref<8x128xf32, #tpu.memory_space<vmem>>, vector<8x128xf32>
    tpu.vector_store %arg8[%c0_86, %c0_87], %261 {strides = array<i32>} : memref<8x128xf32, #tpu.memory_space<vmem>>, vector<8x128xf32>,
    %263 = arith.index_cast %c6_i32 : i32 to index
    %c0_88 = arith.constant 0 : index
    %c0_89 = arith.constant 0 : index
    %264 = vector.load %arg7[%263, %c0_88, %c0_89] : memref<8x8x128xf32, #tpu.memory_space<vmem>>, vector<1x8x128xf32>
    %265 = vector.shape_cast %264 : vector<1x8x128xf32> to vector<8x128xf32>
    %266 = vector.shape_cast %261 : vector<8x128xf32> to vector<1x8x128xf32>
    tpu.vector_store %arg7[%263, %c0_88, %c0_89], %266 {strides = array<i32>} : memref<8x8x128xf32, #tpu.memory_space<vmem>>, vector<1x8x128xf32>,
    %c7_i32 = arith.constant 7 : i32
    %c0_90 = arith.constant 0 : index
    %c0_91 = arith.constant 0 : index
    %267 = vector.load %arg8[%c0_90, %c0_91] : memref<8x128xf32, #tpu.memory_space<vmem>>, vector<8x128xf32>
    %c8_i32_92 = arith.constant 8 : i32
    %268 = arith.muli %c7_i32, %c8_i32_92 : i32
    %269 = tpu.assume_multiple %268, 8 : i32
    %270 = arith.index_cast %269 : i32 to index
    %c0_93 = arith.constant 0 : index
    %271 = vector.load %arg9[%270, %c0_93] : memref<64x384xf32, #tpu.memory_space<vmem>>, vector<8x384xf32>
    %cst_94 = arith.constant dense<0.000000e+00> : vector<8x384xf32>
    %272 = tpu.matmul %267, %11, %cst_94 {dimension_numbers = #tpu.dot_dimension_numbers<[1], [0], [0], [1], [0, 0, 1, 1], [], []>} : vector<8x128xf32>, vector<128x384xf32>, vector<8x384xf32> -> vector<8x384xf32>
    %273 = vector.extract_strided_slice %271 {offsets = [0, 0], sizes = [8, 128], strides = [1, 1]} : vector<8x384xf32> to vector<8x128xf32>
    %274 = vector.extract_strided_slice %272 {offsets = [0, 0], sizes = [8, 128], strides = [1, 1]} : vector<8x384xf32> to vector<8x128xf32>
    %275 = arith.addf %273, %274 : vector<8x128xf32>
    %276 = arith.negf %275 : vector<8x128xf32>
    %277 = math.exp %276 : vector<8x128xf32>
    %cst_95 = arith.constant 1.000000e+00 : f32
    %278 = vector.broadcast %cst_95 : f32 to vector<8x128xf32>
    %279 = arith.addf %278, %277 : vector<8x128xf32>
    %280 = arith.divf %278, %279 : vector<8x128xf32>
    %281 = vector.extract_strided_slice %271 {offsets = [0, 128], sizes = [8, 128], strides = [1, 1]} : vector<8x384xf32> to vector<8x128xf32>
    %282 = vector.extract_strided_slice %272 {offsets = [0, 128], sizes = [8, 128], strides = [1, 1]} : vector<8x384xf32> to vector<8x128xf32>
    %283 = arith.addf %281, %282 : vector<8x128xf32>
    %284 = arith.negf %283 : vector<8x128xf32>
    %285 = math.exp %284 : vector<8x128xf32>
    %cst_96 = arith.constant 1.000000e+00 : f32
    %286 = vector.broadcast %cst_96 : f32 to vector<8x128xf32>
    %287 = arith.addf %286, %285 : vector<8x128xf32>
    %288 = arith.divf %286, %287 : vector<8x128xf32>
    %289 = vector.extract_strided_slice %271 {offsets = [0, 256], sizes = [8, 128], strides = [1, 1]} : vector<8x384xf32> to vector<8x128xf32>
    %290 = vector.extract_strided_slice %272 {offsets = [0, 256], sizes = [8, 128], strides = [1, 1]} : vector<8x384xf32> to vector<8x128xf32>
    %291 = arith.addf %290, %14 : vector<8x128xf32>
    %292 = arith.mulf %280, %291 : vector<8x128xf32>
    %293 = arith.addf %289, %292 : vector<8x128xf32>
    %294 = math.tanh %293 : vector<8x128xf32>
    %295 = arith.subf %267, %294 : vector<8x128xf32>
    %296 = arith.mulf %288, %295 : vector<8x128xf32>
    %297 = arith.addf %294, %296 : vector<8x128xf32>
    %c0_97 = arith.constant 0 : index
    %c0_98 = arith.constant 0 : index
    %298 = vector.load %arg8[%c0_97, %c0_98] : memref<8x128xf32, #tpu.memory_space<vmem>>, vector<8x128xf32>
    tpu.vector_store %arg8[%c0_97, %c0_98], %297 {strides = array<i32>} : memref<8x128xf32, #tpu.memory_space<vmem>>, vector<8x128xf32>,
    %299 = arith.index_cast %c7_i32 : i32 to index
    %c0_99 = arith.constant 0 : index
    %c0_100 = arith.constant 0 : index
    %300 = vector.load %arg7[%299, %c0_99, %c0_100] : memref<8x8x128xf32, #tpu.memory_space<vmem>>, vector<1x8x128xf32>
    %301 = vector.shape_cast %300 : vector<1x8x128xf32> to vector<8x128xf32>
    %302 = vector.shape_cast %297 : vector<8x128xf32> to vector<1x8x128xf32>
    tpu.vector_store %arg7[%299, %c0_99, %c0_100], %302 {strides = array<i32>} : memref<8x8x128xf32, #tpu.memory_space<vmem>>, vector<1x8x128xf32>,
    %c8_i32_101 = arith.constant 8 : i32
    return
  }
  func.func @transform_0(%arg0: i32) -> (i32, i32, i32) {
    %c0_i32 = arith.constant 0 : i32
    %c0_i32_0 = arith.constant 0 : i32
    %c0_i32_1 = arith.constant 0 : i32
    return %arg0, %c0_i32, %c0_i32_0 : i32, i32, i32
  }
  func.func @transform_1(%arg0: i32) -> (i32, i32) {
    %c0_i32 = arith.constant 0 : i32
    %c0_i32_0 = arith.constant 0 : i32
    %c0_i32_1 = arith.constant 0 : i32
    return %c0_i32, %c0_i32_0 : i32, i32
  }
  func.func @transform_2(%arg0: i32) -> (i32, i32) {
    %c0_i32 = arith.constant 0 : i32
    %c0_i32_0 = arith.constant 0 : i32
    %c0_i32_1 = arith.constant 0 : i32
    return %c0_i32, %c0_i32_0 : i32, i32
  }
  func.func @transform_3(%arg0: i32) -> (i32, i32) {
    %c0_i32 = arith.constant 0 : i32
    %c0_i32_0 = arith.constant 0 : i32
    %c0_i32_1 = arith.constant 0 : i32
    return %c0_i32, %c0_i32_0 : i32, i32
  }
  func.func @transform_4(%arg0: i32) -> (i32, i32) {
    %c0_i32 = arith.constant 0 : i32
    %c0_i32_0 = arith.constant 0 : i32
    %c0_i32_1 = arith.constant 0 : i32
    return %c0_i32, %c0_i32_0 : i32, i32
  }
  func.func @transform_5(%arg0: i32) -> (i32, i32) {
    %c0_i32 = arith.constant 0 : i32
    %c0_i32_0 = arith.constant 0 : i32
    %c0_i32_1 = arith.constant 0 : i32
    return %c0_i32, %c0_i32_0 : i32, i32
  }
  func.func @transform_6(%arg0: i32) -> (i32, i32, i32) {
    %c0_i32 = arith.constant 0 : i32
    %c0_i32_0 = arith.constant 0 : i32
    %c0_i32_1 = arith.constant 0 : i32
    return %arg0, %c0_i32, %c0_i32_0 : i32, i32, i32
  }
}

</mosaic_0001>

<llo_original>
// kernel: gru_model_forward.2
$region0: #{gru_model_forward.2}
  #allocation0 [shape = 'u32[]', space=smem, size = 0x4, offset = 0x4, fixed_abs, tag = 'smem constant byte address 0x4 - core index']
  #allocation1 [shape = 'u32[144,128]{1,0:T(1,128)}', space=vmem, size = 0x12000, scoped, tag = 'internal scratch']
  #allocation2 [shape = 'f32[8,128]{1,0:T(8,128)}', space=vmem, size = 0x1000, scoped, tag = 'scratch operand']
  #allocation3 [shape = 'f32[64,384]{1,0:T(8,128)}', space=vmem, size = 0x18000, scoped, tag = 'scratch operand']
  %s0 = inlined_call_operand.vmem [shape: f32[8,8,128], index: 0, kind: input, shape index: {}]
  %s1 = inlined_call_operand.vmem [shape: f32[8,128], index: 1, kind: input, shape index: {}]
  %s2 = inlined_call_operand.vmem [shape: f32[128,384], index: 2, kind: input, shape index: {}]
  %s3 = inlined_call_operand.vmem [shape: f32[128,384], index: 3, kind: input, shape index: {}]
  %s4 = inlined_call_operand.vmem [shape: f32[1,384], index: 4, kind: input, shape index: {}]
  %s5 = inlined_call_operand.vmem [shape: f32[1,128], index: 5, kind: input, shape index: {}]
  %s6 = inlined_call_operand.vmem [shape: f32[8,8,128], index: 6, kind: output, shape index: {}]
  %s7 = sld [smem:[#allocation0]]
  $region38: #{gru_model_forward.2} parent=0
    _
  %s9 = ssub.s32 1, %s7
  %s10 = scalar_select 0, %s9, %s7
  // Predicated region
  $region2: #{gru_model_forward.2} parent=0 // pred_check
    _
  $region3: #{gru_model_forward.2} parent=0 // pred_check_branch
    %12 = sbr.rel (0) target = $region5
  $region4: #{gru_model_forward.2} parent=0 // pred_region
    _
  $region5: #{gru_model_forward.2} parent=0 // pred_fallthru
    _
  // Predicated region
  $region6: #{gru_model_forward.2} parent=0 // pred_check
    _
  $region7: #{gru_model_forward.2} parent=0 // pred_check_branch
    %14 = sbr.rel (0) target = $region9
  $region8: #{gru_model_forward.2} parent=0 // pred_region
    _
  $region9: #{gru_model_forward.2} parent=0 // pred_fallthru
    _
  // Predicated region
  $region10: #{gru_model_forward.2} parent=0 // pred_check
    _
  $region11: #{gru_model_forward.2} parent=0 // pred_check_branch
    %16 = sbr.rel (0) target = $region13
  $region12: #{gru_model_forward.2} parent=0 // pred_region
    _
  $region13: #{gru_model_forward.2} parent=0 // pred_fallthru
    _
  // Predicated region
  $region14: #{gru_model_forward.2} parent=0 // pred_check
    _
  $region15: #{gru_model_forward.2} parent=0 // pred_check_branch
    %18 = sbr.rel (0) target = $region17
  $region16: #{gru_model_forward.2} parent=0 // pred_region
    _
  $region17: #{gru_model_forward.2} parent=0 // pred_fallthru
    _
  // Predicated region
  $region18: #{gru_model_forward.2} parent=0 // pred_check
    _
  $region19: #{gru_model_forward.2} parent=0 // pred_check_branch
    %20 = sbr.rel (0) target = $region21
  $region20: #{gru_model_forward.2} parent=0 // pred_region
    _
  $region21: #{gru_model_forward.2} parent=0 // pred_fallthru
    _
  // Predicated region
  $region22: #{gru_model_forward.2} parent=0 // pred_check
    _
  $region23: #{gru_model_forward.2} parent=0 // pred_check_branch
    %22 = sbr.rel (0) target = $region25
  $region24: #{gru_model_forward.2} parent=0 // pred_region
    _
  $region25: #{gru_model_forward.2} parent=0 // pred_fallthru
    _
  %p23 = scmp.eq.s32.totalorder 0, 0
  // Predicated region
  $region26: #{gru_model_forward.2} parent=0 // pred_check
    %p24 = pneg %p23
  $region27: #{gru_model_forward.2} parent=0 // pred_check_branch
    %26 = sbr.rel (%p24) target = $region29
  $region28: #{gru_model_forward.2} parent=0 // pred_region
    %v27 = vld [vmem:[%s1] sm:$0xff]
    %28 = vst [vmem:[#allocation2] sm:$0xff] %v27
  $region29: #{gru_model_forward.2} parent=0 // pred_fallthru
    _
  %v29 = vld [vmem:[%s0] sm:$0xff]
  %v30 = vld [vmem:[%s0 + $0x8] sm:$0xff]
  %v31 = vld [vmem:[%s0 + $0x10] sm:$0xff]
  %v32 = vld [vmem:[%s0 + $0x18] sm:$0xff]
  %v33 = vld [vmem:[%s0 + $0x20] sm:$0xff]
  %v34 = vld [vmem:[%s0 + $0x28] sm:$0xff]
  %v35 = vld [vmem:[%s0 + $0x30] sm:$0xff]
  %v36 = vld [vmem:[%s0 + $0x38] sm:$0xff]
  %v37 = vld [vmem:[%s2] sm:$0xff]
  %v38 = vld [vmem:[%s2 + $0x8] sm:$0xff]
  %v39 = vld [vmem:[%s2 + $0x10] sm:$0xff]
  %v40 = vld [vmem:[%s2 + $0x18] sm:$0xff]
  %v41 = vld [vmem:[%s2 + $0x20] sm:$0xff]
  %v42 = vld [vmem:[%s2 + $0x28] sm:$0xff]
  %v43 = vld [vmem:[%s2 + $0x30] sm:$0xff]
  %v44 = vld [vmem:[%s2 + $0x38] sm:$0xff]
  %v45 = vld [vmem:[%s2 + $0x40] sm:$0xff]
  %v46 = vld [vmem:[%s2 + $0x48] sm:$0xff]
  %v47 = vld [vmem:[%s2 + $0x50] sm:$0xff]
  %v48 = vld [vmem:[%s2 + $0x58] sm:$0xff]
  %v49 = vld [vmem:[%s2 + $0x60] sm:$0xff]
  %v50 = vld [vmem:[%s2 + $0x68] sm:$0xff]
  %v51 = vld [vmem:[%s2 + $0x70] sm:$0xff]
  %v52 = vld [vmem:[%s2 + $0x78] sm:$0xff]
  %v53 = vld [vmem:[%s2 + $0x80] sm:$0xff]
  %v54 = vld [vmem:[%s2 + $0x88] sm:$0xff]
  %v55 = vld [vmem:[%s2 + $0x90] sm:$0xff]
  %v56 = vld [vmem:[%s2 + $0x98] sm:$0xff]
  %v57 = vld [vmem:[%s2 + $0xa0] sm:$0xff]
  %v58 = vld [vmem:[%s2 + $0xa8] sm:$0xff]
  %v59 = vld [vmem:[%s2 + $0xb0] sm:$0xff]
  %v60 = vld [vmem:[%s2 + $0xb8] sm:$0xff]
  %v61 = vld [vmem:[%s2 + $0xc0] sm:$0xff]
  %v62 = vld [vmem:[%s2 + $0xc8] sm:$0xff]
  %v63 = vld [vmem:[%s2 + $0xd0] sm:$0xff]
  %v64 = vld [vmem:[%s2 + $0xd8] sm:$0xff]
  %v65 = vld [vmem:[%s2 + $0xe0] sm:$0xff]
  %v66 = vld [vmem:[%s2 + $0xe8] sm:$0xff]
  %v67 = vld [vmem:[%s2 + $0xf0] sm:$0xff]
  %v68 = vld [vmem:[%s2 + $0xf8] sm:$0xff]
  %v69 = vld [vmem:[%s2 + $0x100] sm:$0xff]
  %v70 = vld [vmem:[%s2 + $0x108] sm:$0xff]
  %v71 = vld [vmem:[%s2 + $0x110] sm:$0xff]
  %v72 = vld [vmem:[%s2 + $0x118] sm:$0xff]
  %v73 = vld [vmem:[%s2 + $0x120] sm:$0xff]
  %v74 = vld [vmem:[%s2 + $0x128] sm:$0xff]
  %v75 = vld [vmem:[%s2 + $0x130] sm:$0xff]
  %v76 = vld [vmem:[%s2 + $0x138] sm:$0xff]
  %v77 = vld [vmem:[%s2 + $0x140] sm:$0xff]
  %v78 = vld [vmem:[%s2 + $0x148] sm:$0xff]
  %v79 = vld [vmem:[%s2 + $0x150] sm:$0xff]
  %v80 = vld [vmem:[%s2 + $0x158] sm:$0xff]
  %v81 = vld [vmem:[%s2 + $0x160] sm:$0xff]
  %v82 = vld [vmem:[%s2 + $0x168] sm:$0xff]
  %v83 = vld [vmem:[%s2 + $0x170] sm:$0xff]
  %v84 = vld [vmem:[%s2 + $0x178] sm:$0xff]
  %v85 = vld [vmem:[%s4] sm:$0x7]
  %v87 = vlaneseq
  %v88 = vshrl.u32 %v87, 7
  %v89 = vsub.s32 0, %v88
  %v90 = vrot.slane %v85, %v89
  %v91 = vlaneseq
  %v92 = vshrl.u32 %v91, 7
  %v93 = vsub.s32 1, %v92
  %v94 = vrot.slane %v85, %v93
  %v95 = vlaneseq
  %v96 = vshrl.u32 %v95, 7
  %v97 = vsub.s32 2, %v96
  %v98 = vrot.slane %v85, %v97
  %102 = vmatprep.subr.mxu0 %v38
  %103 = vmatpush1.msra.mxu0 %v37
  %104 = vmatprep.subr.mxu0 %v41
  %105 = vmatpush1.msra.mxu0 %v40
  %106 = vmatprep.subr.mxu0 %v44
  %107 = vmatpush1.msra.mxu0 %v43
  %108 = vmatprep.subr.mxu0 %v47
  %109 = vmatpush1.msra.mxu0 %v46
  %110 = vmatprep.subr.mxu0 %v50
  %111 = vmatpush1.msra.mxu0 %v49
  %112 = vmatprep.subr.mxu0 %v53
  %113 = vmatpush1.msra.mxu0 %v52
  %114 = vmatprep.subr.mxu0 %v56
  %115 = vmatpush1.msra.mxu0 %v55
  %116 = vmatprep.subr.mxu0 %v59
  %117 = vmatpush1.msra.mxu0 %v58
  %118 = vmatprep.subr.mxu0 %v62
  %119 = vmatpush1.msra.mxu0 %v61
  %120 = vmatprep.subr.mxu0 %v65
  %121 = vmatpush1.msra.mxu0 %v64
  %122 = vmatprep.subr.mxu0 %v68
  %123 = vmatpush1.msra.mxu0 %v67
  %124 = vmatprep.subr.mxu0 %v71
  %125 = vmatpush1.msra.mxu0 %v70
  %126 = vmatprep.subr.mxu0 %v74
  %127 = vmatpush1.msra.mxu0 %v73
  %128 = vmatprep.subr.mxu0 %v77
  %129 = vmatpush1.msra.mxu0 %v76
  %130 = vmatprep.subr.mxu0 %v80
  %131 = vmatpush1.msra.mxu0 %v79
  %132 = vmatprep.subr.mxu0 %v83
  %133 = vmatpush1.msra.mxu0 %v82
  %134 = vmatprep.subr.mxu0 0.0
  %135 = vmatpush1.msra.mxu0 0.0
  %136 = vmatprep.subr.mxu0 0.0
  %137 = vmatpush1.msra.mxu0 0.0
  %138 = vmatprep.subr.mxu0 0.0
  %139 = vmatpush1.msra.mxu0 0.0
  %140 = vmatprep.subr.mxu0 0.0
  %141 = vmatpush1.msra.mxu0 0.0
  %142 = vmatprep.subr.mxu0 0.0
  %143 = vmatpush1.msra.mxu0 0.0
  %144 = vmatprep.subr.mxu0 0.0
  %145 = vmatpush1.msra.mxu0 0.0
  %146 = vmatprep.subr.mxu0 0.0
  %147 = vmatpush1.msra.mxu0 0.0
  %148 = vmatprep.subr.mxu0 0.0
  %149 = vmatpush1.msra.mxu0 0.0
  %150 = vmatprep.subr.mxu0 0.0
  %151 = vmatpush1.msra.mxu0 0.0
  %152 = vmatprep.subr.mxu0 0.0
  %153 = vmatpush1.msra.mxu0 0.0
  %154 = vmatprep.subr.mxu0 0.0
  %155 = vmatpush1.msra.mxu0 0.0
  %156 = vmatprep.subr.mxu0 0.0
  %157 = vmatpush1.msra.mxu0 0.0
  %158 = vmatprep.subr.mxu0 0.0
  %159 = vmatpush1.msra.mxu0 0.0
  %160 = vmatprep.subr.mxu0 0.0
  %161 = vmatpush1.msra.mxu0 0.0
  %162 = vmatprep.subr.mxu0 0.0
  %163 = vmatpush1.msra.mxu0 0.0
  %164 = vmatprep.subr.mxu0 0.0
  %165 = vmatpush1.msra.mxu0 0.0
  %166 = vmatprep.mubr.f32.mxu0 0.0
  %167 = vmatmul.mubr.f32.gmra.mrb[0].mxu0 %v29
  %v168 = vpop.f32.mrb[0].mxu0
  %v169 = vadd.f32 %v90, %v168
  %v170 = vpop.f32.mrb[0].mxu0
  %v171 = vadd.f32 %v94, %v170
  %172 = vmatprep.mubr.f32.mxu0 0.0
  %173 = vmatmul.mubr.f32.gmra.mrb[0].mxu0 %v30
  %v174 = vpop.f32.mrb[0].mxu0
  %v175 = vadd.f32 %v90, %v174
  %v176 = vpop.f32.mrb[0].mxu0
  %v177 = vadd.f32 %v94, %v176
  %178 = vmatprep.mubr.f32.mxu0 0.0
  %179 = vmatmul.mubr.f32.gmra.mrb[0].mxu0 %v31
  %v180 = vpop.f32.mrb[0].mxu0
  %v181 = vadd.f32 %v90, %v180
  %v182 = vpop.f32.mrb[0].mxu0
  %v183 = vadd.f32 %v94, %v182
  %184 = vmatprep.mubr.f32.mxu0 0.0
  %185 = vmatmul.mubr.f32.gmra.mrb[0].mxu0 %v32
  %v186 = vpop.f32.mrb[0].mxu0
  %v187 = vadd.f32 %v90, %v186
  %v188 = vpop.f32.mrb[0].mxu0
  %v189 = vadd.f32 %v94, %v188
  %190 = vmatprep.mubr.f32.mxu0 0.0
  %191 = vmatmul.mubr.f32.gmra.mrb[0].mxu0 %v33
  %v192 = vpop.f32.mrb[0].mxu0
  %v193 = vadd.f32 %v90, %v192
  %v194 = vpop.f32.mrb[0].mxu0
  %v195 = vadd.f32 %v94, %v194
  %196 = vmatprep.mubr.f32.mxu0 0.0
  %197 = vmatmul.mubr.f32.gmra.mrb[0].mxu0 %v34
  %v198 = vpop.f32.mrb[0].mxu0
  %v199 = vadd.f32 %v90, %v198
  %v200 = vpop.f32.mrb[0].mxu0
  %v201 = vadd.f32 %v94, %v200
  %202 = vmatprep.mubr.f32.mxu0 0.0
  %203 = vmatmul.mubr.f32.gmra.mrb[0].mxu0 %v35
  %v204 = vpop.f32.mrb[0].mxu0
  %v205 = vadd.f32 %v90, %v204
  %v206 = vpop.f32.mrb[0].mxu0
  %v207 = vadd.f32 %v94, %v206
  %208 = vmatprep.mubr.f32.mxu0 0.0
  %209 = vmatmul.mubr.f32.gmra.mrb[0].mxu0 %v36
  %v210 = vpop.f32.mrb[0].mxu0
  %v211 = vadd.f32 %v90, %v210
  %v212 = vpop.f32.mrb[0].mxu0
  %v213 = vadd.f32 %v94, %v212
  %214 = vdwg.mxu0
  %215 = vmatprep.subr.mxu0 0.0
  %216 = vmatpush1.msra.mxu0 %v39
  %217 = vmatprep.subr.mxu0 0.0
  %218 = vmatpush1.msra.mxu0 %v42
  %219 = vmatprep.subr.mxu0 0.0
  %220 = vmatpush1.msra.mxu0 %v45
  %221 = vmatprep.subr.mxu0 0.0
  %222 = vmatpush1.msra.mxu0 %v48
  %223 = vmatprep.subr.mxu0 0.0
  %224 = vmatpush1.msra.mxu0 %v51
  %225 = vmatprep.subr.mxu0 0.0
  %226 = vmatpush1.msra.mxu0 %v54
  %227 = vmatprep.subr.mxu0 0.0
  %228 = vmatpush1.msra.mxu0 %v57
  %229 = vmatprep.subr.mxu0 0.0
  %230 = vmatpush1.msra.mxu0 %v60
  %231 = vmatprep.subr.mxu0 0.0
  %232 = vmatpush1.msra.mxu0 %v63
  %233 = vmatprep.subr.mxu0 0.0
  %234 = vmatpush1.msra.mxu0 %v66
  %235 = vmatprep.subr.mxu0 0.0
  %236 = vmatpush1.msra.mxu0 %v69
  %237 = vmatprep.subr.mxu0 0.0
  %238 = vmatpush1.msra.mxu0 %v72
  %239 = vmatprep.subr.mxu0 0.0
  %240 = vmatpush1.msra.mxu0 %v75
  %241 = vmatprep.subr.mxu0 0.0
  %242 = vmatpush1.msra.mxu0 %v78
  %243 = vmatprep.subr.mxu0 0.0
  %244 = vmatpush1.msra.mxu0 %v81
  %245 = vmatprep.subr.mxu0 0.0
  %246 = vmatpush1.msra.mxu0 %v84
  %247 = vmatprep.subr.mxu0 0.0
  %248 = vmatpush1.msra.mxu0 0.0
  %249 = vmatprep.subr.mxu0 0.0
  %250 = vmatpush1.msra.mxu0 0.0
  %251 = vmatprep.subr.mxu0 0.0
  %252 = vmatpush1.msra.mxu0 0.0
  %253 = vmatprep.subr.mxu0 0.0
  %254 = vmatpush1.msra.mxu0 0.0
  %255 = vmatprep.subr.mxu0 0.0
  %256 = vmatpush1.msra.mxu0 0.0
  %257 = vmatprep.subr.mxu0 0.0
  %258 = vmatpush1.msra.mxu0 0.0
  %259 = vmatprep.subr.mxu0 0.0
  %260 = vmatpush1.msra.mxu0 0.0
  %261 = vmatprep.subr.mxu0 0.0
  %262 = vmatpush1.msra.mxu0 0.0
  %263 = vmatprep.subr.mxu0 0.0
  %264 = vmatpush1.msra.mxu0 0.0
  %265 = vmatprep.subr.mxu0 0.0
  %266 = vmatpush1.msra.mxu0 0.0
  %267 = vmatprep.subr.mxu0 0.0
  %268 = vmatpush1.msra.mxu0 0.0
  %269 = vmatprep.subr.mxu0 0.0
  %270 = vmatpush1.msra.mxu0 0.0
  %271 = vmatprep.subr.mxu0 0.0
  %272 = vmatpush1.msra.mxu0 0.0
  %273 = vmatprep.subr.mxu0 0.0
  %274 = vmatpush1.msra.mxu0 0.0
  %275 = vmatprep.subr.mxu0 0.0
  %276 = vmatpush1.msra.mxu0 0.0
  %277 = vmatprep.subr.mxu0 0.0
  %278 = vmatpush1.msra.mxu0 0.0
  %279 = vmatprep.mubr.f32.mxu0 0.0
  %280 = vmatmul.mubr.f32.gmra.mrb[0].mxu0 %v29
  %v281 = vpop.f32.mrb[0].mxu0
  %v282 = vadd.f32 %v98, %v281
  %v283 = vpop.f32.mrb[0].mxu0
  %284 = vmatprep.mubr.f32.mxu0 0.0
  %285 = vmatmul.mubr.f32.gmra.mrb[0].mxu0 %v30
  %v286 = vpop.f32.mrb[0].mxu0
  %v287 = vadd.f32 %v98, %v286
  %v288 = vpop.f32.mrb[0].mxu0
  %289 = vmatprep.mubr.f32.mxu0 0.0
  %290 = vmatmul.mubr.f32.gmra.mrb[0].mxu0 %v31
  %v291 = vpop.f32.mrb[0].mxu0
  %v292 = vadd.f32 %v98, %v291
  %v293 = vpop.f32.mrb[0].mxu0
  %294 = vmatprep.mubr.f32.mxu0 0.0
  %295 = vmatmul.mubr.f32.gmra.mrb[0].mxu0 %v32
  %v296 = vpop.f32.mrb[0].mxu0
  %v297 = vadd.f32 %v98, %v296
  %v298 = vpop.f32.mrb[0].mxu0
  %299 = vmatprep.mubr.f32.mxu0 0.0
  %300 = vmatmul.mubr.f32.gmra.mrb[0].mxu0 %v33
  %v301 = vpop.f32.mrb[0].mxu0
  %v302 = vadd.f32 %v98, %v301
  %v303 = vpop.f32.mrb[0].mxu0
  %304 = vmatprep.mubr.f32.mxu0 0.0
  %305 = vmatmul.mubr.f32.gmra.mrb[0].mxu0 %v34
  %v306 = vpop.f32.mrb[0].mxu0
  %v307 = vadd.f32 %v98, %v306
  %v308 = vpop.f32.mrb[0].mxu0
  %309 = vmatprep.mubr.f32.mxu0 0.0
  %310 = vmatmul.mubr.f32.gmra.mrb[0].mxu0 %v35
  %v311 = vpop.f32.mrb[0].mxu0
  %v312 = vadd.f32 %v98, %v311
  %v313 = vpop.f32.mrb[0].mxu0
  %314 = vmatprep.mubr.f32.mxu0 0.0
  %315 = vmatmul.mubr.f32.gmra.mrb[0].mxu0 %v36
  %v316 = vpop.f32.mrb[0].mxu0
  %v317 = vadd.f32 %v98, %v316
  %v318 = vpop.f32.mrb[0].mxu0
  %319 = vdwg.mxu0
  %320 = vst [vmem:[#allocation3] sm:$0xff] %v169
  %321 = vst [vmem:[#allocation3 + $0x8] sm:$0xff] %v171
  %322 = vst [vmem:[#allocation3 + $0x10] sm:$0xff] %v282
  %323 = vst [vmem:[#allocation3 + $0x18] sm:$0xff] %v175
  %324 = vst [vmem:[#allocation3 + $0x20] sm:$0xff] %v177
  %325 = vst [vmem:[#allocation3 + $0x28] sm:$0xff] %v287
  %326 = vst [vmem:[#allocation3 + $0x30] sm:$0xff] %v181
  %327 = vst [vmem:[#allocation3 + $0x38] sm:$0xff] %v183
  %328 = vst [vmem:[#allocation3 + $0x40] sm:$0xff] %v292
  %329 = vst [vmem:[#allocation3 + $0x48] sm:$0xff] %v187
  %330 = vst [vmem:[#allocation3 + $0x50] sm:$0xff] %v189
  %331 = vst [vmem:[#allocation3 + $0x58] sm:$0xff] %v297
  %332 = vst [vmem:[#allocation3 + $0x60] sm:$0xff] %v193
  %333 = vst [vmem:[#allocation3 + $0x68] sm:$0xff] %v195
  %334 = vst [vmem:[#allocation3 + $0x70] sm:$0xff] %v302
  %335 = vst [vmem:[#allocation3 + $0x78] sm:$0xff] %v199
  %336 = vst [vmem:[#allocation3 + $0x80] sm:$0xff] %v201
  %337 = vst [vmem:[#allocation3 + $0x88] sm:$0xff] %v307
  %338 = vst [vmem:[#allocation3 + $0x90] sm:$0xff] %v205
  %339 = vst [vmem:[#allocation3 + $0x98] sm:$0xff] %v207
  %340 = vst [vmem:[#allocation3 + $0xa0] sm:$0xff] %v312
  %341 = vst [vmem:[#allocation3 + $0xa8] sm:$0xff] %v211
  %342 = vst [vmem:[#allocation3 + $0xb0] sm:$0xff] %v213
  %343 = vst [vmem:[#allocation3 + $0xb8] sm:$0xff] %v317
  %v344 = vld [vmem:[%s3] sm:$0xff]
  %v345 = vld [vmem:[%s3 + $0x8] sm:$0xff]
  %v346 = vld [vmem:[%s3 + $0x10] sm:$0xff]
  %v347 = vld [vmem:[%s3 + $0x18] sm:$0xff]
  %v348 = vld [vmem:[%s3 + $0x20] sm:$0xff]
  %v349 = vld [vmem:[%s3 + $0x28] sm:$0xff]
  %v350 = vld [vmem:[%s3 + $0x30] sm:$0xff]
  %v351 = vld [vmem:[%s3 + $0x38] sm:$0xff]
  %v352 = vld [vmem:[%s3 + $0x40] sm:$0xff]
  %v353 = vld [vmem:[%s3 + $0x48] sm:$0xff]
  %v354 = vld [vmem:[%s3 + $0x50] sm:$0xff]
  %v355 = vld [vmem:[%s3 + $0x58] sm:$0xff]
  %v356 = vld [vmem:[%s3 + $0x60] sm:$0xff]
  %v357 = vld [vmem:[%s3 + $0x68] sm:$0xff]
  %v358 = vld [vmem:[%s3 + $0x70] sm:$0xff]
  %v359 = vld [vmem:[%s3 + $0x78] sm:$0xff]
  %v360 = vld [vmem:[%s3 + $0x80] sm:$0xff]
  %v361 = vld [vmem:[%s3 + $0x88] sm:$0xff]
  %v362 = vld [vmem:[%s3 + $0x90] sm:$0xff]
  %v363 = vld [vmem:[%s3 + $0x98] sm:$0xff]
  %v364 = vld [vmem:[%s3 + $0xa0] sm:$0xff]
  %v365 = vld [vmem:[%s3 + $0xa8] sm:$0xff]
  %v366 = vld [vmem:[%s3 + $0xb0] sm:$0xff]
  %v367 = vld [vmem:[%s3 + $0xb8] sm:$0xff]
  %v368 = vld [vmem:[%s3 + $0xc0] sm:$0xff]
  %v369 = vld [vmem:[%s3 + $0xc8] sm:$0xff]
  %v370 = vld [vmem:[%s3 + $0xd0] sm:$0xff]
  %v371 = vld [vmem:[%s3 + $0xd8] sm:$0xff]
  %v372 = vld [vmem:[%s3 + $0xe0] sm:$0xff]
  %v373 = vld [vmem:[%s3 + $0xe8] sm:$0xff]
  %v374 = vld [vmem:[%s3 + $0xf0] sm:$0xff]
  %v375 = vld [vmem:[%s3 + $0xf8] sm:$0xff]
  %v376 = vld [vmem:[%s3 + $0x100] sm:$0xff]
  %v377 = vld [vmem:[%s3 + $0x108] sm:$0xff]
  %v378 = vld [vmem:[%s3 + $0x110] sm:$0xff]
  %v379 = vld [vmem:[%s3 + $0x118] sm:$0xff]
  %v380 = vld [vmem:[%s3 + $0x120] sm:$0xff]
  %v381 = vld [vmem:[%s3 + $0x128] sm:$0xff]
  %v382 = vld [vmem:[%s3 + $0x130] sm:$0xff]
  %v383 = vld [vmem:[%s3 + $0x138] sm:$0xff]
  %v384 = vld [vmem:[%s3 + $0x140] sm:$0xff]
  %v385 = vld [vmem:[%s3 + $0x148] sm:$0xff]
  %v386 = vld [vmem:[%s3 + $0x150] sm:$0xff]
  %v387 = vld [vmem:[%s3 + $0x158] sm:$0xff]
  %v388 = vld [vmem:[%s3 + $0x160] sm:$0xff]
  %v389 = vld [vmem:[%s3 + $0x168] sm:$0xff]
  %v390 = vld [vmem:[%s3 + $0x170] sm:$0xff]
  %v391 = vld [vmem:[%s3 + $0x178] sm:$0xff]
  %v392 = vld [vmem:[%s5] sm:$0x1]
  %v394 = vlaneseq
  %v395 = vshrl.u32 %v394, 7
  %v396 = vsub.s32 0, %v395
  %v397 = vrot.slane %v392, %v396
  %v399 = vld [vmem:[#allocation2] sm:$0xff]
  %s400 = smul.u32 0, 3
  %s401 = smul.addr %s400, 8
  %s402 = scalar_lea.vmem [#allocation3], %s401
  %v403 = vld [vmem:[%s402] sm:$0xff]
  %v404 = vld [vmem:[%s402 + $0x8] sm:$0xff]
  %v405 = vld [vmem:[%s402 + $0x10] sm:$0xff]
  %406 = vmatprep.subr.mxu0 %v345
  %407 = vmatpush1.msra.mxu0 %v344
  %408 = vmatprep.subr.mxu0 %v348
  %409 = vmatpush1.msra.mxu0 %v347
  %410 = vmatprep.subr.mxu0 %v351
  %411 = vmatpush1.msra.mxu0 %v350
  %412 = vmatprep.subr.mxu0 %v354
  %413 = vmatpush1.msra.mxu0 %v353
  %414 = vmatprep.subr.mxu0 %v357
  %415 = vmatpush1.msra.mxu0 %v356
  %416 = vmatprep.subr.mxu0 %v360
  %417 = vmatpush1.msra.mxu0 %v359
  %418 = vmatprep.subr.mxu0 %v363
  %419 = vmatpush1.msra.mxu0 %v362
  %420 = vmatprep.subr.mxu0 %v366
  %421 = vmatpush1.msra.mxu0 %v365
  %422 = vmatprep.subr.mxu0 %v369
  %423 = vmatpush1.msra.mxu0 %v368
  %424 = vmatprep.subr.mxu0 %v372
  %425 = vmatpush1.msra.mxu0 %v371
  %426 = vmatprep.subr.mxu0 %v375
  %427 = vmatpush1.msra.mxu0 %v374
  %428 = vmatprep.subr.mxu0 %v378
  %429 = vmatpush1.msra.mxu0 %v377
  %430 = vmatprep.subr.mxu0 %v381
  %431 = vmatpush1.msra.mxu0 %v380
  %432 = vmatprep.subr.mxu0 %v384
  %433 = vmatpush1.msra.mxu0 %v383
  %434 = vmatprep.subr.mxu0 %v387
  %435 = vmatpush1.msra.mxu0 %v386
  %436 = vmatprep.subr.mxu0 %v390
  %437 = vmatpush1.msra.mxu0 %v389
  %438 = vmatprep.subr.mxu0 0.0
  %439 = vmatpush1.msra.mxu0 0.0
  %440 = vmatprep.subr.mxu0 0.0
  %441 = vmatpush1.msra.mxu0 0.0
  %442 = vmatprep.subr.mxu0 0.0
  %443 = vmatpush1.msra.mxu0 0.0
  %444 = vmatprep.subr.mxu0 0.0
  %445 = vmatpush1.msra.mxu0 0.0
  %446 = vmatprep.subr.mxu0 0.0
  %447 = vmatpush1.msra.mxu0 0.0
  %448 = vmatprep.subr.mxu0 0.0
  %449 = vmatpush1.msra.mxu0 0.0
  %450 = vmatprep.subr.mxu0 0.0
  %451 = vmatpush1.msra.mxu0 0.0
  %452 = vmatprep.subr.mxu0 0.0
  %453 = vmatpush1.msra.mxu0 0.0
  %454 = vmatprep.subr.mxu0 0.0
  %455 = vmatpush1.msra.mxu0 0.0
  %456 = vmatprep.subr.mxu0 0.0
  %457 = vmatpush1.msra.mxu0 0.0
  %458 = vmatprep.subr.mxu0 0.0
  %459 = vmatpush1.msra.mxu0 0.0
  %460 = vmatprep.subr.mxu0 0.0
  %461 = vmatpush1.msra.mxu0 0.0
  %462 = vmatprep.subr.mxu0 0.0
  %463 = vmatpush1.msra.mxu0 0.0
  %464 = vmatprep.subr.mxu0 0.0
  %465 = vmatpush1.msra.mxu0 0.0
  %466 = vmatprep.subr.mxu0 0.0
  %467 = vmatpush1.msra.mxu0 0.0
  %468 = vmatprep.subr.mxu0 0.0
  %469 = vmatpush1.msra.mxu0 0.0
  %470 = vmatprep.mubr.f32.mxu0 0.0
  %471 = vmatmul.mubr.f32.gmra.mrb[0].mxu0 %v399
  %v472 = vpop.f32.mrb[0].mxu0
  %v473 = vadd.f32 0.0, %v472
  %v474 = vpop.f32.mrb[0].mxu0
  %v475 = vadd.f32 0.0, %v474
  %476 = vdwg.mxu0
  %477 = vmatprep.subr.mxu0 0.0
  %478 = vmatpush1.msra.mxu0 %v346
  %479 = vmatprep.subr.mxu0 0.0
  %480 = vmatpush1.msra.mxu0 %v349
  %481 = vmatprep.subr.mxu0 0.0
  %482 = vmatpush1.msra.mxu0 %v352
  %483 = vmatprep.subr.mxu0 0.0
  %484 = vmatpush1.msra.mxu0 %v355
  %485 = vmatprep.subr.mxu0 0.0
  %486 = vmatpush1.msra.mxu0 %v358
  %487 = vmatprep.subr.mxu0 0.0
  %488 = vmatpush1.msra.mxu0 %v361
  %489 = vmatprep.subr.mxu0 0.0
  %490 = vmatpush1.msra.mxu0 %v364
  %491 = vmatprep.subr.mxu0 0.0
  %492 = vmatpush1.msra.mxu0 %v367
  %493 = vmatprep.subr.mxu0 0.0
  %494 = vmatpush1.msra.mxu0 %v370
  %495 = vmatprep.subr.mxu0 0.0
  %496 = vmatpush1.msra.mxu0 %v373
  %497 = vmatprep.subr.mxu0 0.0
  %498 = vmatpush1.msra.mxu0 %v376
  %499 = vmatprep.subr.mxu0 0.0
  %500 = vmatpush1.msra.mxu0 %v379
  %501 = vmatprep.subr.mxu0 0.0
  %502 = vmatpush1.msra.mxu0 %v382
  %503 = vmatprep.subr.mxu0 0.0
  %504 = vmatpush1.msra.mxu0 %v385
  %505 = vmatprep.subr.mxu0 0.0
  %506 = vmatpush1.msra.mxu0 %v388
  %507 = vmatprep.subr.mxu0 0.0
  %508 = vmatpush1.msra.mxu0 %v391
  %509 = vmatprep.subr.mxu0 0.0
  %510 = vmatpush1.msra.mxu0 0.0
  %511 = vmatprep.subr.mxu0 0.0
  %512 = vmatpush1.msra.mxu0 0.0
  %513 = vmatprep.subr.mxu0 0.0
  %514 = vmatpush1.msra.mxu0 0.0
  %515 = vmatprep.subr.mxu0 0.0
  %516 = vmatpush1.msra.mxu0 0.0
  %517 = vmatprep.subr.mxu0 0.0
  %518 = vmatpush1.msra.mxu0 0.0
  %519 = vmatprep.subr.mxu0 0.0
  %520 = vmatpush1.msra.mxu0 0.0
  %521 = vmatprep.subr.mxu0 0.0
  %522 = vmatpush1.msra.mxu0 0.0
  %523 = vmatprep.subr.mxu0 0.0
  %524 = vmatpush1.msra.mxu0 0.0
  %525 = vmatprep.subr.mxu0 0.0
  %526 = vmatpush1.msra.mxu0 0.0
  %527 = vmatprep.subr.mxu0 0.0
  %528 = vmatpush1.msra.mxu0 0.0
  %529 = vmatprep.subr.mxu0 0.0
  %530 = vmatpush1.msra.mxu0 0.0
  %531 = vmatprep.subr.mxu0 0.0
  %532 = vmatpush1.msra.mxu0 0.0
  %533 = vmatprep.subr.mxu0 0.0
  %534 = vmatpush1.msra.mxu0 0.0
  %535 = vmatprep.subr.mxu0 0.0
  %536 = vmatpush1.msra.mxu0 0.0
  %537 = vmatprep.subr.mxu0 0.0
  %538 = vmatpush1.msra.mxu0 0.0
  %539 = vmatprep.subr.mxu0 0.0
  %540 = vmatpush1.msra.mxu0 0.0
  %541 = vmatprep.mubr.f32.mxu0 0.0
  %542 = vmatmul.mubr.f32.gmra.mrb[0].mxu0 %v399
  %v543 = vpop.f32.mrb[0].mxu0
  %v544 = vadd.f32 0.0, %v543
  %v545 = vpop.f32.mrb[0].mxu0
  %546 = vdwg.mxu0
  %v547 = vadd.f32 %v403, %v473
  %v548 = vxor.u32 %v547, 2147483648
  %v549 = vmul.f32 %v548, 1.442695
  %v550 = vpow.pop %v549
  %v551 = vadd.f32 %v550, 1.0
  %v552 = vrcp.pop %v551
  %v553 = vmul.f32 1.0, %v552
  %v554 = vadd.f32 %v404, %v475
  %v555 = vxor.u32 %v554, 2147483648
  %v556 = vmul.f32 %v555, 1.442695
  %v557 = vpow.pop %v556
  %v558 = vadd.f32 %v557, 1.0
  %v559 = vrcp.pop %v558
  %v560 = vmul.f32 1.0, %v559
  %v561 = vadd.f32 %v544, %v397
  %v562 = vmul.f32 %v553, %v561
  %v563 = vadd.f32 %v405, %v562
  %v564 = vtanh.pop %v563
  %v565 = vsub.f32 %v399, %v564
  %v566 = vmul.f32 %v560, %v565
  %v567 = vadd.f32 %v564, %v566
  %568 = vst [vmem:[#allocation2] sm:$0xff] %v567
  %569 = vst [vmem:[%s6] sm:$0xff] %v567
  %v570 = vld [vmem:[#allocation2] sm:$0xff]
  %s571 = smul.u32 1, 3
  %s572 = smul.addr %s571, 8
  %s573 = scalar_lea.vmem [#allocation3], %s572
  %v574 = vld [vmem:[%s573] sm:$0xff]
  %v575 = vld [vmem:[%s573 + $0x8] sm:$0xff]
  %v576 = vld [vmem:[%s573 + $0x10] sm:$0xff]
  %577 = vmatprep.subr.mxu0 %v345
  %578 = vmatpush1.msra.mxu0 %v344
  %579 = vmatprep.subr.mxu0 %v348
  %580 = vmatpush1.msra.mxu0 %v347
  %581 = vmatprep.subr.mxu0 %v351
  %582 = vmatpush1.msra.mxu0 %v350
  %583 = vmatprep.subr.mxu0 %v354
  %584 = vmatpush1.msra.mxu0 %v353
  %585 = vmatprep.subr.mxu0 %v357
  %586 = vmatpush1.msra.mxu0 %v356
  %587 = vmatprep.subr.mxu0 %v360
  %588 = vmatpush1.msra.mxu0 %v359
  %589 = vmatprep.subr.mxu0 %v363
  %590 = vmatpush1.msra.mxu0 %v362
  %591 = vmatprep.subr.mxu0 %v366
  %592 = vmatpush1.msra.mxu0 %v365
  %593 = vmatprep.subr.mxu0 %v369
  %594 = vmatpush1.msra.mxu0 %v368
  %595 = vmatprep.subr.mxu0 %v372
  %596 = vmatpush1.msra.mxu0 %v371
  %597 = vmatprep.subr.mxu0 %v375
  %598 = vmatpush1.msra.mxu0 %v374
  %599 = vmatprep.subr.mxu0 %v378
  %600 = vmatpush1.msra.mxu0 %v377
  %601 = vmatprep.subr.mxu0 %v381
  %602 = vmatpush1.msra.mxu0 %v380
  %603 = vmatprep.subr.mxu0 %v384
  %604 = vmatpush1.msra.mxu0 %v383
  %605 = vmatprep.subr.mxu0 %v387
  %606 = vmatpush1.msra.mxu0 %v386
  %607 = vmatprep.subr.mxu0 %v390
  %608 = vmatpush1.msra.mxu0 %v389
  %609 = vmatprep.subr.mxu0 0.0
  %610 = vmatpush1.msra.mxu0 0.0
  %611 = vmatprep.subr.mxu0 0.0
  %612 = vmatpush1.msra.mxu0 0.0
  %613 = vmatprep.subr.mxu0 0.0
  %614 = vmatpush1.msra.mxu0 0.0
  %615 = vmatprep.subr.mxu0 0.0
  %616 = vmatpush1.msra.mxu0 0.0
  %617 = vmatprep.subr.mxu0 0.0
  %618 = vmatpush1.msra.mxu0 0.0
  %619 = vmatprep.subr.mxu0 0.0
  %620 = vmatpush1.msra.mxu0 0.0
  %621 = vmatprep.subr.mxu0 0.0
  %622 = vmatpush1.msra.mxu0 0.0
  %623 = vmatprep.subr.mxu0 0.0
  %624 = vmatpush1.msra.mxu0 0.0
  %625 = vmatprep.subr.mxu0 0.0
  %626 = vmatpush1.msra.mxu0 0.0
  %627 = vmatprep.subr.mxu0 0.0
  %628 = vmatpush1.msra.mxu0 0.0
  %629 = vmatprep.subr.mxu0 0.0
  %630 = vmatpush1.msra.mxu0 0.0
  %631 = vmatprep.subr.mxu0 0.0
  %632 = vmatpush1.msra.mxu0 0.0
  %633 = vmatprep.subr.mxu0 0.0
  %634 = vmatpush1.msra.mxu0 0.0
  %635 = vmatprep.subr.mxu0 0.0
  %636 = vmatpush1.msra.mxu0 0.0
  %637 = vmatprep.subr.mxu0 0.0
  %638 = vmatpush1.msra.mxu0 0.0
  %639 = vmatprep.subr.mxu0 0.0
  %640 = vmatpush1.msra.mxu0 0.0
  %641 = vmatprep.mubr.f32.mxu0 0.0
  %642 = vmatmul.mubr.f32.gmra.mrb[0].mxu0 %v570
  %v643 = vpop.f32.mrb[0].mxu0
  %v644 = vadd.f32 0.0, %v643
  %v645 = vpop.f32.mrb[0].mxu0
  %v646 = vadd.f32 0.0, %v645
  %647 = vdwg.mxu0
  %648 = vmatprep.subr.mxu0 0.0
  %649 = vmatpush1.msra.mxu0 %v346
  %650 = vmatprep.subr.mxu0 0.0
  %651 = vmatpush1.msra.mxu0 %v349
  %652 = vmatprep.subr.mxu0 0.0
  %653 = vmatpush1.msra.mxu0 %v352
  %654 = vmatprep.subr.mxu0 0.0
  %655 = vmatpush1.msra.mxu0 %v355
  %656 = vmatprep.subr.mxu0 0.0
  %657 = vmatpush1.msra.mxu0 %v358
  %658 = vmatprep.subr.mxu0 0.0
  %659 = vmatpush1.msra.mxu0 %v361
  %660 = vmatprep.subr.mxu0 0.0
  %661 = vmatpush1.msra.mxu0 %v364
  %662 = vmatprep.subr.mxu0 0.0
  %663 = vmatpush1.msra.mxu0 %v367
  %664 = vmatprep.subr.mxu0 0.0
  %665 = vmatpush1.msra.mxu0 %v370
  %666 = vmatprep.subr.mxu0 0.0
  %667 = vmatpush1.msra.mxu0 %v373
  %668 = vmatprep.subr.mxu0 0.0
  %669 = vmatpush1.msra.mxu0 %v376
  %670 = vmatprep.subr.mxu0 0.0
  %671 = vmatpush1.msra.mxu0 %v379
  %672 = vmatprep.subr.mxu0 0.0
  %673 = vmatpush1.msra.mxu0 %v382
  %674 = vmatprep.subr.mxu0 0.0
  %675 = vmatpush1.msra.mxu0 %v385
  %676 = vmatprep.subr.mxu0 0.0
  %677 = vmatpush1.msra.mxu0 %v388
  %678 = vmatprep.subr.mxu0 0.0
  %679 = vmatpush1.msra.mxu0 %v391
  %680 = vmatprep.subr.mxu0 0.0
  %681 = vmatpush1.msra.mxu0 0.0
  %682 = vmatprep.subr.mxu0 0.0
  %683 = vmatpush1.msra.mxu0 0.0
  %684 = vmatprep.subr.mxu0 0.0
  %685 = vmatpush1.msra.mxu0 0.0
  %686 = vmatprep.subr.mxu0 0.0
  %687 = vmatpush1.msra.mxu0 0.0
  %688 = vmatprep.subr.mxu0 0.0
  %689 = vmatpush1.msra.mxu0 0.0
  %690 = vmatprep.subr.mxu0 0.0
  %691 = vmatpush1.msra.mxu0 0.0
  %692 = vmatprep.subr.mxu0 0.0
  %693 = vmatpush1.msra.mxu0 0.0
  %694 = vmatprep.subr.mxu0 0.0
  %695 = vmatpush1.msra.mxu0 0.0
  %696 = vmatprep.subr.mxu0 0.0
  %697 = vmatpush1.msra.mxu0 0.0
  %698 = vmatprep.subr.mxu0 0.0
  %699 = vmatpush1.msra.mxu0 0.0
  %700 = vmatprep.subr.mxu0 0.0
  %701 = vmatpush1.msra.mxu0 0.0
  %702 = vmatprep.subr.mxu0 0.0
  %703 = vmatpush1.msra.mxu0 0.0
  %704 = vmatprep.subr.mxu0 0.0
  %705 = vmatpush1.msra.mxu0 0.0
  %706 = vmatprep.subr.mxu0 0.0
  %707 = vmatpush1.msra.mxu0 0.0
  %708 = vmatprep.subr.mxu0 0.0
  %709 = vmatpush1.msra.mxu0 0.0
  %710 = vmatprep.subr.mxu0 0.0
  %711 = vmatpush1.msra.mxu0 0.0
  %712 = vmatprep.mubr.f32.mxu0 0.0
  %713 = vmatmul.mubr.f32.gmra.mrb[0].mxu0 %v570
  %v714 = vpop.f32.mrb[0].mxu0
  %v715 = vadd.f32 0.0, %v714
  %v716 = vpop.f32.mrb[0].mxu0
  %717 = vdwg.mxu0
  %v718 = vadd.f32 %v574, %v644
  %v719 = vxor.u32 %v718, 2147483648
  %v720 = vmul.f32 %v719, 1.442695
  %v721 = vpow.pop %v720
  %v722 = vadd.f32 %v721, 1.0
  %v723 = vrcp.pop %v722
  %v724 = vmul.f32 1.0, %v723
  %v725 = vadd.f32 %v575, %v646
  %v726 = vxor.u32 %v725, 2147483648
  %v727 = vmul.f32 %v726, 1.442695
  %v728 = vpow.pop %v727
  %v729 = vadd.f32 %v728, 1.0
  %v730 = vrcp.pop %v729
  %v731 = vmul.f32 1.0, %v730
  %v732 = vadd.f32 %v715, %v397
  %v733 = vmul.f32 %v724, %v732
  %v734 = vadd.f32 %v576, %v733
  %v735 = vtanh.pop %v734
  %v736 = vsub.f32 %v570, %v735
  %v737 = vmul.f32 %v731, %v736
  %v738 = vadd.f32 %v735, %v737
  %739 = vst [vmem:[#allocation2] sm:$0xff] %v738
  %s740 = scalar_lea.vmem %s6, 8
  %741 = vst [vmem:[%s740] sm:$0xff] %v738
  %v742 = vld [vmem:[#allocation2] sm:$0xff]
  %s743 = smul.u32 2, 3
  %s744 = smul.addr %s743, 8
  %s745 = scalar_lea.vmem [#allocation3], %s744
  %v746 = vld [vmem:[%s745] sm:$0xff]
  %v747 = vld [vmem:[%s745 + $0x8] sm:$0xff]
  %v748 = vld [vmem:[%s745 + $0x10] sm:$0xff]
  %749 = vmatprep.subr.mxu0 %v345
  %750 = vmatpush1.msra.mxu0 %v344
  %751 = vmatprep.subr.mxu0 %v348
  %752 = vmatpush1.msra.mxu0 %v347
  %753 = vmatprep.subr.mxu0 %v351
  %754 = vmatpush1.msra.mxu0 %v350
  %755 = vmatprep.subr.mxu0 %v354
  %756 = vmatpush1.msra.mxu0 %v353
  %757 = vmatprep.subr.mxu0 %v357
  %758 = vmatpush1.msra.mxu0 %v356
  %759 = vmatprep.subr.mxu0 %v360
  %760 = vmatpush1.msra.mxu0 %v359
  %761 = vmatprep.subr.mxu0 %v363
  %762 = vmatpush1.msra.mxu0 %v362
  %763 = vmatprep.subr.mxu0 %v366
  %764 = vmatpush1.msra.mxu0 %v365
  %765 = vmatprep.subr.mxu0 %v369
  %766 = vmatpush1.msra.mxu0 %v368
  %767 = vmatprep.subr.mxu0 %v372
  %768 = vmatpush1.msra.mxu0 %v371
  %769 = vmatprep.subr.mxu0 %v375
  %770 = vmatpush1.msra.mxu0 %v374
  %771 = vmatprep.subr.mxu0 %v378
  %772 = vmatpush1.msra.mxu0 %v377
  %773 = vmatprep.subr.mxu0 %v381
  %774 = vmatpush1.msra.mxu0 %v380
  %775 = vmatprep.subr.mxu0 %v384
  %776 = vmatpush1.msra.mxu0 %v383
  %777 = vmatprep.subr.mxu0 %v387
  %778 = vmatpush1.msra.mxu0 %v386
  %779 = vmatprep.subr.mxu0 %v390
  %780 = vmatpush1.msra.mxu0 %v389
  %781 = vmatprep.subr.mxu0 0.0
  %782 = vmatpush1.msra.mxu0 0.0
  %783 = vmatprep.subr.mxu0 0.0
  %784 = vmatpush1.msra.mxu0 0.0
  %785 = vmatprep.subr.mxu0 0.0
  %786 = vmatpush1.msra.mxu0 0.0
  %787 = vmatprep.subr.mxu0 0.0
  %788 = vmatpush1.msra.mxu0 0.0
  %789 = vmatprep.subr.mxu0 0.0
  %790 = vmatpush1.msra.mxu0 0.0
  %791 = vmatprep.subr.mxu0 0.0
  %792 = vmatpush1.msra.mxu0 0.0
  %793 = vmatprep.subr.mxu0 0.0
  %794 = vmatpush1.msra.mxu0 0.0
  %795 = vmatprep.subr.mxu0 0.0
  %796 = vmatpush1.msra.mxu0 0.0
  %797 = vmatprep.subr.mxu0 0.0
  %798 = vmatpush1.msra.mxu0 0.0
  %799 = vmatprep.subr.mxu0 0.0
  %800 = vmatpush1.msra.mxu0 0.0
  %801 = vmatprep.subr.mxu0 0.0
  %802 = vmatpush1.msra.mxu0 0.0
  %803 = vmatprep.subr.mxu0 0.0
  %804 = vmatpush1.msra.mxu0 0.0
  %805 = vmatprep.subr.mxu0 0.0
  %806 = vmatpush1.msra.mxu0 0.0
  %807 = vmatprep.subr.mxu0 0.0
  %808 = vmatpush1.msra.mxu0 0.0
  %809 = vmatprep.subr.mxu0 0.0
  %810 = vmatpush1.msra.mxu0 0.0
  %811 = vmatprep.subr.mxu0 0.0
  %812 = vmatpush1.msra.mxu0 0.0
  %813 = vmatprep.mubr.f32.mxu0 0.0
  %814 = vmatmul.mubr.f32.gmra.mrb[0].mxu0 %v742
  %v815 = vpop.f32.mrb[0].mxu0
  %v816 = vadd.f32 0.0, %v815
  %v817 = vpop.f32.mrb[0].mxu0
  %v818 = vadd.f32 0.0, %v817
  %819 = vdwg.mxu0
  %820 = vmatprep.subr.mxu0 0.0
  %821 = vmatpush1.msra.mxu0 %v346
  %822 = vmatprep.subr.mxu0 0.0
  %823 = vmatpush1.msra.mxu0 %v349
  %824 = vmatprep.subr.mxu0 0.0
  %825 = vmatpush1.msra.mxu0 %v352
  %826 = vmatprep.subr.mxu0 0.0
  %827 = vmatpush1.msra.mxu0 %v355
  %828 = vmatprep.subr.mxu0 0.0
  %829 = vmatpush1.msra.mxu0 %v358
  %830 = vmatprep.subr.mxu0 0.0
  %831 = vmatpush1.msra.mxu0 %v361
  %832 = vmatprep.subr.mxu0 0.0
  %833 = vmatpush1.msra.mxu0 %v364
  %834 = vmatprep.subr.mxu0 0.0
  %835 = vmatpush1.msra.mxu0 %v367
  %836 = vmatprep.subr.mxu0 0.0
  %837 = vmatpush1.msra.mxu0 %v370
  %838 = vmatprep.subr.mxu0 0.0
  %839 = vmatpush1.msra.mxu0 %v373
  %840 = vmatprep.subr.mxu0 0.0
  %841 = vmatpush1.msra.mxu0 %v376
  %842 = vmatprep.subr.mxu0 0.0
  %843 = vmatpush1.msra.mxu0 %v379
  %844 = vmatprep.subr.mxu0 0.0
  %845 = vmatpush1.msra.mxu0 %v382
  %846 = vmatprep.subr.mxu0 0.0
  %847 = vmatpush1.msra.mxu0 %v385
  %848 = vmatprep.subr.mxu0 0.0
  %849 = vmatpush1.msra.mxu0 %v388
  %850 = vmatprep.subr.mxu0 0.0
  %851 = vmatpush1.msra.mxu0 %v391
  %852 = vmatprep.subr.mxu0 0.0
  %853 = vmatpush1.msra.mxu0 0.0
  %854 = vmatprep.subr.mxu0 0.0
  %855 = vmatpush1.msra.mxu0 0.0
  %856 = vmatprep.subr.mxu0 0.0
  %857 = vmatpush1.msra.mxu0 0.0
  %858 = vmatprep.subr.mxu0 0.0
  %859 = vmatpush1.msra.mxu0 0.0
  %860 = vmatprep.subr.mxu0 0.0
  %861 = vmatpush1.msra.mxu0 0.0
  %862 = vmatprep.subr.mxu0 0.0
  %863 = vmatpush1.msra.mxu0 0.0
  %864 = vmatprep.subr.mxu0 0.0
  %865 = vmatpush1.msra.mxu0 0.0
  %866 = vmatprep.subr.mxu0 0.0
  %867 = vmatpush1.msra.mxu0 0.0
  %868 = vmatprep.subr.mxu0 0.0
  %869 = vmatpush1.msra.mxu0 0.0
  %870 = vmatprep.subr.mxu0 0.0
  %871 = vmatpush1.msra.mxu0 0.0
  %872 = vmatprep.subr.mxu0 0.0
  %873 = vmatpush1.msra.mxu0 0.0
  %874 = vmatprep.subr.mxu0 0.0
  %875 = vmatpush1.msra.mxu0 0.0
  %876 = vmatprep.subr.mxu0 0.0
  %877 = vmatpush1.msra.mxu0 0.0
  %878 = vmatprep.subr.mxu0 0.0
  %879 = vmatpush1.msra.mxu0 0.0
  %880 = vmatprep.subr.mxu0 0.0
  %881 = vmatpush1.msra.mxu0 0.0
  %882 = vmatprep.subr.mxu0 0.0
  %883 = vmatpush1.msra.mxu0 0.0
  %884 = vmatprep.mubr.f32.mxu0 0.0
  %885 = vmatmul.mubr.f32.gmra.mrb[0].mxu0 %v742
  %v886 = vpop.f32.mrb[0].mxu0
  %v887 = vadd.f32 0.0, %v886
  %v888 = vpop.f32.mrb[0].mxu0
  %889 = vdwg.mxu0
  %v890 = vadd.f32 %v746, %v816
  %v891 = vxor.u32 %v890, 2147483648
  %v892 = vmul.f32 %v891, 1.442695
  %v893 = vpow.pop %v892
  %v894 = vadd.f32 %v893, 1.0
  %v895 = vrcp.pop %v894
  %v896 = vmul.f32 1.0, %v895
  %v897 = vadd.f32 %v747, %v818
  %v898 = vxor.u32 %v897, 2147483648
  %v899 = vmul.f32 %v898, 1.442695
  %v900 = vpow.pop %v899
  %v901 = vadd.f32 %v900, 1.0
  %v902 = vrcp.pop %v901
  %v903 = vmul.f32 1.0, %v902
  %v904 = vadd.f32 %v887, %v397
  %v905 = vmul.f32 %v896, %v904
  %v906 = vadd.f32 %v748, %v905
  %v907 = vtanh.pop %v906
  %v908 = vsub.f32 %v742, %v907
  %v909 = vmul.f32 %v903, %v908
  %v910 = vadd.f32 %v907, %v909
  %911 = vst [vmem:[#allocation2] sm:$0xff] %v910
  %s912 = scalar_lea.vmem %s6, 16
  %913 = vst [vmem:[%s912] sm:$0xff] %v910
  %v914 = vld [vmem:[#allocation2] sm:$0xff]
  %s915 = smul.u32 3, 3
  %s916 = smul.addr %s915, 8
  %s917 = scalar_lea.vmem [#allocation3], %s916
  %v918 = vld [vmem:[%s917] sm:$0xff]
  %v919 = vld [vmem:[%s917 + $0x8] sm:$0xff]
  %v920 = vld [vmem:[%s917 + $0x10] sm:$0xff]
  %921 = vmatprep.subr.mxu0 %v345
  %922 = vmatpush1.msra.mxu0 %v344
  %923 = vmatprep.subr.mxu0 %v348
  %924 = vmatpush1.msra.mxu0 %v347
  %925 = vmatprep.subr.mxu0 %v351
  %926 = vmatpush1.msra.mxu0 %v350
  %927 = vmatprep.subr.mxu0 %v354
  %928 = vmatpush1.msra.mxu0 %v353
  %929 = vmatprep.subr.mxu0 %v357
  %930 = vmatpush1.msra.mxu0 %v356
  %931 = vmatprep.subr.mxu0 %v360
  %932 = vmatpush1.msra.mxu0 %v359
  %933 = vmatprep.subr.mxu0 %v363
  %934 = vmatpush1.msra.mxu0 %v362
  %935 = vmatprep.subr.mxu0 %v366
  %936 = vmatpush1.msra.mxu0 %v365
  %937 = vmatprep.subr.mxu0 %v369
  %938 = vmatpush1.msra.mxu0 %v368
  %939 = vmatprep.subr.mxu0 %v372
  %940 = vmatpush1.msra.mxu0 %v371
  %941 = vmatprep.subr.mxu0 %v375
  %942 = vmatpush1.msra.mxu0 %v374
  %943 = vmatprep.subr.mxu0 %v378
  %944 = vmatpush1.msra.mxu0 %v377
  %945 = vmatprep.subr.mxu0 %v381
  %946 = vmatpush1.msra.mxu0 %v380
  %947 = vmatprep.subr.mxu0 %v384
  %948 = vmatpush1.msra.mxu0 %v383
  %949 = vmatprep.subr.mxu0 %v387
  %950 = vmatpush1.msra.mxu0 %v386
  %951 = vmatprep.subr.mxu0 %v390
  %952 = vmatpush1.msra.mxu0 %v389
  %953 = vmatprep.subr.mxu0 0.0
  %954 = vmatpush1.msra.mxu0 0.0
  %955 = vmatprep.subr.mxu0 0.0
  %956 = vmatpush1.msra.mxu0 0.0
  %957 = vmatprep.subr.mxu0 0.0
  %958 = vmatpush1.msra.mxu0 0.0
  %959 = vmatprep.subr.mxu0 0.0
  %960 = vmatpush1.msra.mxu0 0.0
  %961 = vmatprep.subr.mxu0 0.0
  %962 = vmatpush1.msra.mxu0 0.0
  %963 = vmatprep.subr.mxu0 0.0
  %964 = vmatpush1.msra.mxu0 0.0
  %965 = vmatprep.subr.mxu0 0.0
  %966 = vmatpush1.msra.mxu0 0.0
  %967 = vmatprep.subr.mxu0 0.0
  %968 = vmatpush1.msra.mxu0 0.0
  %969 = vmatprep.subr.mxu0 0.0
  %970 = vmatpush1.msra.mxu0 0.0
  %971 = vmatprep.subr.mxu0 0.0
  %972 = vmatpush1.msra.mxu0 0.0
  %973 = vmatprep.subr.mxu0 0.0
  %974 = vmatpush1.msra.mxu0 0.0
  %975 = vmatprep.subr.mxu0 0.0
  %976 = vmatpush1.msra.mxu0 0.0
  %977 = vmatprep.subr.mxu0 0.0
  %978 = vmatpush1.msra.mxu0 0.0
  %979 = vmatprep.subr.mxu0 0.0
  %980 = vmatpush1.msra.mxu0 0.0
  %981 = vmatprep.subr.mxu0 0.0
  %982 = vmatpush1.msra.mxu0 0.0
  %983 = vmatprep.subr.mxu0 0.0
  %984 = vmatpush1.msra.mxu0 0.0
  %985 = vmatprep.mubr.f32.mxu0 0.0
  %986 = vmatmul.mubr.f32.gmra.mrb[0].mxu0 %v914
  %v987 = vpop.f32.mrb[0].mxu0
  %v988 = vadd.f32 0.0, %v987
  %v989 = vpop.f32.mrb[0].mxu0
  %v990 = vadd.f32 0.0, %v989
  %991 = vdwg.mxu0
  %992 = vmatprep.subr.mxu0 0.0
  %993 = vmatpush1.msra.mxu0 %v346
  %994 = vmatprep.subr.mxu0 0.0
  %995 = vmatpush1.msra.mxu0 %v349
  %996 = vmatprep.subr.mxu0 0.0
  %997 = vmatpush1.msra.mxu0 %v352
  %998 = vmatprep.subr.mxu0 0.0
  %999 = vmatpush1.msra.mxu0 %v355
  %1000 = vmatprep.subr.mxu0 0.0
  %1001 = vmatpush1.msra.mxu0 %v358
  %1002 = vmatprep.subr.mxu0 0.0
  %1003 = vmatpush1.msra.mxu0 %v361
  %1004 = vmatprep.subr.mxu0 0.0
  %1005 = vmatpush1.msra.mxu0 %v364
  %1006 = vmatprep.subr.mxu0 0.0
  %1007 = vmatpush1.msra.mxu0 %v367
  %1008 = vmatprep.subr.mxu0 0.0
  %1009 = vmatpush1.msra.mxu0 %v370
  %1010 = vmatprep.subr.mxu0 0.0
  %1011 = vmatpush1.msra.mxu0 %v373
  %1012 = vmatprep.subr.mxu0 0.0
  %1013 = vmatpush1.msra.mxu0 %v376
  %1014 = vmatprep.subr.mxu0 0.0
  %1015 = vmatpush1.msra.mxu0 %v379
  %1016 = vmatprep.subr.mxu0 0.0
  %1017 = vmatpush1.msra.mxu0 %v382
  %1018 = vmatprep.subr.mxu0 0.0
  %1019 = vmatpush1.msra.mxu0 %v385
  %1020 = vmatprep.subr.mxu0 0.0
  %1021 = vmatpush1.msra.mxu0 %v388
  %1022 = vmatprep.subr.mxu0 0.0
  %1023 = vmatpush1.msra.mxu0 %v391
  %1024 = vmatprep.subr.mxu0 0.0
  %1025 = vmatpush1.msra.mxu0 0.0
  %1026 = vmatprep.subr.mxu0 0.0
  %1027 = vmatpush1.msra.mxu0 0.0
  %1028 = vmatprep.subr.mxu0 0.0
  %1029 = vmatpush1.msra.mxu0 0.0
  %1030 = vmatprep.subr.mxu0 0.0
  %1031 = vmatpush1.msra.mxu0 0.0
  %1032 = vmatprep.subr.mxu0 0.0
  %1033 = vmatpush1.msra.mxu0 0.0
  %1034 = vmatprep.subr.mxu0 0.0
  %1035 = vmatpush1.msra.mxu0 0.0
  %1036 = vmatprep.subr.mxu0 0.0
  %1037 = vmatpush1.msra.mxu0 0.0
  %1038 = vmatprep.subr.mxu0 0.0
  %1039 = vmatpush1.msra.mxu0 0.0
  %1040 = vmatprep.subr.mxu0 0.0
  %1041 = vmatpush1.msra.mxu0 0.0
  %1042 = vmatprep.subr.mxu0 0.0
  %1043 = vmatpush1.msra.mxu0 0.0
  %1044 = vmatprep.subr.mxu0 0.0
  %1045 = vmatpush1.msra.mxu0 0.0
  %1046 = vmatprep.subr.mxu0 0.0
  %1047 = vmatpush1.msra.mxu0 0.0
  %1048 = vmatprep.subr.mxu0 0.0
  %1049 = vmatpush1.msra.mxu0 0.0
  %1050 = vmatprep.subr.mxu0 0.0
  %1051 = vmatpush1.msra.mxu0 0.0
  %1052 = vmatprep.subr.mxu0 0.0
  %1053 = vmatpush1.msra.mxu0 0.0
  %1054 = vmatprep.subr.mxu0 0.0
  %1055 = vmatpush1.msra.mxu0 0.0
  %1056 = vmatprep.mubr.f32.mxu0 0.0
  %1057 = vmatmul.mubr.f32.gmra.mrb[0].mxu0 %v914
  %v1058 = vpop.f32.mrb[0].mxu0
  %v1059 = vadd.f32 0.0, %v1058
  %v1060 = vpop.f32.mrb[0].mxu0
  %1061 = vdwg.mxu0
  %v1062 = vadd.f32 %v918, %v988
  %v1063 = vxor.u32 %v1062, 2147483648
  %v1064 = vmul.f32 %v1063, 1.442695
  %v1065 = vpow.pop %v1064
  %v1066 = vadd.f32 %v1065, 1.0
  %v1067 = vrcp.pop %v1066
  %v1068 = vmul.f32 1.0, %v1067
  %v1069 = vadd.f32 %v919, %v990
  %v1070 = vxor.u32 %v1069, 2147483648
  %v1071 = vmul.f32 %v1070, 1.442695
  %v1072 = vpow.pop %v1071
  %v1073 = vadd.f32 %v1072, 1.0
  %v1074 = vrcp.pop %v1073
  %v1075 = vmul.f32 1.0, %v1074
  %v1076 = vadd.f32 %v1059, %v397
  %v1077 = vmul.f32 %v1068, %v1076
  %v1078 = vadd.f32 %v920, %v1077
  %v1079 = vtanh.pop %v1078
  %v1080 = vsub.f32 %v914, %v1079
  %v1081 = vmul.f32 %v1075, %v1080
  %v1082 = vadd.f32 %v1079, %v1081
  %1083 = vst [vmem:[#allocation2] sm:$0xff] %v1082
  %s1084 = scalar_lea.vmem %s6, 24
  %1085 = vst [vmem:[%s1084] sm:$0xff] %v1082
  %v1086 = vld [vmem:[#allocation2] sm:$0xff]
  %s1087 = smul.u32 4, 3
  %s1088 = smul.addr %s1087, 8
  %s1089 = scalar_lea.vmem [#allocation3], %s1088
  %v1090 = vld [vmem:[%s1089] sm:$0xff]
  %v1091 = vld [vmem:[%s1089 + $0x8] sm:$0xff]
  %v1092 = vld [vmem:[%s1089 + $0x10] sm:$0xff]
  %1093 = vmatprep.subr.mxu0 %v345
  %1094 = vmatpush1.msra.mxu0 %v344
  %1095 = vmatprep.subr.mxu0 %v348
  %1096 = vmatpush1.msra.mxu0 %v347
  %1097 = vmatprep.subr.mxu0 %v351
  %1098 = vmatpush1.msra.mxu0 %v350
  %1099 = vmatprep.subr.mxu0 %v354
  %1100 = vmatpush1.msra.mxu0 %v353
  %1101 = vmatprep.subr.mxu0 %v357
  %1102 = vmatpush1.msra.mxu0 %v356
  %1103 = vmatprep.subr.mxu0 %v360
  %1104 = vmatpush1.msra.mxu0 %v359
  %1105 = vmatprep.subr.mxu0 %v363
  %1106 = vmatpush1.msra.mxu0 %v362
  %1107 = vmatprep.subr.mxu0 %v366
  %1108 = vmatpush1.msra.mxu0 %v365
  %1109 = vmatprep.subr.mxu0 %v369
  %1110 = vmatpush1.msra.mxu0 %v368
  %1111 = vmatprep.subr.mxu0 %v372
  %1112 = vmatpush1.msra.mxu0 %v371
  %1113 = vmatprep.subr.mxu0 %v375
  %1114 = vmatpush1.msra.mxu0 %v374
  %1115 = vmatprep.subr.mxu0 %v378
  %1116 = vmatpush1.msra.mxu0 %v377
  %1117 = vmatprep.subr.mxu0 %v381
  %1118 = vmatpush1.msra.mxu0 %v380
  %1119 = vmatprep.subr.mxu0 %v384
  %1120 = vmatpush1.msra.mxu0 %v383
  %1121 = vmatprep.subr.mxu0 %v387
  %1122 = vmatpush1.msra.mxu0 %v386
  %1123 = vmatprep.subr.mxu0 %v390
  %1124 = vmatpush1.msra.mxu0 %v389
  %1125 = vmatprep.subr.mxu0 0.0
  %1126 = vmatpush1.msra.mxu0 0.0
  %1127 = vmatprep.subr.mxu0 0.0
  %1128 = vmatpush1.msra.mxu0 0.0
  %1129 = vmatprep.subr.mxu0 0.0
  %1130 = vmatpush1.msra.mxu0 0.0
  %1131 = vmatprep.subr.mxu0 0.0
  %1132 = vmatpush1.msra.mxu0 0.0
  %1133 = vmatprep.subr.mxu0 0.0
  %1134 = vmatpush1.msra.mxu0 0.0
  %1135 = vmatprep.subr.mxu0 0.0
  %1136 = vmatpush1.msra.mxu0 0.0
  %1137 = vmatprep.subr.mxu0 0.0
  %1138 = vmatpush1.msra.mxu0 0.0
  %1139 = vmatprep.subr.mxu0 0.0
  %1140 = vmatpush1.msra.mxu0 0.0
  %1141 = vmatprep.subr.mxu0 0.0
  %1142 = vmatpush1.msra.mxu0 0.0
  %1143 = vmatprep.subr.mxu0 0.0
  %1144 = vmatpush1.msra.mxu0 0.0
  %1145 = vmatprep.subr.mxu0 0.0
  %1146 = vmatpush1.msra.mxu0 0.0
  %1147 = vmatprep.subr.mxu0 0.0
  %1148 = vmatpush1.msra.mxu0 0.0
  %1149 = vmatprep.subr.mxu0 0.0
  %1150 = vmatpush1.msra.mxu0 0.0
  %1151 = vmatprep.subr.mxu0 0.0
  %1152 = vmatpush1.msra.mxu0 0.0
  %1153 = vmatprep.subr.mxu0 0.0
  %1154 = vmatpush1.msra.mxu0 0.0
  %1155 = vmatprep.subr.mxu0 0.0
  %1156 = vmatpush1.msra.mxu0 0.0
  %1157 = vmatprep.mubr.f32.mxu0 0.0
  %1158 = vmatmul.mubr.f32.gmra.mrb[0].mxu0 %v1086
  %v1159 = vpop.f32.mrb[0].mxu0
  %v1160 = vadd.f32 0.0, %v1159
  %v1161 = vpop.f32.mrb[0].mxu0
  %v1162 = vadd.f32 0.0, %v1161
  %1163 = vdwg.mxu0
  %1164 = vmatprep.subr.mxu0 0.0
  %1165 = vmatpush1.msra.mxu0 %v346
  %1166 = vmatprep.subr.mxu0 0.0
  %1167 = vmatpush1.msra.mxu0 %v349
  %1168 = vmatprep.subr.mxu0 0.0
  %1169 = vmatpush1.msra.mxu0 %v352
  %1170 = vmatprep.subr.mxu0 0.0
  %1171 = vmatpush1.msra.mxu0 %v355
  %1172 = vmatprep.subr.mxu0 0.0
  %1173 = vmatpush1.msra.mxu0 %v358
  %1174 = vmatprep.subr.mxu0 0.0
  %1175 = vmatpush1.msra.mxu0 %v361
  %1176 = vmatprep.subr.mxu0 0.0
  %1177 = vmatpush1.msra.mxu0 %v364
  %1178 = vmatprep.subr.mxu0 0.0
  %1179 = vmatpush1.msra.mxu0 %v367
  %1180 = vmatprep.subr.mxu0 0.0
  %1181 = vmatpush1.msra.mxu0 %v370
  %1182 = vmatprep.subr.mxu0 0.0
  %1183 = vmatpush1.msra.mxu0 %v373
  %1184 = vmatprep.subr.mxu0 0.0
  %1185 = vmatpush1.msra.mxu0 %v376
  %1186 = vmatprep.subr.mxu0 0.0
  %1187 = vmatpush1.msra.mxu0 %v379
  %1188 = vmatprep.subr.mxu0 0.0
  %1189 = vmatpush1.msra.mxu0 %v382
  %1190 = vmatprep.subr.mxu0 0.0
  %1191 = vmatpush1.msra.mxu0 %v385
  %1192 = vmatprep.subr.mxu0 0.0
  %1193 = vmatpush1.msra.mxu0 %v388
  %1194 = vmatprep.subr.mxu0 0.0
  %1195 = vmatpush1.msra.mxu0 %v391
  %1196 = vmatprep.subr.mxu0 0.0
  %1197 = vmatpush1.msra.mxu0 0.0
  %1198 = vmatprep.subr.mxu0 0.0
  %1199 = vmatpush1.msra.mxu0 0.0
  %1200 = vmatprep.subr.mxu0 0.0
  %1201 = vmatpush1.msra.mxu0 0.0
  %1202 = vmatprep.subr.mxu0 0.0
  %1203 = vmatpush1.msra.mxu0 0.0
  %1204 = vmatprep.subr.mxu0 0.0
  %1205 = vmatpush1.msra.mxu0 0.0
  %1206 = vmatprep.subr.mxu0 0.0
  %1207 = vmatpush1.msra.mxu0 0.0
  %1208 = vmatprep.subr.mxu0 0.0
  %1209 = vmatpush1.msra.mxu0 0.0
  %1210 = vmatprep.subr.mxu0 0.0
  %1211 = vmatpush1.msra.mxu0 0.0
  %1212 = vmatprep.subr.mxu0 0.0
  %1213 = vmatpush1.msra.mxu0 0.0
  %1214 = vmatprep.subr.mxu0 0.0
  %1215 = vmatpush1.msra.mxu0 0.0
  %1216 = vmatprep.subr.mxu0 0.0
  %1217 = vmatpush1.msra.mxu0 0.0
  %1218 = vmatprep.subr.mxu0 0.0
  %1219 = vmatpush1.msra.mxu0 0.0
  %1220 = vmatprep.subr.mxu0 0.0
  %1221 = vmatpush1.msra.mxu0 0.0
  %1222 = vmatprep.subr.mxu0 0.0
  %1223 = vmatpush1.msra.mxu0 0.0
  %1224 = vmatprep.subr.mxu0 0.0
  %1225 = vmatpush1.msra.mxu0 0.0
  %1226 = vmatprep.subr.mxu0 0.0
  %1227 = vmatpush1.msra.mxu0 0.0
  %1228 = vmatprep.mubr.f32.mxu0 0.0
  %1229 = vmatmul.mubr.f32.gmra.mrb[0].mxu0 %v1086
  %v1230 = vpop.f32.mrb[0].mxu0
  %v1231 = vadd.f32 0.0, %v1230
  %v1232 = vpop.f32.mrb[0].mxu0
  %1233 = vdwg.mxu0
  %v1234 = vadd.f32 %v1090, %v1160
  %v1235 = vxor.u32 %v1234, 2147483648
  %v1236 = vmul.f32 %v1235, 1.442695
  %v1237 = vpow.pop %v1236
  %v1238 = vadd.f32 %v1237, 1.0
  %v1239 = vrcp.pop %v1238
  %v1240 = vmul.f32 1.0, %v1239
  %v1241 = vadd.f32 %v1091, %v1162
  %v1242 = vxor.u32 %v1241, 2147483648
  %v1243 = vmul.f32 %v1242, 1.442695
  %v1244 = vpow.pop %v1243
  %v1245 = vadd.f32 %v1244, 1.0
  %v1246 = vrcp.pop %v1245
  %v1247 = vmul.f32 1.0, %v1246
  %v1248 = vadd.f32 %v1231, %v397
  %v1249 = vmul.f32 %v1240, %v1248
  %v1250 = vadd.f32 %v1092, %v1249
  %v1251 = vtanh.pop %v1250
  %v1252 = vsub.f32 %v1086, %v1251
  %v1253 = vmul.f32 %v1247, %v1252
  %v1254 = vadd.f32 %v1251, %v1253
  %1255 = vst [vmem:[#allocation2] sm:$0xff] %v1254
  %s1256 = scalar_lea.vmem %s6, 32
  %1257 = vst [vmem:[%s1256] sm:$0xff] %v1254
  %v1258 = vld [vmem:[#allocation2] sm:$0xff]
  %s1259 = smul.u32 5, 3
  %s1260 = smul.addr %s1259, 8
  %s1261 = scalar_lea.vmem [#allocation3], %s1260
  %v1262 = vld [vmem:[%s1261] sm:$0xff]
  %v1263 = vld [vmem:[%s1261 + $0x8] sm:$0xff]
  %v1264 = vld [vmem:[%s1261 + $0x10] sm:$0xff]
  %1265 = vmatprep.subr.mxu0 %v345
  %1266 = vmatpush1.msra.mxu0 %v344
  %1267 = vmatprep.subr.mxu0 %v348
  %1268 = vmatpush1.msra.mxu0 %v347
  %1269 = vmatprep.subr.mxu0 %v351
  %1270 = vmatpush1.msra.mxu0 %v350
  %1271 = vmatprep.subr.mxu0 %v354
  %1272 = vmatpush1.msra.mxu0 %v353
  %1273 = vmatprep.subr.mxu0 %v357
  %1274 = vmatpush1.msra.mxu0 %v356
  %1275 = vmatprep.subr.mxu0 %v360
  %1276 = vmatpush1.msra.mxu0 %v359
  %1277 = vmatprep.subr.mxu0 %v363
  %1278 = vmatpush1.msra.mxu0 %v362
  %1279 = vmatprep.subr.mxu0 %v366
  %1280 = vmatpush1.msra.mxu0 %v365
  %1281 = vmatprep.subr.mxu0 %v369
  %1282 = vmatpush1.msra.mxu0 %v368
  %1283 = vmatprep.subr.mxu0 %v372
  %1284 = vmatpush1.msra.mxu0 %v371
  %1285 = vmatprep.subr.mxu0 %v375
  %1286 = vmatpush1.msra.mxu0 %v374
  %1287 = vmatprep.subr.mxu0 %v378
  %1288 = vmatpush1.msra.mxu0 %v377
  %1289 = vmatprep.subr.mxu0 %v381
  %1290 = vmatpush1.msra.mxu0 %v380
  %1291 = vmatprep.subr.mxu0 %v384
  %1292 = vmatpush1.msra.mxu0 %v383
  %1293 = vmatprep.subr.mxu0 %v387
  %1294 = vmatpush1.msra.mxu0 %v386
  %1295 = vmatprep.subr.mxu0 %v390
  %1296 = vmatpush1.msra.mxu0 %v389
  %1297 = vmatprep.subr.mxu0 0.0
  %1298 = vmatpush1.msra.mxu0 0.0
  %1299 = vmatprep.subr.mxu0 0.0
  %1300 = vmatpush1.msra.mxu0 0.0
  %1301 = vmatprep.subr.mxu0 0.0
  %1302 = vmatpush1.msra.mxu0 0.0
  %1303 = vmatprep.subr.mxu0 0.0
  %1304 = vmatpush1.msra.mxu0 0.0
  %1305 = vmatprep.subr.mxu0 0.0
  %1306 = vmatpush1.msra.mxu0 0.0
  %1307 = vmatprep.subr.mxu0 0.0
  %1308 = vmatpush1.msra.mxu0 0.0
  %1309 = vmatprep.subr.mxu0 0.0
  %1310 = vmatpush1.msra.mxu0 0.0
  %1311 = vmatprep.subr.mxu0 0.0
  %1312 = vmatpush1.msra.mxu0 0.0
  %1313 = vmatprep.subr.mxu0 0.0
  %1314 = vmatpush1.msra.mxu0 0.0
  %1315 = vmatprep.subr.mxu0 0.0
  %1316 = vmatpush1.msra.mxu0 0.0
  %1317 = vmatprep.subr.mxu0 0.0
  %1318 = vmatpush1.msra.mxu0 0.0
  %1319 = vmatprep.subr.mxu0 0.0
  %1320 = vmatpush1.msra.mxu0 0.0
  %1321 = vmatprep.subr.mxu0 0.0
  %1322 = vmatpush1.msra.mxu0 0.0
  %1323 = vmatprep.subr.mxu0 0.0
  %1324 = vmatpush1.msra.mxu0 0.0
  %1325 = vmatprep.subr.mxu0 0.0
  %1326 = vmatpush1.msra.mxu0 0.0
  %1327 = vmatprep.subr.mxu0 0.0
  %1328 = vmatpush1.msra.mxu0 0.0
  %1329 = vmatprep.mubr.f32.mxu0 0.0
  %1330 = vmatmul.mubr.f32.gmra.mrb[0].mxu0 %v1258
  %v1331 = vpop.f32.mrb[0].mxu0
  %v1332 = vadd.f32 0.0, %v1331
  %v1333 = vpop.f32.mrb[0].mxu0
  %v1334 = vadd.f32 0.0, %v1333
  %1335 = vdwg.mxu0
  %1336 = vmatprep.subr.mxu0 0.0
  %1337 = vmatpush1.msra.mxu0 %v346
  %1338 = vmatprep.subr.mxu0 0.0
  %1339 = vmatpush1.msra.mxu0 %v349
  %1340 = vmatprep.subr.mxu0 0.0
  %1341 = vmatpush1.msra.mxu0 %v352
  %1342 = vmatprep.subr.mxu0 0.0
  %1343 = vmatpush1.msra.mxu0 %v355
  %1344 = vmatprep.subr.mxu0 0.0
  %1345 = vmatpush1.msra.mxu0 %v358
  %1346 = vmatprep.subr.mxu0 0.0
  %1347 = vmatpush1.msra.mxu0 %v361
  %1348 = vmatprep.subr.mxu0 0.0
  %1349 = vmatpush1.msra.mxu0 %v364
  %1350 = vmatprep.subr.mxu0 0.0
  %1351 = vmatpush1.msra.mxu0 %v367
  %1352 = vmatprep.subr.mxu0 0.0
  %1353 = vmatpush1.msra.mxu0 %v370
  %1354 = vmatprep.subr.mxu0 0.0
  %1355 = vmatpush1.msra.mxu0 %v373
  %1356 = vmatprep.subr.mxu0 0.0
  %1357 = vmatpush1.msra.mxu0 %v376
  %1358 = vmatprep.subr.mxu0 0.0
  %1359 = vmatpush1.msra.mxu0 %v379
  %1360 = vmatprep.subr.mxu0 0.0
  %1361 = vmatpush1.msra.mxu0 %v382
  %1362 = vmatprep.subr.mxu0 0.0
  %1363 = vmatpush1.msra.mxu0 %v385
  %1364 = vmatprep.subr.mxu0 0.0
  %1365 = vmatpush1.msra.mxu0 %v388
  %1366 = vmatprep.subr.mxu0 0.0
  %1367 = vmatpush1.msra.mxu0 %v391
  %1368 = vmatprep.subr.mxu0 0.0
  %1369 = vmatpush1.msra.mxu0 0.0
  %1370 = vmatprep.subr.mxu0 0.0
  %1371 = vmatpush1.msra.mxu0 0.0
  %1372 = vmatprep.subr.mxu0 0.0
  %1373 = vmatpush1.msra.mxu0 0.0
  %1374 = vmatprep.subr.mxu0 0.0
  %1375 = vmatpush1.msra.mxu0 0.0
  %1376 = vmatprep.subr.mxu0 0.0
  %1377 = vmatpush1.msra.mxu0 0.0
  %1378 = vmatprep.subr.mxu0 0.0
  %1379 = vmatpush1.msra.mxu0 0.0
  %1380 = vmatprep.subr.mxu0 0.0
  %1381 = vmatpush1.msra.mxu0 0.0
  %1382 = vmatprep.subr.mxu0 0.0
  %1383 = vmatpush1.msra.mxu0 0.0
  %1384 = vmatprep.subr.mxu0 0.0
  %1385 = vmatpush1.msra.mxu0 0.0
  %1386 = vmatprep.subr.mxu0 0.0
  %1387 = vmatpush1.msra.mxu0 0.0
  %1388 = vmatprep.subr.mxu0 0.0
  %1389 = vmatpush1.msra.mxu0 0.0
  %1390 = vmatprep.subr.mxu0 0.0
  %1391 = vmatpush1.msra.mxu0 0.0
  %1392 = vmatprep.subr.mxu0 0.0
  %1393 = vmatpush1.msra.mxu0 0.0
  %1394 = vmatprep.subr.mxu0 0.0
  %1395 = vmatpush1.msra.mxu0 0.0
  %1396 = vmatprep.subr.mxu0 0.0
  %1397 = vmatpush1.msra.mxu0 0.0
  %1398 = vmatprep.subr.mxu0 0.0
  %1399 = vmatpush1.msra.mxu0 0.0
  %1400 = vmatprep.mubr.f32.mxu0 0.0
  %1401 = vmatmul.mubr.f32.gmra.mrb[0].mxu0 %v1258
  %v1402 = vpop.f32.mrb[0].mxu0
  %v1403 = vadd.f32 0.0, %v1402
  %v1404 = vpop.f32.mrb[0].mxu0
  %1405 = vdwg.mxu0
  %v1406 = vadd.f32 %v1262, %v1332
  %v1407 = vxor.u32 %v1406, 2147483648
  %v1408 = vmul.f32 %v1407, 1.442695
  %v1409 = vpow.pop %v1408
  %v1410 = vadd.f32 %v1409, 1.0
  %v1411 = vrcp.pop %v1410
  %v1412 = vmul.f32 1.0, %v1411
  %v1413 = vadd.f32 %v1263, %v1334
  %v1414 = vxor.u32 %v1413, 2147483648
  %v1415 = vmul.f32 %v1414, 1.442695
  %v1416 = vpow.pop %v1415
  %v1417 = vadd.f32 %v1416, 1.0
  %v1418 = vrcp.pop %v1417
  %v1419 = vmul.f32 1.0, %v1418
  %v1420 = vadd.f32 %v1403, %v397
  %v1421 = vmul.f32 %v1412, %v1420
  %v1422 = vadd.f32 %v1264, %v1421
  %v1423 = vtanh.pop %v1422
  %v1424 = vsub.f32 %v1258, %v1423
  %v1425 = vmul.f32 %v1419, %v1424
  %v1426 = vadd.f32 %v1423, %v1425
  %1427 = vst [vmem:[#allocation2] sm:$0xff] %v1426
  %s1428 = scalar_lea.vmem %s6, 40
  %1429 = vst [vmem:[%s1428] sm:$0xff] %v1426
  %v1430 = vld [vmem:[#allocation2] sm:$0xff]
  %s1431 = smul.u32 6, 3
  %s1432 = smul.addr %s1431, 8
  %s1433 = scalar_lea.vmem [#allocation3], %s1432
  %v1434 = vld [vmem:[%s1433] sm:$0xff]
  %v1435 = vld [vmem:[%s1433 + $0x8] sm:$0xff]
  %v1436 = vld [vmem:[%s1433 + $0x10] sm:$0xff]
  %1437 = vmatprep.subr.mxu0 %v345
  %1438 = vmatpush1.msra.mxu0 %v344
  %1439 = vmatprep.subr.mxu0 %v348
  %1440 = vmatpush1.msra.mxu0 %v347
  %1441 = vmatprep.subr.mxu0 %v351
  %1442 = vmatpush1.msra.mxu0 %v350
  %1443 = vmatprep.subr.mxu0 %v354
  %1444 = vmatpush1.msra.mxu0 %v353
  %1445 = vmatprep.subr.mxu0 %v357
  %1446 = vmatpush1.msra.mxu0 %v356
  %1447 = vmatprep.subr.mxu0 %v360
  %1448 = vmatpush1.msra.mxu0 %v359
  %1449 = vmatprep.subr.mxu0 %v363
  %1450 = vmatpush1.msra.mxu0 %v362
  %1451 = vmatprep.subr.mxu0 %v366
  %1452 = vmatpush1.msra.mxu0 %v365
  %1453 = vmatprep.subr.mxu0 %v369
  %1454 = vmatpush1.msra.mxu0 %v368
  %1455 = vmatprep.subr.mxu0 %v372
  %1456 = vmatpush1.msra.mxu0 %v371
  %1457 = vmatprep.subr.mxu0 %v375
  %1458 = vmatpush1.msra.mxu0 %v374
  %1459 = vmatprep.subr.mxu0 %v378
  %1460 = vmatpush1.msra.mxu0 %v377
  %1461 = vmatprep.subr.mxu0 %v381
  %1462 = vmatpush1.msra.mxu0 %v380
  %1463 = vmatprep.subr.mxu0 %v384
  %1464 = vmatpush1.msra.mxu0 %v383
  %1465 = vmatprep.subr.mxu0 %v387
  %1466 = vmatpush1.msra.mxu0 %v386
  %1467 = vmatprep.subr.mxu0 %v390
  %1468 = vmatpush1.msra.mxu0 %v389
  %1469 = vmatprep.subr.mxu0 0.0
  %1470 = vmatpush1.msra.mxu0 0.0
  %1471 = vmatprep.subr.mxu0 0.0
  %1472 = vmatpush1.msra.mxu0 0.0
  %1473 = vmatprep.subr.mxu0 0.0
  %1474 = vmatpush1.msra.mxu0 0.0
  %1475 = vmatprep.subr.mxu0 0.0
  %1476 = vmatpush1.msra.mxu0 0.0
  %1477 = vmatprep.subr.mxu0 0.0
  %1478 = vmatpush1.msra.mxu0 0.0
  %1479 = vmatprep.subr.mxu0 0.0
  %1480 = vmatpush1.msra.mxu0 0.0
  %1481 = vmatprep.subr.mxu0 0.0
  %1482 = vmatpush1.msra.mxu0 0.0
  %1483 = vmatprep.subr.mxu0 0.0
  %1484 = vmatpush1.msra.mxu0 0.0
  %1485 = vmatprep.subr.mxu0 0.0
  %1486 = vmatpush1.msra.mxu0 0.0
  %1487 = vmatprep.subr.mxu0 0.0
  %1488 = vmatpush1.msra.mxu0 0.0
  %1489 = vmatprep.subr.mxu0 0.0
  %1490 = vmatpush1.msra.mxu0 0.0
  %1491 = vmatprep.subr.mxu0 0.0
  %1492 = vmatpush1.msra.mxu0 0.0
  %1493 = vmatprep.subr.mxu0 0.0
  %1494 = vmatpush1.msra.mxu0 0.0
  %1495 = vmatprep.subr.mxu0 0.0
  %1496 = vmatpush1.msra.mxu0 0.0
  %1497 = vmatprep.subr.mxu0 0.0
  %1498 = vmatpush1.msra.mxu0 0.0
  %1499 = vmatprep.subr.mxu0 0.0
  %1500 = vmatpush1.msra.mxu0 0.0
  %1501 = vmatprep.mubr.f32.mxu0 0.0
  %1502 = vmatmul.mubr.f32.gmra.mrb[0].mxu0 %v1430
  %v1503 = vpop.f32.mrb[0].mxu0
  %v1504 = vadd.f32 0.0, %v1503
  %v1505 = vpop.f32.mrb[0].mxu0
  %v1506 = vadd.f32 0.0, %v1505
  %1507 = vdwg.mxu0
  %1508 = vmatprep.subr.mxu0 0.0
  %1509 = vmatpush1.msra.mxu0 %v346
  %1510 = vmatprep.subr.mxu0 0.0
  %1511 = vmatpush1.msra.mxu0 %v349
  %1512 = vmatprep.subr.mxu0 0.0
  %1513 = vmatpush1.msra.mxu0 %v352
  %1514 = vmatprep.subr.mxu0 0.0
  %1515 = vmatpush1.msra.mxu0 %v355
  %1516 = vmatprep.subr.mxu0 0.0
  %1517 = vmatpush1.msra.mxu0 %v358
  %1518 = vmatprep.subr.mxu0 0.0
  %1519 = vmatpush1.msra.mxu0 %v361
  %1520 = vmatprep.subr.mxu0 0.0
  %1521 = vmatpush1.msra.mxu0 %v364
  %1522 = vmatprep.subr.mxu0 0.0
  %1523 = vmatpush1.msra.mxu0 %v367
  %1524 = vmatprep.subr.mxu0 0.0
  %1525 = vmatpush1.msra.mxu0 %v370
  %1526 = vmatprep.subr.mxu0 0.0
  %1527 = vmatpush1.msra.mxu0 %v373
  %1528 = vmatprep.subr.mxu0 0.0
  %1529 = vmatpush1.msra.mxu0 %v376
  %1530 = vmatprep.subr.mxu0 0.0
  %1531 = vmatpush1.msra.mxu0 %v379
  %1532 = vmatprep.subr.mxu0 0.0
  %1533 = vmatpush1.msra.mxu0 %v382
  %1534 = vmatprep.subr.mxu0 0.0
  %1535 = vmatpush1.msra.mxu0 %v385
  %1536 = vmatprep.subr.mxu0 0.0
  %1537 = vmatpush1.msra.mxu0 %v388
  %1538 = vmatprep.subr.mxu0 0.0
  %1539 = vmatpush1.msra.mxu0 %v391
  %1540 = vmatprep.subr.mxu0 0.0
  %1541 = vmatpush1.msra.mxu0 0.0
  %1542 = vmatprep.subr.mxu0 0.0
  %1543 = vmatpush1.msra.mxu0 0.0
  %1544 = vmatprep.subr.mxu0 0.0
  %1545 = vmatpush1.msra.mxu0 0.0
  %1546 = vmatprep.subr.mxu0 0.0
  %1547 = vmatpush1.msra.mxu0 0.0
  %1548 = vmatprep.subr.mxu0 0.0
  %1549 = vmatpush1.msra.mxu0 0.0
  %1550 = vmatprep.subr.mxu0 0.0
  %1551 = vmatpush1.msra.mxu0 0.0
  %1552 = vmatprep.subr.mxu0 0.0
  %1553 = vmatpush1.msra.mxu0 0.0
  %1554 = vmatprep.subr.mxu0 0.0
  %1555 = vmatpush1.msra.mxu0 0.0
  %1556 = vmatprep.subr.mxu0 0.0
  %1557 = vmatpush1.msra.mxu0 0.0
  %1558 = vmatprep.subr.mxu0 0.0
  %1559 = vmatpush1.msra.mxu0 0.0
  %1560 = vmatprep.subr.mxu0 0.0
  %1561 = vmatpush1.msra.mxu0 0.0
  %1562 = vmatprep.subr.mxu0 0.0
  %1563 = vmatpush1.msra.mxu0 0.0
  %1564 = vmatprep.subr.mxu0 0.0
  %1565 = vmatpush1.msra.mxu0 0.0
  %1566 = vmatprep.subr.mxu0 0.0
  %1567 = vmatpush1.msra.mxu0 0.0
  %1568 = vmatprep.subr.mxu0 0.0
  %1569 = vmatpush1.msra.mxu0 0.0
  %1570 = vmatprep.subr.mxu0 0.0
  %1571 = vmatpush1.msra.mxu0 0.0
  %1572 = vmatprep.mubr.f32.mxu0 0.0
  %1573 = vmatmul.mubr.f32.gmra.mrb[0].mxu0 %v1430
  %v1574 = vpop.f32.mrb[0].mxu0
  %v1575 = vadd.f32 0.0, %v1574
  %v1576 = vpop.f32.mrb[0].mxu0
  %1577 = vdwg.mxu0
  %v1578 = vadd.f32 %v1434, %v1504
  %v1579 = vxor.u32 %v1578, 2147483648
  %v1580 = vmul.f32 %v1579, 1.442695
  %v1581 = vpow.pop %v1580
  %v1582 = vadd.f32 %v1581, 1.0
  %v1583 = vrcp.pop %v1582
  %v1584 = vmul.f32 1.0, %v1583
  %v1585 = vadd.f32 %v1435, %v1506
  %v1586 = vxor.u32 %v1585, 2147483648
  %v1587 = vmul.f32 %v1586, 1.442695
  %v1588 = vpow.pop %v1587
  %v1589 = vadd.f32 %v1588, 1.0
  %v1590 = vrcp.pop %v1589
  %v1591 = vmul.f32 1.0, %v1590
  %v1592 = vadd.f32 %v1575, %v397
  %v1593 = vmul.f32 %v1584, %v1592
  %v1594 = vadd.f32 %v1436, %v1593
  %v1595 = vtanh.pop %v1594
  %v1596 = vsub.f32 %v1430, %v1595
  %v1597 = vmul.f32 %v1591, %v1596
  %v1598 = vadd.f32 %v1595, %v1597
  %1599 = vst [vmem:[#allocation2] sm:$0xff] %v1598
  %s1600 = scalar_lea.vmem %s6, 48
  %1601 = vst [vmem:[%s1600] sm:$0xff] %v1598
  %v1602 = vld [vmem:[#allocation2] sm:$0xff]
  %s1603 = smul.u32 7, 3
  %s1604 = smul.addr %s1603, 8
  %s1605 = scalar_lea.vmem [#allocation3], %s1604
  %v1606 = vld [vmem:[%s1605] sm:$0xff]
  %v1607 = vld [vmem:[%s1605 + $0x8] sm:$0xff]
  %v1608 = vld [vmem:[%s1605 + $0x10] sm:$0xff]
  %1609 = vmatprep.subr.mxu0 %v345
  %1610 = vmatpush1.msra.mxu0 %v344
  %1611 = vmatprep.subr.mxu0 %v348
  %1612 = vmatpush1.msra.mxu0 %v347
  %1613 = vmatprep.subr.mxu0 %v351
  %1614 = vmatpush1.msra.mxu0 %v350
  %1615 = vmatprep.subr.mxu0 %v354
  %1616 = vmatpush1.msra.mxu0 %v353
  %1617 = vmatprep.subr.mxu0 %v357
  %1618 = vmatpush1.msra.mxu0 %v356
  %1619 = vmatprep.subr.mxu0 %v360
  %1620 = vmatpush1.msra.mxu0 %v359
  %1621 = vmatprep.subr.mxu0 %v363
  %1622 = vmatpush1.msra.mxu0 %v362
  %1623 = vmatprep.subr.mxu0 %v366
  %1624 = vmatpush1.msra.mxu0 %v365
  %1625 = vmatprep.subr.mxu0 %v369
  %1626 = vmatpush1.msra.mxu0 %v368
  %1627 = vmatprep.subr.mxu0 %v372
  %1628 = vmatpush1.msra.mxu0 %v371
  %1629 = vmatprep.subr.mxu0 %v375
  %1630 = vmatpush1.msra.mxu0 %v374
  %1631 = vmatprep.subr.mxu0 %v378
  %1632 = vmatpush1.msra.mxu0 %v377
  %1633 = vmatprep.subr.mxu0 %v381
  %1634 = vmatpush1.msra.mxu0 %v380
  %1635 = vmatprep.subr.mxu0 %v384
  %1636 = vmatpush1.msra.mxu0 %v383
  %1637 = vmatprep.subr.mxu0 %v387
  %1638 = vmatpush1.msra.mxu0 %v386
  %1639 = vmatprep.subr.mxu0 %v390
  %1640 = vmatpush1.msra.mxu0 %v389
  %1641 = vmatprep.subr.mxu0 0.0
  %1642 = vmatpush1.msra.mxu0 0.0
  %1643 = vmatprep.subr.mxu0 0.0
  %1644 = vmatpush1.msra.mxu0 0.0
  %1645 = vmatprep.subr.mxu0 0.0
  %1646 = vmatpush1.msra.mxu0 0.0
  %1647 = vmatprep.subr.mxu0 0.0
  %1648 = vmatpush1.msra.mxu0 0.0
  %1649 = vmatprep.subr.mxu0 0.0
  %1650 = vmatpush1.msra.mxu0 0.0
  %1651 = vmatprep.subr.mxu0 0.0
  %1652 = vmatpush1.msra.mxu0 0.0
  %1653 = vmatprep.subr.mxu0 0.0
  %1654 = vmatpush1.msra.mxu0 0.0
  %1655 = vmatprep.subr.mxu0 0.0
  %1656 = vmatpush1.msra.mxu0 0.0
  %1657 = vmatprep.subr.mxu0 0.0
  %1658 = vmatpush1.msra.mxu0 0.0
  %1659 = vmatprep.subr.mxu0 0.0
  %1660 = vmatpush1.msra.mxu0 0.0
  %1661 = vmatprep.subr.mxu0 0.0
  %1662 = vmatpush1.msra.mxu0 0.0
  %1663 = vmatprep.subr.mxu0 0.0
  %1664 = vmatpush1.msra.mxu0 0.0
  %1665 = vmatprep.subr.mxu0 0.0
  %1666 = vmatpush1.msra.mxu0 0.0
  %1667 = vmatprep.subr.mxu0 0.0
  %1668 = vmatpush1.msra.mxu0 0.0
  %1669 = vmatprep.subr.mxu0 0.0
  %1670 = vmatpush1.msra.mxu0 0.0
  %1671 = vmatprep.subr.mxu0 0.0
  %1672 = vmatpush1.msra.mxu0 0.0
  %1673 = vmatprep.mubr.f32.mxu0 0.0
  %1674 = vmatmul.mubr.f32.gmra.mrb[0].mxu0 %v1602
  %v1675 = vpop.f32.mrb[0].mxu0
  %v1676 = vadd.f32 0.0, %v1675
  %v1677 = vpop.f32.mrb[0].mxu0
  %v1678 = vadd.f32 0.0, %v1677
  %1679 = vdwg.mxu0
  %1680 = vmatprep.subr.mxu0 0.0
  %1681 = vmatpush1.msra.mxu0 %v346
  %1682 = vmatprep.subr.mxu0 0.0
  %1683 = vmatpush1.msra.mxu0 %v349
  %1684 = vmatprep.subr.mxu0 0.0
  %1685 = vmatpush1.msra.mxu0 %v352
  %1686 = vmatprep.subr.mxu0 0.0
  %1687 = vmatpush1.msra.mxu0 %v355
  %1688 = vmatprep.subr.mxu0 0.0
  %1689 = vmatpush1.msra.mxu0 %v358
  %1690 = vmatprep.subr.mxu0 0.0
  %1691 = vmatpush1.msra.mxu0 %v361
  %1692 = vmatprep.subr.mxu0 0.0
  %1693 = vmatpush1.msra.mxu0 %v364
  %1694 = vmatprep.subr.mxu0 0.0
  %1695 = vmatpush1.msra.mxu0 %v367
  %1696 = vmatprep.subr.mxu0 0.0
  %1697 = vmatpush1.msra.mxu0 %v370
  %1698 = vmatprep.subr.mxu0 0.0
  %1699 = vmatpush1.msra.mxu0 %v373
  %1700 = vmatprep.subr.mxu0 0.0
  %1701 = vmatpush1.msra.mxu0 %v376
  %1702 = vmatprep.subr.mxu0 0.0
  %1703 = vmatpush1.msra.mxu0 %v379
  %1704 = vmatprep.subr.mxu0 0.0
  %1705 = vmatpush1.msra.mxu0 %v382
  %1706 = vmatprep.subr.mxu0 0.0
  %1707 = vmatpush1.msra.mxu0 %v385
  %1708 = vmatprep.subr.mxu0 0.0
  %1709 = vmatpush1.msra.mxu0 %v388
  %1710 = vmatprep.subr.mxu0 0.0
  %1711 = vmatpush1.msra.mxu0 %v391
  %1712 = vmatprep.subr.mxu0 0.0
  %1713 = vmatpush1.msra.mxu0 0.0
  %1714 = vmatprep.subr.mxu0 0.0
  %1715 = vmatpush1.msra.mxu0 0.0
  %1716 = vmatprep.subr.mxu0 0.0
  %1717 = vmatpush1.msra.mxu0 0.0
  %1718 = vmatprep.subr.mxu0 0.0
  %1719 = vmatpush1.msra.mxu0 0.0
  %1720 = vmatprep.subr.mxu0 0.0
  %1721 = vmatpush1.msra.mxu0 0.0
  %1722 = vmatprep.subr.mxu0 0.0
  %1723 = vmatpush1.msra.mxu0 0.0
  %1724 = vmatprep.subr.mxu0 0.0
  %1725 = vmatpush1.msra.mxu0 0.0
  %1726 = vmatprep.subr.mxu0 0.0
  %1727 = vmatpush1.msra.mxu0 0.0
  %1728 = vmatprep.subr.mxu0 0.0
  %1729 = vmatpush1.msra.mxu0 0.0
  %1730 = vmatprep.subr.mxu0 0.0
  %1731 = vmatpush1.msra.mxu0 0.0
  %1732 = vmatprep.subr.mxu0 0.0
  %1733 = vmatpush1.msra.mxu0 0.0
  %1734 = vmatprep.subr.mxu0 0.0
  %1735 = vmatpush1.msra.mxu0 0.0
  %1736 = vmatprep.subr.mxu0 0.0
  %1737 = vmatpush1.msra.mxu0 0.0
  %1738 = vmatprep.subr.mxu0 0.0
  %1739 = vmatpush1.msra.mxu0 0.0
  %1740 = vmatprep.subr.mxu0 0.0
  %1741 = vmatpush1.msra.mxu0 0.0
  %1742 = vmatprep.subr.mxu0 0.0
  %1743 = vmatpush1.msra.mxu0 0.0
  %1744 = vmatprep.mubr.f32.mxu0 0.0
  %1745 = vmatmul.mubr.f32.gmra.mrb[0].mxu0 %v1602
  %v1746 = vpop.f32.mrb[0].mxu0
  %v1747 = vadd.f32 0.0, %v1746
  %v1748 = vpop.f32.mrb[0].mxu0
  %1749 = vdwg.mxu0
  %v1750 = vadd.f32 %v1606, %v1676
  %v1751 = vxor.u32 %v1750, 2147483648
  %v1752 = vmul.f32 %v1751, 1.442695
  %v1753 = vpow.pop %v1752
  %v1754 = vadd.f32 %v1753, 1.0
  %v1755 = vrcp.pop %v1754
  %v1756 = vmul.f32 1.0, %v1755
  %v1757 = vadd.f32 %v1607, %v1678
  %v1758 = vxor.u32 %v1757, 2147483648
  %v1759 = vmul.f32 %v1758, 1.442695
  %v1760 = vpow.pop %v1759
  %v1761 = vadd.f32 %v1760, 1.0
  %v1762 = vrcp.pop %v1761
  %v1763 = vmul.f32 1.0, %v1762
  %v1764 = vadd.f32 %v1747, %v397
  %v1765 = vmul.f32 %v1756, %v1764
  %v1766 = vadd.f32 %v1608, %v1765
  %v1767 = vtanh.pop %v1766
  %v1768 = vsub.f32 %v1602, %v1767
  %v1769 = vmul.f32 %v1763, %v1768
  %v1770 = vadd.f32 %v1767, %v1769
  %1771 = vst [vmem:[#allocation2] sm:$0xff] %v1770
  %s1772 = scalar_lea.vmem %s6, 56
  %1773 = vst [vmem:[%s1772] sm:$0xff] %v1770
  // Predicated region
  $region30: #{gru_model_forward.2} parent=0 // pred_check
    _
  $region31: #{gru_model_forward.2} parent=0 // pred_check_branch
    %1775 = sbr.rel (0) target = $region33
  $region32: #{gru_model_forward.2} parent=0 // pred_region
    _
  $region33: #{gru_model_forward.2} parent=0 // pred_fallthru
    _
  // Predicated region
  $region34: #{gru_model_forward.2} parent=0 // pred_check
    _
  $region35: #{gru_model_forward.2} parent=0 // pred_check_branch
    %1777 = sbr.rel (0) target = $region37
  $region36: #{gru_model_forward.2} parent=0 // pred_region
    _
  $region37: #{gru_model_forward.2} parent=0 // pred_fallthru
    _

// kernel: gru_model_forward.2
$region0: #{gru_model_forward.2}
  #allocation0 [shape = 'u32[]', space=smem, size = 0x4, offset = 0x4, fixed_abs, tag = 'smem constant byte address 0x4 - core index']
  #allocation1 [shape = 'u32[144,128]{1,0:T(1,128)}', space=vmem, size = 0x12000, scoped, tag = 'internal scratch']
  #allocation2 [shape = 'f32[8,128]{1,0:T(8,128)}', space=vmem, size = 0x1000, scoped, tag = 'scratch operand']
  #allocation3 [shape = 'f32[64,384]{1,0:T(8,128)}', space=vmem, size = 0x18000, scoped, tag = 'scratch operand']
  %s0 = inlined_call_operand.vmem [shape: f32[8,8,128], index: 0, kind: input, shape index: {}]
  %s1 = inlined_call_operand.vmem [shape: f32[8,128], index: 1, kind: input, shape index: {}]
  %s2 = inlined_call_operand.vmem [shape: f32[128,384], index: 2, kind: input, shape index: {}]
  %s3 = inlined_call_operand.vmem [shape: f32[128,384], index: 3, kind: input, shape index: {}]
  %s4 = inlined_call_operand.vmem [shape: f32[1,384], index: 4, kind: input, shape index: {}]
  %s5 = inlined_call_operand.vmem [shape: f32[1,128], index: 5, kind: input, shape index: {}]
  %s6 = inlined_call_operand.vmem [shape: f32[8,8,128], index: 6, kind: output, shape index: {}]
  %s7 = sld [smem:[#allocation0]]
  $region38: #{gru_model_forward.2} parent=0
    _
  %s9 = ssub.s32 1, %s7
  %s10 = scalar_select 0, %s9, %s7
  // Predicated region
  $region2: #{gru_model_forward.2} parent=0 // pred_check
    _
  $region3: #{gru_model_forward.2} parent=0 // pred_check_branch
    %12 = sbr.rel (0) target = $region5
  $region4: #{gru_model_forward.2} parent=0 // pred_region
    _
  $region5: #{gru_model_forward.2} parent=0 // pred_fallthru
    _
  // Predicated region
  $region6: #{gru_model_forward.2} parent=0 // pred_check
    _
  $region7: #{gru_model_forward.2} parent=0 // pred_check_branch
    %14 = sbr.rel (0) target = $region9
  $region8: #{gru_model_forward.2} parent=0 // pred_region
    _
  $region9: #{gru_model_forward.2} parent=0 // pred_fallthru
    _
  // Predicated region
  $region10: #{gru_model_forward.2} parent=0 // pred_check
    _
  $region11: #{gru_model_forward.2} parent=0 // pred_check_branch
    %16 = sbr.rel (0) target = $region13
  $region12: #{gru_model_forward.2} parent=0 // pred_region
    _
  $region13: #{gru_model_forward.2} parent=0 // pred_fallthru
    _
  // Predicated region
  $region14: #{gru_model_forward.2} parent=0 // pred_check
    _
  $region15: #{gru_model_forward.2} parent=0 // pred_check_branch
    %18 = sbr.rel (0) target = $region17
  $region16: #{gru_model_forward.2} parent=0 // pred_region
    _
  $region17: #{gru_model_forward.2} parent=0 // pred_fallthru
    _
  // Predicated region
  $region18: #{gru_model_forward.2} parent=0 // pred_check
    _
  $region19: #{gru_model_forward.2} parent=0 // pred_check_branch
    %20 = sbr.rel (0) target = $region21
  $region20: #{gru_model_forward.2} parent=0 // pred_region
    _
  $region21: #{gru_model_forward.2} parent=0 // pred_fallthru
    _
  // Predicated region
  $region22: #{gru_model_forward.2} parent=0 // pred_check
    _
  $region23: #{gru_model_forward.2} parent=0 // pred_check_branch
    %22 = sbr.rel (0) target = $region25
  $region24: #{gru_model_forward.2} parent=0 // pred_region
    _
  $region25: #{gru_model_forward.2} parent=0 // pred_fallthru
    _
  %p23 = scmp.eq.s32.totalorder 0, 0
  // Predicated region
  $region26: #{gru_model_forward.2} parent=0 // pred_check
    %p24 = pneg %p23
  $region27: #{gru_model_forward.2} parent=0 // pred_check_branch
    %26 = sbr.rel (%p24) target = $region29
  $region28: #{gru_model_forward.2} parent=0 // pred_region
    %v27 = vld [vmem:[%s1] sm:$0xff]
    %28 = vst [vmem:[#allocation2] sm:$0xff] %v27
  $region29: #{gru_model_forward.2} parent=0 // pred_fallthru
    _
  %v29 = vld [vmem:[%s0] sm:$0xff]
  %v30 = vld [vmem:[%s0 + $0x8] sm:$0xff]
  %v31 = vld [vmem:[%s0 + $0x10] sm:$0xff]
  %v32 = vld [vmem:[%s0 + $0x18] sm:$0xff]
  %v33 = vld [vmem:[%s0 + $0x20] sm:$0xff]
  %v34 = vld [vmem:[%s0 + $0x28] sm:$0xff]
  %v35 = vld [vmem:[%s0 + $0x30] sm:$0xff]
  %v36 = vld [vmem:[%s0 + $0x38] sm:$0xff]
  %v37 = vld [vmem:[%s2] sm:$0xff]
  %v38 = vld [vmem:[%s2 + $0x8] sm:$0xff]
  %v39 = vld [vmem:[%s2 + $0x10] sm:$0xff]
  %v40 = vld [vmem:[%s2 + $0x18] sm:$0xff]
  %v41 = vld [vmem:[%s2 + $0x20] sm:$0xff]
  %v42 = vld [vmem:[%s2 + $0x28] sm:$0xff]
  %v43 = vld [vmem:[%s2 + $0x30] sm:$0xff]
  %v44 = vld [vmem:[%s2 + $0x38] sm:$0xff]
  %v45 = vld [vmem:[%s2 + $0x40] sm:$0xff]
  %v46 = vld [vmem:[%s2 + $0x48] sm:$0xff]
  %v47 = vld [vmem:[%s2 + $0x50] sm:$0xff]
  %v48 = vld [vmem:[%s2 + $0x58] sm:$0xff]
  %v49 = vld [vmem:[%s2 + $0x60] sm:$0xff]
  %v50 = vld [vmem:[%s2 + $0x68] sm:$0xff]
  %v51 = vld [vmem:[%s2 + $0x70] sm:$0xff]
  %v52 = vld [vmem:[%s2 + $0x78] sm:$0xff]
  %v53 = vld [vmem:[%s2 + $0x80] sm:$0xff]
  %v54 = vld [vmem:[%s2 + $0x88] sm:$0xff]
  %v55 = vld [vmem:[%s2 + $0x90] sm:$0xff]
  %v56 = vld [vmem:[%s2 + $0x98] sm:$0xff]
  %v57 = vld [vmem:[%s2 + $0xa0] sm:$0xff]
  %v58 = vld [vmem:[%s2 + $0xa8] sm:$0xff]
  %v59 = vld [vmem:[%s2 + $0xb0] sm:$0xff]
  %v60 = vld [vmem:[%s2 + $0xb8] sm:$0xff]
  %v61 = vld [vmem:[%s2 + $0xc0] sm:$0xff]
  %v62 = vld [vmem:[%s2 + $0xc8] sm:$0xff]
  %v63 = vld [vmem:[%s2 + $0xd0] sm:$0xff]
  %v64 = vld [vmem:[%s2 + $0xd8] sm:$0xff]
  %v65 = vld [vmem:[%s2 + $0xe0] sm:$0xff]
  %v66 = vld [vmem:[%s2 + $0xe8] sm:$0xff]
  %v67 = vld [vmem:[%s2 + $0xf0] sm:$0xff]
  %v68 = vld [vmem:[%s2 + $0xf8] sm:$0xff]
  %v69 = vld [vmem:[%s2 + $0x100] sm:$0xff]
  %v70 = vld [vmem:[%s2 + $0x108] sm:$0xff]
  %v71 = vld [vmem:[%s2 + $0x110] sm:$0xff]
  %v72 = vld [vmem:[%s2 + $0x118] sm:$0xff]
  %v73 = vld [vmem:[%s2 + $0x120] sm:$0xff]
  %v74 = vld [vmem:[%s2 + $0x128] sm:$0xff]
  %v75 = vld [vmem:[%s2 + $0x130] sm:$0xff]
  %v76 = vld [vmem:[%s2 + $0x138] sm:$0xff]
  %v77 = vld [vmem:[%s2 + $0x140] sm:$0xff]
  %v78 = vld [vmem:[%s2 + $0x148] sm:$0xff]
  %v79 = vld [vmem:[%s2 + $0x150] sm:$0xff]
  %v80 = vld [vmem:[%s2 + $0x158] sm:$0xff]
  %v81 = vld [vmem:[%s2 + $0x160] sm:$0xff]
  %v82 = vld [vmem:[%s2 + $0x168] sm:$0xff]
  %v83 = vld [vmem:[%s2 + $0x170] sm:$0xff]
  %v84 = vld [vmem:[%s2 + $0x178] sm:$0xff]
  %v85 = vld [vmem:[%s4] sm:$0x7]
  %v87 = vlaneseq
  %v88 = vshrl.u32 %v87, 7
  %v89 = vsub.s32 0, %v88
  %v90 = vrot.slane %v85, %v89
  %v91 = vlaneseq
  %v92 = vshrl.u32 %v91, 7
  %v93 = vsub.s32 1, %v92
  %v94 = vrot.slane %v85, %v93
  %v95 = vlaneseq
  %v96 = vshrl.u32 %v95, 7
  %v97 = vsub.s32 2, %v96
  %v98 = vrot.slane %v85, %v97
  %102 = vmatprep.subr.mxu0 %v38
  %103 = vmatpush1.msra.mxu0 %v37
  %104 = vmatprep.subr.mxu0 %v41
  %105 = vmatpush1.msra.mxu0 %v40
  %106 = vmatprep.subr.mxu0 %v44
  %107 = vmatpush1.msra.mxu0 %v43
  %108 = vmatprep.subr.mxu0 %v47
  %109 = vmatpush1.msra.mxu0 %v46
  %110 = vmatprep.subr.mxu0 %v50
  %111 = vmatpush1.msra.mxu0 %v49
  %112 = vmatprep.subr.mxu0 %v53
  %113 = vmatpush1.msra.mxu0 %v52
  %114 = vmatprep.subr.mxu0 %v56
  %115 = vmatpush1.msra.mxu0 %v55
  %116 = vmatprep.subr.mxu0 %v59
  %117 = vmatpush1.msra.mxu0 %v58
  %118 = vmatprep.subr.mxu0 %v62
  %119 = vmatpush1.msra.mxu0 %v61
  %120 = vmatprep.subr.mxu0 %v65
  %121 = vmatpush1.msra.mxu0 %v64
  %122 = vmatprep.subr.mxu0 %v68
  %123 = vmatpush1.msra.mxu0 %v67
  %124 = vmatprep.subr.mxu0 %v71
  %125 = vmatpush1.msra.mxu0 %v70
  %126 = vmatprep.subr.mxu0 %v74
  %127 = vmatpush1.msra.mxu0 %v73
  %128 = vmatprep.subr.mxu0 %v77
  %129 = vmatpush1.msra.mxu0 %v76
  %130 = vmatprep.subr.mxu0 %v80
  %131 = vmatpush1.msra.mxu0 %v79
  %132 = vmatprep.subr.mxu0 %v83
  %133 = vmatpush1.msra.mxu0 %v82
  %134 = vmatprep.subr.mxu0 0.0
  %135 = vmatpush1.msra.mxu0 0.0
  %136 = vmatprep.subr.mxu0 0.0
  %137 = vmatpush1.msra.mxu0 0.0
  %138 = vmatprep.subr.mxu0 0.0
  %139 = vmatpush1.msra.mxu0 0.0
  %140 = vmatprep.subr.mxu0 0.0
  %141 = vmatpush1.msra.mxu0 0.0
  %142 = vmatprep.subr.mxu0 0.0
  %143 = vmatpush1.msra.mxu0 0.0
  %144 = vmatprep.subr.mxu0 0.0
  %145 = vmatpush1.msra.mxu0 0.0
  %146 = vmatprep.subr.mxu0 0.0
  %147 = vmatpush1.msra.mxu0 0.0
  %148 = vmatprep.subr.mxu0 0.0
  %149 = vmatpush1.msra.mxu0 0.0
  %150 = vmatprep.subr.mxu0 0.0
  %151 = vmatpush1.msra.mxu0 0.0
  %152 = vmatprep.subr.mxu0 0.0
  %153 = vmatpush1.msra.mxu0 0.0
  %154 = vmatprep.subr.mxu0 0.0
  %155 = vmatpush1.msra.mxu0 0.0
  %156 = vmatprep.subr.mxu0 0.0
  %157 = vmatpush1.msra.mxu0 0.0
  %158 = vmatprep.subr.mxu0 0.0
  %159 = vmatpush1.msra.mxu0 0.0
  %160 = vmatprep.subr.mxu0 0.0
  %161 = vmatpush1.msra.mxu0 0.0
  %162 = vmatprep.subr.mxu0 0.0
  %163 = vmatpush1.msra.mxu0 0.0
  %164 = vmatprep.subr.mxu0 0.0
  %165 = vmatpush1.msra.mxu0 0.0
  %166 = vmatprep.mubr.f32.mxu0 0.0
  %167 = vmatmul.mubr.f32.gmra.mrb[0].mxu0 %v29
  %v168 = vpop.f32.mrb[0].mxu0
  %v169 = vadd.f32 %v90, %v168
  %v170 = vpop.f32.mrb[0].mxu0
  %v171 = vadd.f32 %v94, %v170
  %172 = vmatprep.mubr.f32.mxu0 0.0
  %173 = vmatmul.mubr.f32.gmra.mrb[0].mxu0 %v30
  %v174 = vpop.f32.mrb[0].mxu0
  %v175 = vadd.f32 %v90, %v174
  %v176 = vpop.f32.mrb[0].mxu0
  %v177 = vadd.f32 %v94, %v176
  %178 = vmatprep.mubr.f32.mxu0 0.0
  %179 = vmatmul.mubr.f32.gmra.mrb[0].mxu0 %v31
  %v180 = vpop.f32.mrb[0].mxu0
  %v181 = vadd.f32 %v90, %v180
  %v182 = vpop.f32.mrb[0].mxu0
  %v183 = vadd.f32 %v94, %v182
  %184 = vmatprep.mubr.f32.mxu0 0.0
  %185 = vmatmul.mubr.f32.gmra.mrb[0].mxu0 %v32
  %v186 = vpop.f32.mrb[0].mxu0
  %v187 = vadd.f32 %v90, %v186
  %v188 = vpop.f32.mrb[0].mxu0
  %v189 = vadd.f32 %v94, %v188
  %190 = vmatprep.mubr.f32.mxu0 0.0
  %191 = vmatmul.mubr.f32.gmra.mrb[0].mxu0 %v33
  %v192 = vpop.f32.mrb[0].mxu0
  %v193 = vadd.f32 %v90, %v192
  %v194 = vpop.f32.mrb[0].mxu0
  %v195 = vadd.f32 %v94, %v194
  %196 = vmatprep.mubr.f32.mxu0 0.0
  %197 = vmatmul.mubr.f32.gmra.mrb[0].mxu0 %v34
  %v198 = vpop.f32.mrb[0].mxu0
  %v199 = vadd.f32 %v90, %v198
  %v200 = vpop.f32.mrb[0].mxu0
  %v201 = vadd.f32 %v94, %v200
  %202 = vmatprep.mubr.f32.mxu0 0.0
  %203 = vmatmul.mubr.f32.gmra.mrb[0].mxu0 %v35
  %v204 = vpop.f32.mrb[0].mxu0
  %v205 = vadd.f32 %v90, %v204
  %v206 = vpop.f32.mrb[0].mxu0
  %v207 = vadd.f32 %v94, %v206
  %208 = vmatprep.mubr.f32.mxu0 0.0
  %209 = vmatmul.mubr.f32.gmra.mrb[0].mxu0 %v36
  %v210 = vpop.f32.mrb[0].mxu0
  %v211 = vadd.f32 %v90, %v210
  %v212 = vpop.f32.mrb[0].mxu0
  %v213 = vadd.f32 %v94, %v212
  %214 = vdwg.mxu0
  %215 = vmatprep.subr.mxu0 0.0
  %216 = vmatpush1.msra.mxu0 %v39
  %217 = vmatprep.subr.mxu0 0.0
  %218 = vmatpush1.msra.mxu0 %v42
  %219 = vmatprep.subr.mxu0 0.0
  %220 = vmatpush1.msra.mxu0 %v45
  %221 = vmatprep.subr.mxu0 0.0
  %222 = vmatpush1.msra.mxu0 %v48
  %223 = vmatprep.subr.mxu0 0.0
  %224 = vmatpush1.msra.mxu0 %v51
  %225 = vmatprep.subr.mxu0 0.0
  %226 = vmatpush1.msra.mxu0 %v54
  %227 = vmatprep.subr.mxu0 0.0
  %228 = vmatpush1.msra.mxu0 %v57
  %229 = vmatprep.subr.mxu0 0.0
  %230 = vmatpush1.msra.mxu0 %v60
  %231 = vmatprep.subr.mxu0 0.0
  %232 = vmatpush1.msra.mxu0 %v63
  %233 = vmatprep.subr.mxu0 0.0
  %234 = vmatpush1.msra.mxu0 %v66
  %235 = vmatprep.subr.mxu0 0.0
  %236 = vmatpush1.msra.mxu0 %v69
  %237 = vmatprep.subr.mxu0 0.0
  %238 = vmatpush1.msra.mxu0 %v72
  %239 = vmatprep.subr.mxu0 0.0
  %240 = vmatpush1.msra.mxu0 %v75
  %241 = vmatprep.subr.mxu0 0.0
  %242 = vmatpush1.msra.mxu0 %v78
  %243 = vmatprep.subr.mxu0 0.0
  %244 = vmatpush1.msra.mxu0 %v81
  %245 = vmatprep.subr.mxu0 0.0
  %246 = vmatpush1.msra.mxu0 %v84
  %247 = vmatprep.subr.mxu0 0.0
  %248 = vmatpush1.msra.mxu0 0.0
  %249 = vmatprep.subr.mxu0 0.0
  %250 = vmatpush1.msra.mxu0 0.0
  %251 = vmatprep.subr.mxu0 0.0
  %252 = vmatpush1.msra.mxu0 0.0
  %253 = vmatprep.subr.mxu0 0.0
  %254 = vmatpush1.msra.mxu0 0.0
  %255 = vmatprep.subr.mxu0 0.0
  %256 = vmatpush1.msra.mxu0 0.0
  %257 = vmatprep.subr.mxu0 0.0
  %258 = vmatpush1.msra.mxu0 0.0
  %259 = vmatprep.subr.mxu0 0.0
  %260 = vmatpush1.msra.mxu0 0.0
  %261 = vmatprep.subr.mxu0 0.0
  %262 = vmatpush1.msra.mxu0 0.0
  %263 = vmatprep.subr.mxu0 0.0
  %264 = vmatpush1.msra.mxu0 0.0
  %265 = vmatprep.subr.mxu0 0.0
  %266 = vmatpush1.msra.mxu0 0.0
  %267 = vmatprep.subr.mxu0 0.0
  %268 = vmatpush1.msra.mxu0 0.0
  %269 = vmatprep.subr.mxu0 0.0
  %270 = vmatpush1.msra.mxu0 0.0
  %271 = vmatprep.subr.mxu0 0.0
  %272 = vmatpush1.msra.mxu0 0.0
  %273 = vmatprep.subr.mxu0 0.0
  %274 = vmatpush1.msra.mxu0 0.0
  %275 = vmatprep.subr.mxu0 0.0
  %276 = vmatpush1.msra.mxu0 0.0
  %277 = vmatprep.subr.mxu0 0.0
  %278 = vmatpush1.msra.mxu0 0.0
  %279 = vmatprep.mubr.f32.mxu0 0.0
  %280 = vmatmul.mubr.f32.gmra.mrb[0].mxu0 %v29
  %v281 = vpop.f32.mrb[0].mxu0
  %v282 = vadd.f32 %v98, %v281
  %v283 = vpop.f32.mrb[0].mxu0
  %284 = vmatprep.mubr.f32.mxu0 0.0
  %285 = vmatmul.mubr.f32.gmra.mrb[0].mxu0 %v30
  %v286 = vpop.f32.mrb[0].mxu0
  %v287 = vadd.f32 %v98, %v286
  %v288 = vpop.f32.mrb[0].mxu0
  %289 = vmatprep.mubr.f32.mxu0 0.0
  %290 = vmatmul.mubr.f32.gmra.mrb[0].mxu0 %v31
  %v291 = vpop.f32.mrb[0].mxu0
  %v292 = vadd.f32 %v98, %v291
  %v293 = vpop.f32.mrb[0].mxu0
  %294 = vmatprep.mubr.f32.mxu0 0.0
  %295 = vmatmul.mubr.f32.gmra.mrb[0].mxu0 %v32
  %v296 = vpop.f32.mrb[0].mxu0
  %v297 = vadd.f32 %v98, %v296
  %v298 = vpop.f32.mrb[0].mxu0
  %299 = vmatprep.mubr.f32.mxu0 0.0
  %300 = vmatmul.mubr.f32.gmra.mrb[0].mxu0 %v33
  %v301 = vpop.f32.mrb[0].mxu0
  %v302 = vadd.f32 %v98, %v301
  %v303 = vpop.f32.mrb[0].mxu0
  %304 = vmatprep.mubr.f32.mxu0 0.0
  %305 = vmatmul.mubr.f32.gmra.mrb[0].mxu0 %v34
  %v306 = vpop.f32.mrb[0].mxu0
  %v307 = vadd.f32 %v98, %v306
  %v308 = vpop.f32.mrb[0].mxu0
  %309 = vmatprep.mubr.f32.mxu0 0.0
  %310 = vmatmul.mubr.f32.gmra.mrb[0].mxu0 %v35
  %v311 = vpop.f32.mrb[0].mxu0
  %v312 = vadd.f32 %v98, %v311
  %v313 = vpop.f32.mrb[0].mxu0
  %314 = vmatprep.mubr.f32.mxu0 0.0
  %315 = vmatmul.mubr.f32.gmra.mrb[0].mxu0 %v36
  %v316 = vpop.f32.mrb[0].mxu0
  %v317 = vadd.f32 %v98, %v316
  %v318 = vpop.f32.mrb[0].mxu0
  %319 = vdwg.mxu0
  %320 = vst [vmem:[#allocation3] sm:$0xff] %v169
  %321 = vst [vmem:[#allocation3 + $0x8] sm:$0xff] %v171
  %322 = vst [vmem:[#allocation3 + $0x10] sm:$0xff] %v282
  %323 = vst [vmem:[#allocation3 + $0x18] sm:$0xff] %v175
  %324 = vst [vmem:[#allocation3 + $0x20] sm:$0xff] %v177
  %325 = vst [vmem:[#allocation3 + $0x28] sm:$0xff] %v287
  %326 = vst [vmem:[#allocation3 + $0x30] sm:$0xff] %v181
  %327 = vst [vmem:[#allocation3 + $0x38] sm:$0xff] %v183
  %328 = vst [vmem:[#allocation3 + $0x40] sm:$0xff] %v292
  %329 = vst [vmem:[#allocation3 + $0x48] sm:$0xff] %v187
  %330 = vst [vmem:[#allocation3 + $0x50] sm:$0xff] %v189
  %331 = vst [vmem:[#allocation3 + $0x58] sm:$0xff] %v297
  %332 = vst [vmem:[#allocation3 + $0x60] sm:$0xff] %v193
  %333 = vst [vmem:[#allocation3 + $0x68] sm:$0xff] %v195
  %334 = vst [vmem:[#allocation3 + $0x70] sm:$0xff] %v302
  %335 = vst [vmem:[#allocation3 + $0x78] sm:$0xff] %v199
  %336 = vst [vmem:[#allocation3 + $0x80] sm:$0xff] %v201
  %337 = vst [vmem:[#allocation3 + $0x88] sm:$0xff] %v307
  %338 = vst [vmem:[#allocation3 + $0x90] sm:$0xff] %v205
  %339 = vst [vmem:[#allocation3 + $0x98] sm:$0xff] %v207
  %340 = vst [vmem:[#allocation3 + $0xa0] sm:$0xff] %v312
  %341 = vst [vmem:[#allocation3 + $0xa8] sm:$0xff] %v211
  %342 = vst [vmem:[#allocation3 + $0xb0] sm:$0xff] %v213
  %343 = vst [vmem:[#allocation3 + $0xb8] sm:$0xff] %v317
  %v344 = vld [vmem:[%s3] sm:$0xff]
  %v345 = vld [vmem:[%s3 + $0x8] sm:$0xff]
  %v346 = vld [vmem:[%s3 + $0x10] sm:$0xff]
  %v347 = vld [vmem:[%s3 + $0x18] sm:$0xff]
  %v348 = vld [vmem:[%s3 + $0x20] sm:$0xff]
  %v349 = vld [vmem:[%s3 + $0x28] sm:$0xff]
  %v350 = vld [vmem:[%s3 + $0x30] sm:$0xff]
  %v351 = vld [vmem:[%s3 + $0x38] sm:$0xff]
  %v352 = vld [vmem:[%s3 + $0x40] sm:$0xff]
  %v353 = vld [vmem:[%s3 + $0x48] sm:$0xff]
  %v354 = vld [vmem:[%s3 + $0x50] sm:$0xff]
  %v355 = vld [vmem:[%s3 + $0x58] sm:$0xff]
  %v356 = vld [vmem:[%s3 + $0x60] sm:$0xff]
  %v357 = vld [vmem:[%s3 + $0x68] sm:$0xff]
  %v358 = vld [vmem:[%s3 + $0x70] sm:$0xff]
  %v359 = vld [vmem:[%s3 + $0x78] sm:$0xff]
  %v360 = vld [vmem:[%s3 + $0x80] sm:$0xff]
  %v361 = vld [vmem:[%s3 + $0x88] sm:$0xff]
  %v362 = vld [vmem:[%s3 + $0x90] sm:$0xff]
  %v363 = vld [vmem:[%s3 + $0x98] sm:$0xff]
  %v364 = vld [vmem:[%s3 + $0xa0] sm:$0xff]
  %v365 = vld [vmem:[%s3 + $0xa8] sm:$0xff]
  %v366 = vld [vmem:[%s3 + $0xb0] sm:$0xff]
  %v367 = vld [vmem:[%s3 + $0xb8] sm:$0xff]
  %v368 = vld [vmem:[%s3 + $0xc0] sm:$0xff]
  %v369 = vld [vmem:[%s3 + $0xc8] sm:$0xff]
  %v370 = vld [vmem:[%s3 + $0xd0] sm:$0xff]
  %v371 = vld [vmem:[%s3 + $0xd8] sm:$0xff]
  %v372 = vld [vmem:[%s3 + $0xe0] sm:$0xff]
  %v373 = vld [vmem:[%s3 + $0xe8] sm:$0xff]
  %v374 = vld [vmem:[%s3 + $0xf0] sm:$0xff]
  %v375 = vld [vmem:[%s3 + $0xf8] sm:$0xff]
  %v376 = vld [vmem:[%s3 + $0x100] sm:$0xff]
  %v377 = vld [vmem:[%s3 + $0x108] sm:$0xff]
  %v378 = vld [vmem:[%s3 + $0x110] sm:$0xff]
  %v379 = vld [vmem:[%s3 + $0x118] sm:$0xff]
  %v380 = vld [vmem:[%s3 + $0x120] sm:$0xff]
  %v381 = vld [vmem:[%s3 + $0x128] sm:$0xff]
  %v382 = vld [vmem:[%s3 + $0x130] sm:$0xff]
  %v383 = vld [vmem:[%s3 + $0x138] sm:$0xff]
  %v384 = vld [vmem:[%s3 + $0x140] sm:$0xff]
  %v385 = vld [vmem:[%s3 + $0x148] sm:$0xff]
  %v386 = vld [vmem:[%s3 + $0x150] sm:$0xff]
  %v387 = vld [vmem:[%s3 + $0x158] sm:$0xff]
  %v388 = vld [vmem:[%s3 + $0x160] sm:$0xff]
  %v389 = vld [vmem:[%s3 + $0x168] sm:$0xff]
  %v390 = vld [vmem:[%s3 + $0x170] sm:$0xff]
  %v391 = vld [vmem:[%s3 + $0x178] sm:$0xff]
  %v392 = vld [vmem:[%s5] sm:$0x1]
  %v394 = vlaneseq
  %v395 = vshrl.u32 %v394, 7
  %v396 = vsub.s32 0, %v395
  %v397 = vrot.slane %v392, %v396
  %v399 = vld [vmem:[#allocation2] sm:$0xff]
  %s400 = smul.u32 0, 3
  %s401 = smul.addr %s400, 8
  %s402 = scalar_lea.vmem [#allocation3], %s401
  %v403 = vld [vmem:[%s402] sm:$0xff]
  %v404 = vld [vmem:[%s402 + $0x8] sm:$0xff]
  %v405 = vld [vmem:[%s402 + $0x10] sm:$0xff]
  %406 = vmatprep.subr.mxu0 %v345
  %407 = vmatpush1.msra.mxu0 %v344
  %408 = vmatprep.subr.mxu0 %v348
  %409 = vmatpush1.msra.mxu0 %v347
  %410 = vmatprep.subr.mxu0 %v351
  %411 = vmatpush1.msra.mxu0 %v350
  %412 = vmatprep.subr.mxu0 %v354
  %413 = vmatpush1.msra.mxu0 %v353
  %414 = vmatprep.subr.mxu0 %v357
  %415 = vmatpush1.msra.mxu0 %v356
  %416 = vmatprep.subr.mxu0 %v360
  %417 = vmatpush1.msra.mxu0 %v359
  %418 = vmatprep.subr.mxu0 %v363
  %419 = vmatpush1.msra.mxu0 %v362
  %420 = vmatprep.subr.mxu0 %v366
  %421 = vmatpush1.msra.mxu0 %v365
  %422 = vmatprep.subr.mxu0 %v369
  %423 = vmatpush1.msra.mxu0 %v368
  %424 = vmatprep.subr.mxu0 %v372
  %425 = vmatpush1.msra.mxu0 %v371
  %426 = vmatprep.subr.mxu0 %v375
  %427 = vmatpush1.msra.mxu0 %v374
  %428 = vmatprep.subr.mxu0 %v378
  %429 = vmatpush1.msra.mxu0 %v377
  %430 = vmatprep.subr.mxu0 %v381
  %431 = vmatpush1.msra.mxu0 %v380
  %432 = vmatprep.subr.mxu0 %v384
  %433 = vmatpush1.msra.mxu0 %v383
  %434 = vmatprep.subr.mxu0 %v387
  %435 = vmatpush1.msra.mxu0 %v386
  %436 = vmatprep.subr.mxu0 %v390
  %437 = vmatpush1.msra.mxu0 %v389
  %438 = vmatprep.subr.mxu0 0.0
  %439 = vmatpush1.msra.mxu0 0.0
  %440 = vmatprep.subr.mxu0 0.0
  %441 = vmatpush1.msra.mxu0 0.0
  %442 = vmatprep.subr.mxu0 0.0
  %443 = vmatpush1.msra.mxu0 0.0
  %444 = vmatprep.subr.mxu0 0.0
  %445 = vmatpush1.msra.mxu0 0.0
  %446 = vmatprep.subr.mxu0 0.0
  %447 = vmatpush1.msra.mxu0 0.0
  %448 = vmatprep.subr.mxu0 0.0
  %449 = vmatpush1.msra.mxu0 0.0
  %450 = vmatprep.subr.mxu0 0.0
  %451 = vmatpush1.msra.mxu0 0.0
  %452 = vmatprep.subr.mxu0 0.0
  %453 = vmatpush1.msra.mxu0 0.0
  %454 = vmatprep.subr.mxu0 0.0
  %455 = vmatpush1.msra.mxu0 0.0
  %456 = vmatprep.subr.mxu0 0.0
  %457 = vmatpush1.msra.mxu0 0.0
  %458 = vmatprep.subr.mxu0 0.0
  %459 = vmatpush1.msra.mxu0 0.0
  %460 = vmatprep.subr.mxu0 0.0
  %461 = vmatpush1.msra.mxu0 0.0
  %462 = vmatprep.subr.mxu0 0.0
  %463 = vmatpush1.msra.mxu0 0.0
  %464 = vmatprep.subr.mxu0 0.0
  %465 = vmatpush1.msra.mxu0 0.0
  %466 = vmatprep.subr.mxu0 0.0
  %467 = vmatpush1.msra.mxu0 0.0
  %468 = vmatprep.subr.mxu0 0.0
  %469 = vmatpush1.msra.mxu0 0.0
  %470 = vmatprep.mubr.f32.mxu0 0.0
  %471 = vmatmul.mubr.f32.gmra.mrb[0].mxu0 %v399
  %v472 = vpop.f32.mrb[0].mxu0
  %v473 = vadd.f32 0.0, %v472
  %v474 = vpop.f32.mrb[0].mxu0
  %v475 = vadd.f32 0.0, %v474
  %476 = vdwg.mxu0
  %477 = vmatprep.subr.mxu0 0.0
  %478 = vmatpush1.msra.mxu0 %v346
  %479 = vmatprep.subr.mxu0 0.0
  %480 = vmatpush1.msra.mxu0 %v349
  %481 = vmatprep.subr.mxu0 0.0
  %482 = vmatpush1.msra.mxu0 %v352
  %483 = vmatprep.subr.mxu0 0.0
  %484 = vmatpush1.msra.mxu0 %v355
  %485 = vmatprep.subr.mxu0 0.0
  %486 = vmatpush1.msra.mxu0 %v358
  %487 = vmatprep.subr.mxu0 0.0
  %488 = vmatpush1.msra.mxu0 %v361
  %489 = vmatprep.subr.mxu0 0.0
  %490 = vmatpush1.msra.mxu0 %v364
  %491 = vmatprep.subr.mxu0 0.0
  %492 = vmatpush1.msra.mxu0 %v367
  %493 = vmatprep.subr.mxu0 0.0
  %494 = vmatpush1.msra.mxu0 %v370
  %495 = vmatprep.subr.mxu0 0.0
  %496 = vmatpush1.msra.mxu0 %v373
  %497 = vmatprep.subr.mxu0 0.0
  %498 = vmatpush1.msra.mxu0 %v376
  %499 = vmatprep.subr.mxu0 0.0
  %500 = vmatpush1.msra.mxu0 %v379
  %501 = vmatprep.subr.mxu0 0.0
  %502 = vmatpush1.msra.mxu0 %v382
  %503 = vmatprep.subr.mxu0 0.0
  %504 = vmatpush1.msra.mxu0 %v385
  %505 = vmatprep.subr.mxu0 0.0
  %506 = vmatpush1.msra.mxu0 %v388
  %507 = vmatprep.subr.mxu0 0.0
  %508 = vmatpush1.msra.mxu0 %v391
  %509 = vmatprep.subr.mxu0 0.0
  %510 = vmatpush1.msra.mxu0 0.0
  %511 = vmatprep.subr.mxu0 0.0
  %512 = vmatpush1.msra.mxu0 0.0
  %513 = vmatprep.subr.mxu0 0.0
  %514 = vmatpush1.msra.mxu0 0.0
  %515 = vmatprep.subr.mxu0 0.0
  %516 = vmatpush1.msra.mxu0 0.0
  %517 = vmatprep.subr.mxu0 0.0
  %518 = vmatpush1.msra.mxu0 0.0
  %519 = vmatprep.subr.mxu0 0.0
  %520 = vmatpush1.msra.mxu0 0.0
  %521 = vmatprep.subr.mxu0 0.0
  %522 = vmatpush1.msra.mxu0 0.0
  %523 = vmatprep.subr.mxu0 0.0
  %524 = vmatpush1.msra.mxu0 0.0
  %525 = vmatprep.subr.mxu0 0.0
  %526 = vmatpush1.msra.mxu0 0.0
  %527 = vmatprep.subr.mxu0 0.0
  %528 = vmatpush1.msra.mxu0 0.0
  %529 = vmatprep.subr.mxu0 0.0
  %530 = vmatpush1.msra.mxu0 0.0
  %531 = vmatprep.subr.mxu0 0.0
  %532 = vmatpush1.msra.mxu0 0.0
  %533 = vmatprep.subr.mxu0 0.0
  %534 = vmatpush1.msra.mxu0 0.0
  %535 = vmatprep.subr.mxu0 0.0
  %536 = vmatpush1.msra.mxu0 0.0
  %537 = vmatprep.subr.mxu0 0.0
  %538 = vmatpush1.msra.mxu0 0.0
  %539 = vmatprep.subr.mxu0 0.0
  %540 = vmatpush1.msra.mxu0 0.0
  %541 = vmatprep.mubr.f32.mxu0 0.0
  %542 = vmatmul.mubr.f32.gmra.mrb[0].mxu0 %v399
  %v543 = vpop.f32.mrb[0].mxu0
  %v544 = vadd.f32 0.0, %v543
  %v545 = vpop.f32.mrb[0].mxu0
  %546 = vdwg.mxu0
  %v547 = vadd.f32 %v403, %v473
  %v548 = vxor.u32 %v547, 2147483648
  %v549 = vmul.f32 %v548, 1.442695
  %v550 = vpow.pop %v549
  %v551 = vadd.f32 %v550, 1.0
  %v552 = vrcp.pop %v551
  %v553 = vmul.f32 1.0, %v552
  %v554 = vadd.f32 %v404, %v475
  %v555 = vxor.u32 %v554, 2147483648
  %v556 = vmul.f32 %v555, 1.442695
  %v557 = vpow.pop %v556
  %v558 = vadd.f32 %v557, 1.0
  %v559 = vrcp.pop %v558
  %v560 = vmul.f32 1.0, %v559
  %v561 = vadd.f32 %v544, %v397
  %v562 = vmul.f32 %v553, %v561
  %v563 = vadd.f32 %v405, %v562
  %v564 = vtanh.pop %v563
  %v565 = vsub.f32 %v399, %v564
  %v566 = vmul.f32 %v560, %v565
  %v567 = vadd.f32 %v564, %v566
  %568 = vst [vmem:[#allocation2] sm:$0xff] %v567
  %569 = vst [vmem:[%s6] sm:$0xff] %v567
  %v570 = vld [vmem:[#allocation2] sm:$0xff]
  %s571 = smul.u32 1, 3
  %s572 = smul.addr %s571, 8
  %s573 = scalar_lea.vmem [#allocation3], %s572
  %v574 = vld [vmem:[%s573] sm:$0xff]
  %v575 = vld [vmem:[%s573 + $0x8] sm:$0xff]
  %v576 = vld [vmem:[%s573 + $0x10] sm:$0xff]
  %577 = vmatprep.subr.mxu0 %v345
  %578 = vmatpush1.msra.mxu0 %v344
  %579 = vmatprep.subr.mxu0 %v348
  %580 = vmatpush1.msra.mxu0 %v347
  %581 = vmatprep.subr.mxu0 %v351
  %582 = vmatpush1.msra.mxu0 %v350
  %583 = vmatprep.subr.mxu0 %v354
  %584 = vmatpush1.msra.mxu0 %v353
  %585 = vmatprep.subr.mxu0 %v357
  %586 = vmatpush1.msra.mxu0 %v356
  %587 = vmatprep.subr.mxu0 %v360
  %588 = vmatpush1.msra.mxu0 %v359
  %589 = vmatprep.subr.mxu0 %v363
  %590 = vmatpush1.msra.mxu0 %v362
  %591 = vmatprep.subr.mxu0 %v366
  %592 = vmatpush1.msra.mxu0 %v365
  %593 = vmatprep.subr.mxu0 %v369
  %594 = vmatpush1.msra.mxu0 %v368
  %595 = vmatprep.subr.mxu0 %v372
  %596 = vmatpush1.msra.mxu0 %v371
  %597 = vmatprep.subr.mxu0 %v375
  %598 = vmatpush1.msra.mxu0 %v374
  %599 = vmatprep.subr.mxu0 %v378
  %600 = vmatpush1.msra.mxu0 %v377
  %601 = vmatprep.subr.mxu0 %v381
  %602 = vmatpush1.msra.mxu0 %v380
  %603 = vmatprep.subr.mxu0 %v384
  %604 = vmatpush1.msra.mxu0 %v383
  %605 = vmatprep.subr.mxu0 %v387
  %606 = vmatpush1.msra.mxu0 %v386
  %607 = vmatprep.subr.mxu0 %v390
  %608 = vmatpush1.msra.mxu0 %v389
  %609 = vmatprep.subr.mxu0 0.0
  %610 = vmatpush1.msra.mxu0 0.0
  %611 = vmatprep.subr.mxu0 0.0
  %612 = vmatpush1.msra.mxu0 0.0
  %613 = vmatprep.subr.mxu0 0.0
  %614 = vmatpush1.msra.mxu0 0.0
  %615 = vmatprep.subr.mxu0 0.0
  %616 = vmatpush1.msra.mxu0 0.0
  %617 = vmatprep.subr.mxu0 0.0
  %618 = vmatpush1.msra.mxu0 0.0
  %619 = vmatprep.subr.mxu0 0.0
  %620 = vmatpush1.msra.mxu0 0.0
  %621 = vmatprep.subr.mxu0 0.0
  %622 = vmatpush1.msra.mxu0 0.0
  %623 = vmatprep.subr.mxu0 0.0
  %624 = vmatpush1.msra.mxu0 0.0
  %625 = vmatprep.subr.mxu0 0.0
  %626 = vmatpush1.msra.mxu0 0.0
  %627 = vmatprep.subr.mxu0 0.0
  %628 = vmatpush1.msra.mxu0 0.0
  %629 = vmatprep.subr.mxu0 0.0
  %630 = vmatpush1.msra.mxu0 0.0
  %631 = vmatprep.subr.mxu0 0.0
  %632 = vmatpush1.msra.mxu0 0.0
  %633 = vmatprep.subr.mxu0 0.0
  %634 = vmatpush1.msra.mxu0 0.0
  %635 = vmatprep.subr.mxu0 0.0
  %636 = vmatpush1.msra.mxu0 0.0
  %637 = vmatprep.subr.mxu0 0.0
  %638 = vmatpush1.msra.mxu0 0.0
  %639 = vmatprep.subr.mxu0 0.0
  %640 = vmatpush1.msra.mxu0 0.0
  %641 = vmatprep.mubr.f32.mxu0 0.0
  %642 = vmatmul.mubr.f32.gmra.mrb[0].mxu0 %v570
  %v643 = vpop.f32.mrb[0].mxu0
  %v644 = vadd.f32 0.0, %v643
  %v645 = vpop.f32.mrb[0].mxu0
  %v646 = vadd.f32 0.0, %v645
  %647 = vdwg.mxu0
  %648 = vmatprep.subr.mxu0 0.0
  %649 = vmatpush1.msra.mxu0 %v346
  %650 = vmatprep.subr.mxu0 0.0
  %651 = vmatpush1.msra.mxu0 %v349
  %652 = vmatprep.subr.mxu0 0.0
  %653 = vmatpush1.msra.mxu0 %v352
  %654 = vmatprep.subr.mxu0 0.0
  %655 = vmatpush1.msra.mxu0 %v355
  %656 = vmatprep.subr.mxu0 0.0
  %657 = vmatpush1.msra.mxu0 %v358
  %658 = vmatprep.subr.mxu0 0.0
  %659 = vmatpush1.msra.mxu0 %v361
  %660 = vmatprep.subr.mxu0 0.0
  %661 = vmatpush1.msra.mxu0 %v364
  %662 = vmatprep.subr.mxu0 0.0
  %663 = vmatpush1.msra.mxu0 %v367
  %664 = vmatprep.subr.mxu0 0.0
  %665 = vmatpush1.msra.mxu0 %v370
  %666 = vmatprep.subr.mxu0 0.0
  %667 = vmatpush1.msra.mxu0 %v373
  %668 = vmatprep.subr.mxu0 0.0
  %669 = vmatpush1.msra.mxu0 %v376
  %670 = vmatprep.subr.mxu0 0.0
  %671 = vmatpush1.msra.mxu0 %v379
  %672 = vmatprep.subr.mxu0 0.0
  %673 = vmatpush1.msra.mxu0 %v382
  %674 = vmatprep.subr.mxu0 0.0
  %675 = vmatpush1.msra.mxu0 %v385
  %676 = vmatprep.subr.mxu0 0.0
  %677 = vmatpush1.msra.mxu0 %v388
  %678 = vmatprep.subr.mxu0 0.0
  %679 = vmatpush1.msra.mxu0 %v391
  %680 = vmatprep.subr.mxu0 0.0
  %681 = vmatpush1.msra.mxu0 0.0
  %682 = vmatprep.subr.mxu0 0.0
  %683 = vmatpush1.msra.mxu0 0.0
  %684 = vmatprep.subr.mxu0 0.0
  %685 = vmatpush1.msra.mxu0 0.0
  %686 = vmatprep.subr.mxu0 0.0
  %687 = vmatpush1.msra.mxu0 0.0
  %688 = vmatprep.subr.mxu0 0.0
  %689 = vmatpush1.msra.mxu0 0.0
  %690 = vmatprep.subr.mxu0 0.0
  %691 = vmatpush1.msra.mxu0 0.0
  %692 = vmatprep.subr.mxu0 0.0
  %693 = vmatpush1.msra.mxu0 0.0
  %694 = vmatprep.subr.mxu0 0.0
  %695 = vmatpush1.msra.mxu0 0.0
  %696 = vmatprep.subr.mxu0 0.0
  %697 = vmatpush1.msra.mxu0 0.0
  %698 = vmatprep.subr.mxu0 0.0
  %699 = vmatpush1.msra.mxu0 0.0
  %700 = vmatprep.subr.mxu0 0.0
  %701 = vmatpush1.msra.mxu0 0.0
  %702 = vmatprep.subr.mxu0 0.0
  %703 = vmatpush1.msra.mxu0 0.0
  %704 = vmatprep.subr.mxu0 0.0
  %705 = vmatpush1.msra.mxu0 0.0
  %706 = vmatprep.subr.mxu0 0.0
  %707 = vmatpush1.msra.mxu0 0.0
  %708 = vmatprep.subr.mxu0 0.0
  %709 = vmatpush1.msra.mxu0 0.0
  %710 = vmatprep.subr.mxu0 0.0
  %711 = vmatpush1.msra.mxu0 0.0
  %712 = vmatprep.mubr.f32.mxu0 0.0
  %713 = vmatmul.mubr.f32.gmra.mrb[0].mxu0 %v570
  %v714 = vpop.f32.mrb[0].mxu0
  %v715 = vadd.f32 0.0, %v714
  %v716 = vpop.f32.mrb[0].mxu0
  %717 = vdwg.mxu0
  %v718 = vadd.f32 %v574, %v644
  %v719 = vxor.u32 %v718, 2147483648
  %v720 = vmul.f32 %v719, 1.442695
  %v721 = vpow.pop %v720
  %v722 = vadd.f32 %v721, 1.0
  %v723 = vrcp.pop %v722
  %v724 = vmul.f32 1.0, %v723
  %v725 = vadd.f32 %v575, %v646
  %v726 = vxor.u32 %v725, 2147483648
  %v727 = vmul.f32 %v726, 1.442695
  %v728 = vpow.pop %v727
  %v729 = vadd.f32 %v728, 1.0
  %v730 = vrcp.pop %v729
  %v731 = vmul.f32 1.0, %v730
  %v732 = vadd.f32 %v715, %v397
  %v733 = vmul.f32 %v724, %v732
  %v734 = vadd.f32 %v576, %v733
  %v735 = vtanh.pop %v734
  %v736 = vsub.f32 %v570, %v735
  %v737 = vmul.f32 %v731, %v736
  %v738 = vadd.f32 %v735, %v737
  %739 = vst [vmem:[#allocation2] sm:$0xff] %v738
  %s740 = scalar_lea.vmem %s6, 8
  %741 = vst [vmem:[%s740] sm:$0xff] %v738
  %v742 = vld [vmem:[#allocation2] sm:$0xff]
  %s743 = smul.u32 2, 3
  %s744 = smul.addr %s743, 8
  %s745 = scalar_lea.vmem [#allocation3], %s744
  %v746 = vld [vmem:[%s745] sm:$0xff]
  %v747 = vld [vmem:[%s745 + $0x8] sm:$0xff]
  %v748 = vld [vmem:[%s745 + $0x10] sm:$0xff]
  %749 = vmatprep.subr.mxu0 %v345
  %750 = vmatpush1.msra.mxu0 %v344
  %751 = vmatprep.subr.mxu0 %v348
  %752 = vmatpush1.msra.mxu0 %v347
  %753 = vmatprep.subr.mxu0 %v351
  %754 = vmatpush1.msra.mxu0 %v350
  %755 = vmatprep.subr.mxu0 %v354
  %756 = vmatpush1.msra.mxu0 %v353
  %757 = vmatprep.subr.mxu0 %v357
  %758 = vmatpush1.msra.mxu0 %v356
  %759 = vmatprep.subr.mxu0 %v360
  %760 = vmatpush1.msra.mxu0 %v359
  %761 = vmatprep.subr.mxu0 %v363
  %762 = vmatpush1.msra.mxu0 %v362
  %763 = vmatprep.subr.mxu0 %v366
  %764 = vmatpush1.msra.mxu0 %v365
  %765 = vmatprep.subr.mxu0 %v369
  %766 = vmatpush1.msra.mxu0 %v368
  %767 = vmatprep.subr.mxu0 %v372
  %768 = vmatpush1.msra.mxu0 %v371
  %769 = vmatprep.subr.mxu0 %v375
  %770 = vmatpush1.msra.mxu0 %v374
  %771 = vmatprep.subr.mxu0 %v378
  %772 = vmatpush1.msra.mxu0 %v377
  %773 = vmatprep.subr.mxu0 %v381
  %774 = vmatpush1.msra.mxu0 %v380
  %775 = vmatprep.subr.mxu0 %v384
  %776 = vmatpush1.msra.mxu0 %v383
  %777 = vmatprep.subr.mxu0 %v387
  %778 = vmatpush1.msra.mxu0 %v386
  %779 = vmatprep.subr.mxu0 %v390
  %780 = vmatpush1.msra.mxu0 %v389
  %781 = vmatprep.subr.mxu0 0.0
  %782 = vmatpush1.msra.mxu0 0.0
  %783 = vmatprep.subr.mxu0 0.0
  %784 = vmatpush1.msra.mxu0 0.0
  %785 = vmatprep.subr.mxu0 0.0
  %786 = vmatpush1.msra.mxu0 0.0
  %787 = vmatprep.subr.mxu0 0.0
  %788 = vmatpush1.msra.mxu0 0.0
  %789 = vmatprep.subr.mxu0 0.0
  %790 = vmatpush1.msra.mxu0 0.0
  %791 = vmatprep.subr.mxu0 0.0
  %792 = vmatpush1.msra.mxu0 0.0
  %793 = vmatprep.subr.mxu0 0.0
  %794 = vmatpush1.msra.mxu0 0.0
  %795 = vmatprep.subr.mxu0 0.0
  %796 = vmatpush1.msra.mxu0 0.0
  %797 = vmatprep.subr.mxu0 0.0
  %798 = vmatpush1.msra.mxu0 0.0
  %799 = vmatprep.subr.mxu0 0.0
  %800 = vmatpush1.msra.mxu0 0.0
  %801 = vmatprep.subr.mxu0 0.0
  %802 = vmatpush1.msra.mxu0 0.0
  %803 = vmatprep.subr.mxu0 0.0
  %804 = vmatpush1.msra.mxu0 0.0
  %805 = vmatprep.subr.mxu0 0.0
  %806 = vmatpush1.msra.mxu0 0.0
  %807 = vmatprep.subr.mxu0 0.0
  %808 = vmatpush1.msra.mxu0 0.0
  %809 = vmatprep.subr.mxu0 0.0
  %810 = vmatpush1.msra.mxu0 0.0
  %811 = vmatprep.subr.mxu0 0.0
  %812 = vmatpush1.msra.mxu0 0.0
  %813 = vmatprep.mubr.f32.mxu0 0.0
  %814 = vmatmul.mubr.f32.gmra.mrb[0].mxu0 %v742
  %v815 = vpop.f32.mrb[0].mxu0
  %v816 = vadd.f32 0.0, %v815
  %v817 = vpop.f32.mrb[0].mxu0
  %v818 = vadd.f32 0.0, %v817
  %819 = vdwg.mxu0
  %820 = vmatprep.subr.mxu0 0.0
  %821 = vmatpush1.msra.mxu0 %v346
  %822 = vmatprep.subr.mxu0 0.0
  %823 = vmatpush1.msra.mxu0 %v349
  %824 = vmatprep.subr.mxu0 0.0
  %825 = vmatpush1.msra.mxu0 %v352
  %826 = vmatprep.subr.mxu0 0.0
  %827 = vmatpush1.msra.mxu0 %v355
  %828 = vmatprep.subr.mxu0 0.0
  %829 = vmatpush1.msra.mxu0 %v358
  %830 = vmatprep.subr.mxu0 0.0
  %831 = vmatpush1.msra.mxu0 %v361
  %832 = vmatprep.subr.mxu0 0.0
  %833 = vmatpush1.msra.mxu0 %v364
  %834 = vmatprep.subr.mxu0 0.0
  %835 = vmatpush1.msra.mxu0 %v367
  %836 = vmatprep.subr.mxu0 0.0
  %837 = vmatpush1.msra.mxu0 %v370
  %838 = vmatprep.subr.mxu0 0.0
  %839 = vmatpush1.msra.mxu0 %v373
  %840 = vmatprep.subr.mxu0 0.0
  %841 = vmatpush1.msra.mxu0 %v376
  %842 = vmatprep.subr.mxu0 0.0
  %843 = vmatpush1.msra.mxu0 %v379
  %844 = vmatprep.subr.mxu0 0.0
  %845 = vmatpush1.msra.mxu0 %v382
  %846 = vmatprep.subr.mxu0 0.0
  %847 = vmatpush1.msra.mxu0 %v385
  %848 = vmatprep.subr.mxu0 0.0
  %849 = vmatpush1.msra.mxu0 %v388
  %850 = vmatprep.subr.mxu0 0.0
  %851 = vmatpush1.msra.mxu0 %v391
  %852 = vmatprep.subr.mxu0 0.0
  %853 = vmatpush1.msra.mxu0 0.0
  %854 = vmatprep.subr.mxu0 0.0
  %855 = vmatpush1.msra.mxu0 0.0
  %856 = vmatprep.subr.mxu0 0.0
  %857 = vmatpush1.msra.mxu0 0.0
  %858 = vmatprep.subr.mxu0 0.0
  %859 = vmatpush1.msra.mxu0 0.0
  %860 = vmatprep.subr.mxu0 0.0
  %861 = vmatpush1.msra.mxu0 0.0
  %862 = vmatprep.subr.mxu0 0.0
  %863 = vmatpush1.msra.mxu0 0.0
  %864 = vmatprep.subr.mxu0 0.0
  %865 = vmatpush1.msra.mxu0 0.0
  %866 = vmatprep.subr.mxu0 0.0
  %867 = vmatpush1.msra.mxu0 0.0
  %868 = vmatprep.subr.mxu0 0.0
  %869 = vmatpush1.msra.mxu0 0.0
  %870 = vmatprep.subr.mxu0 0.0
  %871 = vmatpush1.msra.mxu0 0.0
  %872 = vmatprep.subr.mxu0 0.0
  %873 = vmatpush1.msra.mxu0 0.0
  %874 = vmatprep.subr.mxu0 0.0
  %875 = vmatpush1.msra.mxu0 0.0
  %876 = vmatprep.subr.mxu0 0.0
  %877 = vmatpush1.msra.mxu0 0.0
  %878 = vmatprep.subr.mxu0 0.0
  %879 = vmatpush1.msra.mxu0 0.0
  %880 = vmatprep.subr.mxu0 0.0
  %881 = vmatpush1.msra.mxu0 0.0
  %882 = vmatprep.subr.mxu0 0.0
  %883 = vmatpush1.msra.mxu0 0.0
  %884 = vmatprep.mubr.f32.mxu0 0.0
  %885 = vmatmul.mubr.f32.gmra.mrb[0].mxu0 %v742
  %v886 = vpop.f32.mrb[0].mxu0
  %v887 = vadd.f32 0.0, %v886
  %v888 = vpop.f32.mrb[0].mxu0
  %889 = vdwg.mxu0
  %v890 = vadd.f32 %v746, %v816
  %v891 = vxor.u32 %v890, 2147483648
  %v892 = vmul.f32 %v891, 1.442695
  %v893 = vpow.pop %v892
  %v894 = vadd.f32 %v893, 1.0
  %v895 = vrcp.pop %v894
  %v896 = vmul.f32 1.0, %v895
  %v897 = vadd.f32 %v747, %v818
  %v898 = vxor.u32 %v897, 2147483648
  %v899 = vmul.f32 %v898, 1.442695
  %v900 = vpow.pop %v899
  %v901 = vadd.f32 %v900, 1.0
  %v902 = vrcp.pop %v901
  %v903 = vmul.f32 1.0, %v902
  %v904 = vadd.f32 %v887, %v397
  %v905 = vmul.f32 %v896, %v904
  %v906 = vadd.f32 %v748, %v905
  %v907 = vtanh.pop %v906
  %v908 = vsub.f32 %v742, %v907
  %v909 = vmul.f32 %v903, %v908
  %v910 = vadd.f32 %v907, %v909
  %911 = vst [vmem:[#allocation2] sm:$0xff] %v910
  %s912 = scalar_lea.vmem %s6, 16
  %913 = vst [vmem:[%s912] sm:$0xff] %v910
  %v914 = vld [vmem:[#allocation2] sm:$0xff]
  %s915 = smul.u32 3, 3
  %s916 = smul.addr %s915, 8
  %s917 = scalar_lea.vmem [#allocation3], %s916
  %v918 = vld [vmem:[%s917] sm:$0xff]
  %v919 = vld [vmem:[%s917 + $0x8] sm:$0xff]
  %v920 = vld [vmem:[%s917 + $0x10] sm:$0xff]
  %921 = vmatprep.subr.mxu0 %v345
  %922 = vmatpush1.msra.mxu0 %v344
  %923 = vmatprep.subr.mxu0 %v348
  %924 = vmatpush1.msra.mxu0 %v347
  %925 = vmatprep.subr.mxu0 %v351
  %926 = vmatpush1.msra.mxu0 %v350
  %927 = vmatprep.subr.mxu0 %v354
  %928 = vmatpush1.msra.mxu0 %v353
  %929 = vmatprep.subr.mxu0 %v357
  %930 = vmatpush1.msra.mxu0 %v356
  %931 = vmatprep.subr.mxu0 %v360
  %932 = vmatpush1.msra.mxu0 %v359
  %933 = vmatprep.subr.mxu0 %v363
  %934 = vmatpush1.msra.mxu0 %v362
  %935 = vmatprep.subr.mxu0 %v366
  %936 = vmatpush1.msra.mxu0 %v365
  %937 = vmatprep.subr.mxu0 %v369
  %938 = vmatpush1.msra.mxu0 %v368
  %939 = vmatprep.subr.mxu0 %v372
  %940 = vmatpush1.msra.mxu0 %v371
  %941 = vmatprep.subr.mxu0 %v375
  %942 = vmatpush1.msra.mxu0 %v374
  %943 = vmatprep.subr.mxu0 %v378
  %944 = vmatpush1.msra.mxu0 %v377
  %945 = vmatprep.subr.mxu0 %v381
  %946 = vmatpush1.msra.mxu0 %v380
  %947 = vmatprep.subr.mxu0 %v384
  %948 = vmatpush1.msra.mxu0 %v383
  %949 = vmatprep.subr.mxu0 %v387
  %950 = vmatpush1.msra.mxu0 %v386
  %951 = vmatprep.subr.mxu0 %v390
  %952 = vmatpush1.msra.mxu0 %v389
  %953 = vmatprep.subr.mxu0 0.0
  %954 = vmatpush1.msra.mxu0 0.0
  %955 = vmatprep.subr.mxu0 0.0
  %956 = vmatpush1.msra.mxu0 0.0
  %957 = vmatprep.subr.mxu0 0.0
  %958 = vmatpush1.msra.mxu0 0.0
  %959 = vmatprep.subr.mxu0 0.0
  %960 = vmatpush1.msra.mxu0 0.0
  %961 = vmatprep.subr.mxu0 0.0
  %962 = vmatpush1.msra.mxu0 0.0
  %963 = vmatprep.subr.mxu0 0.0
  %964 = vmatpush1.msra.mxu0 0.0
  %965 = vmatprep.subr.mxu0 0.0
  %966 = vmatpush1.msra.mxu0 0.0
  %967 = vmatprep.subr.mxu0 0.0
  %968 = vmatpush1.msra.mxu0 0.0
  %969 = vmatprep.subr.mxu0 0.0
  %970 = vmatpush1.msra.mxu0 0.0
  %971 = vmatprep.subr.mxu0 0.0
  %972 = vmatpush1.msra.mxu0 0.0
  %973 = vmatprep.subr.mxu0 0.0
  %974 = vmatpush1.msra.mxu0 0.0
  %975 = vmatprep.subr.mxu0 0.0
  %976 = vmatpush1.msra.mxu0 0.0
  %977 = vmatprep.subr.mxu0 0.0
  %978 = vmatpush1.msra.mxu0 0.0
  %979 = vmatprep.subr.mxu0 0.0
  %980 = vmatpush1.msra.mxu0 0.0
  %981 = vmatprep.subr.mxu0 0.0
  %982 = vmatpush1.msra.mxu0 0.0
  %983 = vmatprep.subr.mxu0 0.0
  %984 = vmatpush1.msra.mxu0 0.0
  %985 = vmatprep.mubr.f32.mxu0 0.0
  %986 = vmatmul.mubr.f32.gmra.mrb[0].mxu0 %v914
  %v987 = vpop.f32.mrb[0].mxu0
  %v988 = vadd.f32 0.0, %v987
  %v989 = vpop.f32.mrb[0].mxu0
  %v990 = vadd.f32 0.0, %v989
  %991 = vdwg.mxu0
  %992 = vmatprep.subr.mxu0 0.0
  %993 = vmatpush1.msra.mxu0 %v346
  %994 = vmatprep.subr.mxu0 0.0
  %995 = vmatpush1.msra.mxu0 %v349
  %996 = vmatprep.subr.mxu0 0.0
  %997 = vmatpush1.msra.mxu0 %v352
  %998 = vmatprep.subr.mxu0 0.0
  %999 = vmatpush1.msra.mxu0 %v355
  %1000 = vmatprep.subr.mxu0 0.0
  %1001 = vmatpush1.msra.mxu0 %v358
  %1002 = vmatprep.subr.mxu0 0.0
  %1003 = vmatpush1.msra.mxu0 %v361
  %1004 = vmatprep.subr.mxu0 0.0
  %1005 = vmatpush1.msra.mxu0 %v364
  %1006 = vmatprep.subr.mxu0 0.0
  %1007 = vmatpush1.msra.mxu0 %v367
  %1008 = vmatprep.subr.mxu0 0.0
  %1009 = vmatpush1.msra.mxu0 %v370
  %1010 = vmatprep.subr.mxu0 0.0
  %1011 = vmatpush1.msra.mxu0 %v373
  %1012 = vmatprep.subr.mxu0 0.0
  %1013 = vmatpush1.msra.mxu0 %v376
  %1014 = vmatprep.subr.mxu0 0.0
  %1015 = vmatpush1.msra.mxu0 %v379
  %1016 = vmatprep.subr.mxu0 0.0
  %1017 = vmatpush1.msra.mxu0 %v382
  %1018 = vmatprep.subr.mxu0 0.0
  %1019 = vmatpush1.msra.mxu0 %v385
  %1020 = vmatprep.subr.mxu0 0.0
  %1021 = vmatpush1.msra.mxu0 %v388
  %1022 = vmatprep.subr.mxu0 0.0
  %1023 = vmatpush1.msra.mxu0 %v391
  %1024 = vmatprep.subr.mxu0 0.0
  %1025 = vmatpush1.msra.mxu0 0.0
  %1026 = vmatprep.subr.mxu0 0.0
  %1027 = vmatpush1.msra.mxu0 0.0
  %1028 = vmatprep.subr.mxu0 0.0
  %1029 = vmatpush1.msra.mxu0 0.0
  %1030 = vmatprep.subr.mxu0 0.0
  %1031 = vmatpush1.msra.mxu0 0.0
  %1032 = vmatprep.subr.mxu0 0.0
  %1033 = vmatpush1.msra.mxu0 0.0
  %1034 = vmatprep.subr.mxu0 0.0
  %1035 = vmatpush1.msra.mxu0 0.0
  %1036 = vmatprep.subr.mxu0 0.0
  %1037 = vmatpush1.msra.mxu0 0.0
  %1038 = vmatprep.subr.mxu0 0.0
  %1039 = vmatpush1.msra.mxu0 0.0
  %1040 = vmatprep.subr.mxu0 0.0
  %1041 = vmatpush1.msra.mxu0 0.0
  %1042 = vmatprep.subr.mxu0 0.0
  %1043 = vmatpush1.msra.mxu0 0.0
  %1044 = vmatprep.subr.mxu0 0.0
  %1045 = vmatpush1.msra.mxu0 0.0
  %1046 = vmatprep.subr.mxu0 0.0
  %1047 = vmatpush1.msra.mxu0 0.0
  %1048 = vmatprep.subr.mxu0 0.0
  %1049 = vmatpush1.msra.mxu0 0.0
  %1050 = vmatprep.subr.mxu0 0.0
  %1051 = vmatpush1.msra.mxu0 0.0
  %1052 = vmatprep.subr.mxu0 0.0
  %1053 = vmatpush1.msra.mxu0 0.0
  %1054 = vmatprep.subr.mxu0 0.0
  %1055 = vmatpush1.msra.mxu0 0.0
  %1056 = vmatprep.mubr.f32.mxu0 0.0
  %1057 = vmatmul.mubr.f32.gmra.mrb[0].mxu0 %v914
  %v1058 = vpop.f32.mrb[0].mxu0
  %v1059 = vadd.f32 0.0, %v1058
  %v1060 = vpop.f32.mrb[0].mxu0
  %1061 = vdwg.mxu0
  %v1062 = vadd.f32 %v918, %v988
  %v1063 = vxor.u32 %v1062, 2147483648
  %v1064 = vmul.f32 %v1063, 1.442695
  %v1065 = vpow.pop %v1064
  %v1066 = vadd.f32 %v1065, 1.0
  %v1067 = vrcp.pop %v1066
  %v1068 = vmul.f32 1.0, %v1067
  %v1069 = vadd.f32 %v919, %v990
  %v1070 = vxor.u32 %v1069, 2147483648
  %v1071 = vmul.f32 %v1070, 1.442695
  %v1072 = vpow.pop %v1071
  %v1073 = vadd.f32 %v1072, 1.0
  %v1074 = vrcp.pop %v1073
  %v1075 = vmul.f32 1.0, %v1074
  %v1076 = vadd.f32 %v1059, %v397
  %v1077 = vmul.f32 %v1068, %v1076
  %v1078 = vadd.f32 %v920, %v1077
  %v1079 = vtanh.pop %v1078
  %v1080 = vsub.f32 %v914, %v1079
  %v1081 = vmul.f32 %v1075, %v1080
  %v1082 = vadd.f32 %v1079, %v1081
  %1083 = vst [vmem:[#allocation2] sm:$0xff] %v1082
  %s1084 = scalar_lea.vmem %s6, 24
  %1085 = vst [vmem:[%s1084] sm:$0xff] %v1082
  %v1086 = vld [vmem:[#allocation2] sm:$0xff]
  %s1087 = smul.u32 4, 3
  %s1088 = smul.addr %s1087, 8
  %s1089 = scalar_lea.vmem [#allocation3], %s1088
  %v1090 = vld [vmem:[%s1089] sm:$0xff]
  %v1091 = vld [vmem:[%s1089 + $0x8] sm:$0xff]
  %v1092 = vld [vmem:[%s1089 + $0x10] sm:$0xff]
  %1093 = vmatprep.subr.mxu0 %v345
  %1094 = vmatpush1.msra.mxu0 %v344
  %1095 = vmatprep.subr.mxu0 %v348
  %1096 = vmatpush1.msra.mxu0 %v347
  %1097 = vmatprep.subr.mxu0 %v351
  %1098 = vmatpush1.msra.mxu0 %v350
  %1099 = vmatprep.subr.mxu0 %v354
  %1100 = vmatpush1.msra.mxu0 %v353
  %1101 = vmatprep.subr.mxu0 %v357
  %1102 = vmatpush1.msra.mxu0 %v356
  %1103 = vmatprep.subr.mxu0 %v360
  %1104 = vmatpush1.msra.mxu0 %v359
  %1105 = vmatprep.subr.mxu0 %v363
  %1106 = vmatpush1.msra.mxu0 %v362
  %1107 = vmatprep.subr.mxu0 %v366
  %1108 = vmatpush1.msra.mxu0 %v365
  %1109 = vmatprep.subr.mxu0 %v369
  %1110 = vmatpush1.msra.mxu0 %v368
  %1111 = vmatprep.subr.mxu0 %v372
  %1112 = vmatpush1.msra.mxu0 %v371
  %1113 = vmatprep.subr.mxu0 %v375
  %1114 = vmatpush1.msra.mxu0 %v374
  %1115 = vmatprep.subr.mxu0 %v378
  %1116 = vmatpush1.msra.mxu0 %v377
  %1117 = vmatprep.subr.mxu0 %v381
  %1118 = vmatpush1.msra.mxu0 %v380
  %1119 = vmatprep.subr.mxu0 %v384
  %1120 = vmatpush1.msra.mxu0 %v383
  %1121 = vmatprep.subr.mxu0 %v387
  %1122 = vmatpush1.msra.mxu0 %v386
  %1123 = vmatprep.subr.mxu0 %v390
  %1124 = vmatpush1.msra.mxu0 %v389
  %1125 = vmatprep.subr.mxu0 0.0
  %1126 = vmatpush1.msra.mxu0 0.0
  %1127 = vmatprep.subr.mxu0 0.0
  %1128 = vmatpush1.msra.mxu0 0.0
  %1129 = vmatprep.subr.mxu0 0.0
  %1130 = vmatpush1.msra.mxu0 0.0
  %1131 = vmatprep.subr.mxu0 0.0
  %1132 = vmatpush1.msra.mxu0 0.0
  %1133 = vmatprep.subr.mxu0 0.0
  %1134 = vmatpush1.msra.mxu0 0.0
  %1135 = vmatprep.subr.mxu0 0.0
  %1136 = vmatpush1.msra.mxu0 0.0
  %1137 = vmatprep.subr.mxu0 0.0
  %1138 = vmatpush1.msra.mxu0 0.0
  %1139 = vmatprep.subr.mxu0 0.0
  %1140 = vmatpush1.msra.mxu0 0.0
  %1141 = vmatprep.subr.mxu0 0.0
  %1142 = vmatpush1.msra.mxu0 0.0
  %1143 = vmatprep.subr.mxu0 0.0
  %1144 = vmatpush1.msra.mxu0 0.0
  %1145 = vmatprep.subr.mxu0 0.0
  %1146 = vmatpush1.msra.mxu0 0.0
  %1147 = vmatprep.subr.mxu0 0.0
  %1148 = vmatpush1.msra.mxu0 0.0
  %1149 = vmatprep.subr.mxu0 0.0
  %1150 = vmatpush1.msra.mxu0 0.0
  %1151 = vmatprep.subr.mxu0 0.0
  %1152 = vmatpush1.msra.mxu0 0.0
  %1153 = vmatprep.subr.mxu0 0.0
  %1154 = vmatpush1.msra.mxu0 0.0
  %1155 = vmatprep.subr.mxu0 0.0
  %1156 = vmatpush1.msra.mxu0 0.0
  %1157 = vmatprep.mubr.f32.mxu0 0.0
  %1158 = vmatmul.mubr.f32.gmra.mrb[0].mxu0 %v1086
  %v1159 = vpop.f32.mrb[0].mxu0
  %v1160 = vadd.f32 0.0, %v1159
  %v1161 = vpop.f32.mrb[0].mxu0
  %v1162 = vadd.f32 0.0, %v1161
  %1163 = vdwg.mxu0
  %1164 = vmatprep.subr.mxu0 0.0
  %1165 = vmatpush1.msra.mxu0 %v346
  %1166 = vmatprep.subr.mxu0 0.0
  %1167 = vmatpush1.msra.mxu0 %v349
  %1168 = vmatprep.subr.mxu0 0.0
  %1169 = vmatpush1.msra.mxu0 %v352
  %1170 = vmatprep.subr.mxu0 0.0
  %1171 = vmatpush1.msra.mxu0 %v355
  %1172 = vmatprep.subr.mxu0 0.0
  %1173 = vmatpush1.msra.mxu0 %v358
  %1174 = vmatprep.subr.mxu0 0.0
  %1175 = vmatpush1.msra.mxu0 %v361
  %1176 = vmatprep.subr.mxu0 0.0
  %1177 = vmatpush1.msra.mxu0 %v364
  %1178 = vmatprep.subr.mxu0 0.0
  %1179 = vmatpush1.msra.mxu0 %v367
  %1180 = vmatprep.subr.mxu0 0.0
  %1181 = vmatpush1.msra.mxu0 %v370
  %1182 = vmatprep.subr.mxu0 0.0
  %1183 = vmatpush1.msra.mxu0 %v373
  %1184 = vmatprep.subr.mxu0 0.0
  %1185 = vmatpush1.msra.mxu0 %v376
  %1186 = vmatprep.subr.mxu0 0.0
  %1187 = vmatpush1.msra.mxu0 %v379
  %1188 = vmatprep.subr.mxu0 0.0
  %1189 = vmatpush1.msra.mxu0 %v382
  %1190 = vmatprep.subr.mxu0 0.0
  %1191 = vmatpush1.msra.mxu0 %v385
  %1192 = vmatprep.subr.mxu0 0.0
  %1193 = vmatpush1.msra.mxu0 %v388
  %1194 = vmatprep.subr.mxu0 0.0
  %1195 = vmatpush1.msra.mxu0 %v391
  %1196 = vmatprep.subr.mxu0 0.0
  %1197 = vmatpush1.msra.mxu0 0.0
  %1198 = vmatprep.subr.mxu0 0.0
  %1199 = vmatpush1.msra.mxu0 0.0
  %1200 = vmatprep.subr.mxu0 0.0
  %1201 = vmatpush1.msra.mxu0 0.0
  %1202 = vmatprep.subr.mxu0 0.0
  %1203 = vmatpush1.msra.mxu0 0.0
  %1204 = vmatprep.subr.mxu0 0.0
  %1205 = vmatpush1.msra.mxu0 0.0
  %1206 = vmatprep.subr.mxu0 0.0
  %1207 = vmatpush1.msra.mxu0 0.0
  %1208 = vmatprep.subr.mxu0 0.0
  %1209 = vmatpush1.msra.mxu0 0.0
  %1210 = vmatprep.subr.mxu0 0.0
  %1211 = vmatpush1.msra.mxu0 0.0
  %1212 = vmatprep.subr.mxu0 0.0
  %1213 = vmatpush1.msra.mxu0 0.0
  %1214 = vmatprep.subr.mxu0 0.0
  %1215 = vmatpush1.msra.mxu0 0.0
  %1216 = vmatprep.subr.mxu0 0.0
  %1217 = vmatpush1.msra.mxu0 0.0
  %1218 = vmatprep.subr.mxu0 0.0
  %1219 = vmatpush1.msra.mxu0 0.0
  %1220 = vmatprep.subr.mxu0 0.0
  %1221 = vmatpush1.msra.mxu0 0.0
  %1222 = vmatprep.subr.mxu0 0.0
  %1223 = vmatpush1.msra.mxu0 0.0
  %1224 = vmatprep.subr.mxu0 0.0
  %1225 = vmatpush1.msra.mxu0 0.0
  %1226 = vmatprep.subr.mxu0 0.0
  %1227 = vmatpush1.msra.mxu0 0.0
  %1228 = vmatprep.mubr.f32.mxu0 0.0
  %1229 = vmatmul.mubr.f32.gmra.mrb[0].mxu0 %v1086
  %v1230 = vpop.f32.mrb[0].mxu0
  %v1231 = vadd.f32 0.0, %v1230
  %v1232 = vpop.f32.mrb[0].mxu0
  %1233 = vdwg.mxu0
  %v1234 = vadd.f32 %v1090, %v1160
  %v1235 = vxor.u32 %v1234, 2147483648
  %v1236 = vmul.f32 %v1235, 1.442695
  %v1237 = vpow.pop %v1236
  %v1238 = vadd.f32 %v1237, 1.0
  %v1239 = vrcp.pop %v1238
  %v1240 = vmul.f32 1.0, %v1239
  %v1241 = vadd.f32 %v1091, %v1162
  %v1242 = vxor.u32 %v1241, 2147483648
  %v1243 = vmul.f32 %v1242, 1.442695
  %v1244 = vpow.pop %v1243
  %v1245 = vadd.f32 %v1244, 1.0
  %v1246 = vrcp.pop %v1245
  %v1247 = vmul.f32 1.0, %v1246
  %v1248 = vadd.f32 %v1231, %v397
  %v1249 = vmul.f32 %v1240, %v1248
  %v1250 = vadd.f32 %v1092, %v1249
  %v1251 = vtanh.pop %v1250
  %v1252 = vsub.f32 %v1086, %v1251
  %v1253 = vmul.f32 %v1247, %v1252
  %v1254 = vadd.f32 %v1251, %v1253
  %1255 = vst [vmem:[#allocation2] sm:$0xff] %v1254
  %s1256 = scalar_lea.vmem %s6, 32
  %1257 = vst [vmem:[%s1256] sm:$0xff] %v1254
  %v1258 = vld [vmem:[#allocation2] sm:$0xff]
  %s1259 = smul.u32 5, 3
  %s1260 = smul.addr %s1259, 8
  %s1261 = scalar_lea.vmem [#allocation3], %s1260
  %v1262 = vld [vmem:[%s1261] sm:$0xff]
  %v1263 = vld [vmem:[%s1261 + $0x8] sm:$0xff]
  %v1264 = vld [vmem:[%s1261 + $0x10] sm:$0xff]
  %1265 = vmatprep.subr.mxu0 %v345
  %1266 = vmatpush1.msra.mxu0 %v344
  %1267 = vmatprep.subr.mxu0 %v348
  %1268 = vmatpush1.msra.mxu0 %v347
  %1269 = vmatprep.subr.mxu0 %v351
  %1270 = vmatpush1.msra.mxu0 %v350
  %1271 = vmatprep.subr.mxu0 %v354
  %1272 = vmatpush1.msra.mxu0 %v353
  %1273 = vmatprep.subr.mxu0 %v357
  %1274 = vmatpush1.msra.mxu0 %v356
  %1275 = vmatprep.subr.mxu0 %v360
  %1276 = vmatpush1.msra.mxu0 %v359
  %1277 = vmatprep.subr.mxu0 %v363
  %1278 = vmatpush1.msra.mxu0 %v362
  %1279 = vmatprep.subr.mxu0 %v366
  %1280 = vmatpush1.msra.mxu0 %v365
  %1281 = vmatprep.subr.mxu0 %v369
  %1282 = vmatpush1.msra.mxu0 %v368
  %1283 = vmatprep.subr.mxu0 %v372
  %1284 = vmatpush1.msra.mxu0 %v371
  %1285 = vmatprep.subr.mxu0 %v375
  %1286 = vmatpush1.msra.mxu0 %v374
  %1287 = vmatprep.subr.mxu0 %v378
  %1288 = vmatpush1.msra.mxu0 %v377
  %1289 = vmatprep.subr.mxu0 %v381
  %1290 = vmatpush1.msra.mxu0 %v380
  %1291 = vmatprep.subr.mxu0 %v384
  %1292 = vmatpush1.msra.mxu0 %v383
  %1293 = vmatprep.subr.mxu0 %v387
  %1294 = vmatpush1.msra.mxu0 %v386
  %1295 = vmatprep.subr.mxu0 %v390
  %1296 = vmatpush1.msra.mxu0 %v389
  %1297 = vmatprep.subr.mxu0 0.0
  %1298 = vmatpush1.msra.mxu0 0.0
  %1299 = vmatprep.subr.mxu0 0.0
  %1300 = vmatpush1.msra.mxu0 0.0
  %1301 = vmatprep.subr.mxu0 0.0
  %1302 = vmatpush1.msra.mxu0 0.0
  %1303 = vmatprep.subr.mxu0 0.0
  %1304 = vmatpush1.msra.mxu0 0.0
  %1305 = vmatprep.subr.mxu0 0.0
  %1306 = vmatpush1.msra.mxu0 0.0
  %1307 = vmatprep.subr.mxu0 0.0
  %1308 = vmatpush1.msra.mxu0 0.0
  %1309 = vmatprep.subr.mxu0 0.0
  %1310 = vmatpush1.msra.mxu0 0.0
  %1311 = vmatprep.subr.mxu0 0.0
  %1312 = vmatpush1.msra.mxu0 0.0
  %1313 = vmatprep.subr.mxu0 0.0
  %1314 = vmatpush1.msra.mxu0 0.0
  %1315 = vmatprep.subr.mxu0 0.0
  %1316 = vmatpush1.msra.mxu0 0.0
  %1317 = vmatprep.subr.mxu0 0.0
  %1318 = vmatpush1.msra.mxu0 0.0
  %1319 = vmatprep.subr.mxu0 0.0
  %1320 = vmatpush1.msra.mxu0 0.0
  %1321 = vmatprep.subr.mxu0 0.0
  %1322 = vmatpush1.msra.mxu0 0.0
  %1323 = vmatprep.subr.mxu0 0.0
  %1324 = vmatpush1.msra.mxu0 0.0
  %1325 = vmatprep.subr.mxu0 0.0
  %1326 = vmatpush1.msra.mxu0 0.0
  %1327 = vmatprep.subr.mxu0 0.0
  %1328 = vmatpush1.msra.mxu0 0.0
  %1329 = vmatprep.mubr.f32.mxu0 0.0
  %1330 = vmatmul.mubr.f32.gmra.mrb[0].mxu0 %v1258
  %v1331 = vpop.f32.mrb[0].mxu0
  %v1332 = vadd.f32 0.0, %v1331
  %v1333 = vpop.f32.mrb[0].mxu0
  %v1334 = vadd.f32 0.0, %v1333
  %1335 = vdwg.mxu0
  %1336 = vmatprep.subr.mxu0 0.0
  %1337 = vmatpush1.msra.mxu0 %v346
  %1338 = vmatprep.subr.mxu0 0.0
  %1339 = vmatpush1.msra.mxu0 %v349
  %1340 = vmatprep.subr.mxu0 0.0
  %1341 = vmatpush1.msra.mxu0 %v352
  %1342 = vmatprep.subr.mxu0 0.0
  %1343 = vmatpush1.msra.mxu0 %v355
  %1344 = vmatprep.subr.mxu0 0.0
  %1345 = vmatpush1.msra.mxu0 %v358
  %1346 = vmatprep.subr.mxu0 0.0
  %1347 = vmatpush1.msra.mxu0 %v361
  %1348 = vmatprep.subr.mxu0 0.0
  %1349 = vmatpush1.msra.mxu0 %v364
  %1350 = vmatprep.subr.mxu0 0.0
  %1351 = vmatpush1.msra.mxu0 %v367
  %1352 = vmatprep.subr.mxu0 0.0
  %1353 = vmatpush1.msra.mxu0 %v370
  %1354 = vmatprep.subr.mxu0 0.0
  %1355 = vmatpush1.msra.mxu0 %v373
  %1356 = vmatprep.subr.mxu0 0.0
  %1357 = vmatpush1.msra.mxu0 %v376
  %1358 = vmatprep.subr.mxu0 0.0
  %1359 = vmatpush1.msra.mxu0 %v379
  %1360 = vmatprep.subr.mxu0 0.0
  %1361 = vmatpush1.msra.mxu0 %v382
  %1362 = vmatprep.subr.mxu0 0.0
  %1363 = vmatpush1.msra.mxu0 %v385
  %1364 = vmatprep.subr.mxu0 0.0
  %1365 = vmatpush1.msra.mxu0 %v388
  %1366 = vmatprep.subr.mxu0 0.0
  %1367 = vmatpush1.msra.mxu0 %v391
  %1368 = vmatprep.subr.mxu0 0.0
  %1369 = vmatpush1.msra.mxu0 0.0
  %1370 = vmatprep.subr.mxu0 0.0
  %1371 = vmatpush1.msra.mxu0 0.0
  %1372 = vmatprep.subr.mxu0 0.0
  %1373 = vmatpush1.msra.mxu0 0.0
  %1374 = vmatprep.subr.mxu0 0.0
  %1375 = vmatpush1.msra.mxu0 0.0
  %1376 = vmatprep.subr.mxu0 0.0
  %1377 = vmatpush1.msra.mxu0 0.0
  %1378 = vmatprep.subr.mxu0 0.0
  %1379 = vmatpush1.msra.mxu0 0.0
  %1380 = vmatprep.subr.mxu0 0.0
  %1381 = vmatpush1.msra.mxu0 0.0
  %1382 = vmatprep.subr.mxu0 0.0
  %1383 = vmatpush1.msra.mxu0 0.0
  %1384 = vmatprep.subr.mxu0 0.0
  %1385 = vmatpush1.msra.mxu0 0.0
  %1386 = vmatprep.subr.mxu0 0.0
  %1387 = vmatpush1.msra.mxu0 0.0
  %1388 = vmatprep.subr.mxu0 0.0
  %1389 = vmatpush1.msra.mxu0 0.0
  %1390 = vmatprep.subr.mxu0 0.0
  %1391 = vmatpush1.msra.mxu0 0.0
  %1392 = vmatprep.subr.mxu0 0.0
  %1393 = vmatpush1.msra.mxu0 0.0
  %1394 = vmatprep.subr.mxu0 0.0
  %1395 = vmatpush1.msra.mxu0 0.0
  %1396 = vmatprep.subr.mxu0 0.0
  %1397 = vmatpush1.msra.mxu0 0.0
  %1398 = vmatprep.subr.mxu0 0.0
  %1399 = vmatpush1.msra.mxu0 0.0
  %1400 = vmatprep.mubr.f32.mxu0 0.0
  %1401 = vmatmul.mubr.f32.gmra.mrb[0].mxu0 %v1258
  %v1402 = vpop.f32.mrb[0].mxu0
  %v1403 = vadd.f32 0.0, %v1402
  %v1404 = vpop.f32.mrb[0].mxu0
  %1405 = vdwg.mxu0
  %v1406 = vadd.f32 %v1262, %v1332
  %v1407 = vxor.u32 %v1406, 2147483648
  %v1408 = vmul.f32 %v1407, 1.442695
  %v1409 = vpow.pop %v1408
  %v1410 = vadd.f32 %v1409, 1.0
  %v1411 = vrcp.pop %v1410
  %v1412 = vmul.f32 1.0, %v1411
  %v1413 = vadd.f32 %v1263, %v1334
  %v1414 = vxor.u32 %v1413, 2147483648
  %v1415 = vmul.f32 %v1414, 1.442695
  %v1416 = vpow.pop %v1415
  %v1417 = vadd.f32 %v1416, 1.0
  %v1418 = vrcp.pop %v1417
  %v1419 = vmul.f32 1.0, %v1418
  %v1420 = vadd.f32 %v1403, %v397
  %v1421 = vmul.f32 %v1412, %v1420
  %v1422 = vadd.f32 %v1264, %v1421
  %v1423 = vtanh.pop %v1422
  %v1424 = vsub.f32 %v1258, %v1423
  %v1425 = vmul.f32 %v1419, %v1424
  %v1426 = vadd.f32 %v1423, %v1425
  %1427 = vst [vmem:[#allocation2] sm:$0xff] %v1426
  %s1428 = scalar_lea.vmem %s6, 40
  %1429 = vst [vmem:[%s1428] sm:$0xff] %v1426
  %v1430 = vld [vmem:[#allocation2] sm:$0xff]
  %s1431 = smul.u32 6, 3
  %s1432 = smul.addr %s1431, 8
  %s1433 = scalar_lea.vmem [#allocation3], %s1432
  %v1434 = vld [vmem:[%s1433] sm:$0xff]
  %v1435 = vld [vmem:[%s1433 + $0x8] sm:$0xff]
  %v1436 = vld [vmem:[%s1433 + $0x10] sm:$0xff]
  %1437 = vmatprep.subr.mxu0 %v345
  %1438 = vmatpush1.msra.mxu0 %v344
  %1439 = vmatprep.subr.mxu0 %v348
  %1440 = vmatpush1.msra.mxu0 %v347
  %1441 = vmatprep.subr.mxu0 %v351
  %1442 = vmatpush1.msra.mxu0 %v350
  %1443 = vmatprep.subr.mxu0 %v354
  %1444 = vmatpush1.msra.mxu0 %v353
  %1445 = vmatprep.subr.mxu0 %v357
  %1446 = vmatpush1.msra.mxu0 %v356
  %1447 = vmatprep.subr.mxu0 %v360
  %1448 = vmatpush1.msra.mxu0 %v359
  %1449 = vmatprep.subr.mxu0 %v363
  %1450 = vmatpush1.msra.mxu0 %v362
  %1451 = vmatprep.subr.mxu0 %v366
  %1452 = vmatpush1.msra.mxu0 %v365
  %1453 = vmatprep.subr.mxu0 %v369
  %1454 = vmatpush1.msra.mxu0 %v368
  %1455 = vmatprep.subr.mxu0 %v372
  %1456 = vmatpush1.msra.mxu0 %v371
  %1457 = vmatprep.subr.mxu0 %v375
  %1458 = vmatpush1.msra.mxu0 %v374
  %1459 = vmatprep.subr.mxu0 %v378
  %1460 = vmatpush1.msra.mxu0 %v377
  %1461 = vmatprep.subr.mxu0 %v381
  %1462 = vmatpush1.msra.mxu0 %v380
  %1463 = vmatprep.subr.mxu0 %v384
  %1464 = vmatpush1.msra.mxu0 %v383
  %1465 = vmatprep.subr.mxu0 %v387
  %1466 = vmatpush1.msra.mxu0 %v386
  %1467 = vmatprep.subr.mxu0 %v390
  %1468 = vmatpush1.msra.mxu0 %v389
  %1469 = vmatprep.subr.mxu0 0.0
  %1470 = vmatpush1.msra.mxu0 0.0
  %1471 = vmatprep.subr.mxu0 0.0
  %1472 = vmatpush1.msra.mxu0 0.0
  %1473 = vmatprep.subr.mxu0 0.0
  %1474 = vmatpush1.msra.mxu0 0.0
  %1475 = vmatprep.subr.mxu0 0.0
  %1476 = vmatpush1.msra.mxu0 0.0
  %1477 = vmatprep.subr.mxu0 0.0
  %1478 = vmatpush1.msra.mxu0 0.0
  %1479 = vmatprep.subr.mxu0 0.0
  %1480 = vmatpush1.msra.mxu0 0.0
  %1481 = vmatprep.subr.mxu0 0.0
  %1482 = vmatpush1.msra.mxu0 0.0
  %1483 = vmatprep.subr.mxu0 0.0
  %1484 = vmatpush1.msra.mxu0 0.0
  %1485 = vmatprep.subr.mxu0 0.0
  %1486 = vmatpush1.msra.mxu0 0.0
  %1487 = vmatprep.subr.mxu0 0.0
  %1488 = vmatpush1.msra.mxu0 0.0
  %1489 = vmatprep.subr.mxu0 0.0
  %1490 = vmatpush1.msra.mxu0 0.0
  %1491 = vmatprep.subr.mxu0 0.0
  %1492 = vmatpush1.msra.mxu0 0.0
  %1493 = vmatprep.subr.mxu0 0.0
  %1494 = vmatpush1.msra.mxu0 0.0
  %1495 = vmatprep.subr.mxu0 0.0
  %1496 = vmatpush1.msra.mxu0 0.0
  %1497 = vmatprep.subr.mxu0 0.0
  %1498 = vmatpush1.msra.mxu0 0.0
  %1499 = vmatprep.subr.mxu0 0.0
  %1500 = vmatpush1.msra.mxu0 0.0
  %1501 = vmatprep.mubr.f32.mxu0 0.0
  %1502 = vmatmul.mubr.f32.gmra.mrb[0].mxu0 %v1430
  %v1503 = vpop.f32.mrb[0].mxu0
  %v1504 = vadd.f32 0.0, %v1503
  %v1505 = vpop.f32.mrb[0].mxu0
  %v1506 = vadd.f32 0.0, %v1505
  %1507 = vdwg.mxu0
  %1508 = vmatprep.subr.mxu0 0.0
  %1509 = vmatpush1.msra.mxu0 %v346
  %1510 = vmatprep.subr.mxu0 0.0
  %1511 = vmatpush1.msra.mxu0 %v349
  %1512 = vmatprep.subr.mxu0 0.0
  %1513 = vmatpush1.msra.mxu0 %v352
  %1514 = vmatprep.subr.mxu0 0.0
  %1515 = vmatpush1.msra.mxu0 %v355
  %1516 = vmatprep.subr.mxu0 0.0
  %1517 = vmatpush1.msra.mxu0 %v358
  %1518 = vmatprep.subr.mxu0 0.0
  %1519 = vmatpush1.msra.mxu0 %v361
  %1520 = vmatprep.subr.mxu0 0.0
  %1521 = vmatpush1.msra.mxu0 %v364
  %1522 = vmatprep.subr.mxu0 0.0
  %1523 = vmatpush1.msra.mxu0 %v367
  %1524 = vmatprep.subr.mxu0 0.0
  %1525 = vmatpush1.msra.mxu0 %v370
  %1526 = vmatprep.subr.mxu0 0.0
  %1527 = vmatpush1.msra.mxu0 %v373
  %1528 = vmatprep.subr.mxu0 0.0
  %1529 = vmatpush1.msra.mxu0 %v376
  %1530 = vmatprep.subr.mxu0 0.0
  %1531 = vmatpush1.msra.mxu0 %v379
  %1532 = vmatprep.subr.mxu0 0.0
  %1533 = vmatpush1.msra.mxu0 %v382
  %1534 = vmatprep.subr.mxu0 0.0
  %1535 = vmatpush1.msra.mxu0 %v385
  %1536 = vmatprep.subr.mxu0 0.0
  %1537 = vmatpush1.msra.mxu0 %v388
  %1538 = vmatprep.subr.mxu0 0.0
  %1539 = vmatpush1.msra.mxu0 %v391
  %1540 = vmatprep.subr.mxu0 0.0
  %1541 = vmatpush1.msra.mxu0 0.0
  %1542 = vmatprep.subr.mxu0 0.0
  %1543 = vmatpush1.msra.mxu0 0.0
  %1544 = vmatprep.subr.mxu0 0.0
  %1545 = vmatpush1.msra.mxu0 0.0
  %1546 = vmatprep.subr.mxu0 0.0
  %1547 = vmatpush1.msra.mxu0 0.0
  %1548 = vmatprep.subr.mxu0 0.0
  %1549 = vmatpush1.msra.mxu0 0.0
  %1550 = vmatprep.subr.mxu0 0.0
  %1551 = vmatpush1.msra.mxu0 0.0
  %1552 = vmatprep.subr.mxu0 0.0
  %1553 = vmatpush1.msra.mxu0 0.0
  %1554 = vmatprep.subr.mxu0 0.0
  %1555 = vmatpush1.msra.mxu0 0.0
  %1556 = vmatprep.subr.mxu0 0.0
  %1557 = vmatpush1.msra.mxu0 0.0
  %1558 = vmatprep.subr.mxu0 0.0
  %1559 = vmatpush1.msra.mxu0 0.0
  %1560 = vmatprep.subr.mxu0 0.0
  %1561 = vmatpush1.msra.mxu0 0.0
  %1562 = vmatprep.subr.mxu0 0.0
  %1563 = vmatpush1.msra.mxu0 0.0
  %1564 = vmatprep.subr.mxu0 0.0
  %1565 = vmatpush1.msra.mxu0 0.0
  %1566 = vmatprep.subr.mxu0 0.0
  %1567 = vmatpush1.msra.mxu0 0.0
  %1568 = vmatprep.subr.mxu0 0.0
  %1569 = vmatpush1.msra.mxu0 0.0
  %1570 = vmatprep.subr.mxu0 0.0
  %1571 = vmatpush1.msra.mxu0 0.0
  %1572 = vmatprep.mubr.f32.mxu0 0.0
  %1573 = vmatmul.mubr.f32.gmra.mrb[0].mxu0 %v1430
  %v1574 = vpop.f32.mrb[0].mxu0
  %v1575 = vadd.f32 0.0, %v1574
  %v1576 = vpop.f32.mrb[0].mxu0
  %1577 = vdwg.mxu0
  %v1578 = vadd.f32 %v1434, %v1504
  %v1579 = vxor.u32 %v1578, 2147483648
  %v1580 = vmul.f32 %v1579, 1.442695
  %v1581 = vpow.pop %v1580
  %v1582 = vadd.f32 %v1581, 1.0
  %v1583 = vrcp.pop %v1582
  %v1584 = vmul.f32 1.0, %v1583
  %v1585 = vadd.f32 %v1435, %v1506
  %v1586 = vxor.u32 %v1585, 2147483648
  %v1587 = vmul.f32 %v1586, 1.442695
  %v1588 = vpow.pop %v1587
  %v1589 = vadd.f32 %v1588, 1.0
  %v1590 = vrcp.pop %v1589
  %v1591 = vmul.f32 1.0, %v1590
  %v1592 = vadd.f32 %v1575, %v397
  %v1593 = vmul.f32 %v1584, %v1592
  %v1594 = vadd.f32 %v1436, %v1593
  %v1595 = vtanh.pop %v1594
  %v1596 = vsub.f32 %v1430, %v1595
  %v1597 = vmul.f32 %v1591, %v1596
  %v1598 = vadd.f32 %v1595, %v1597
  %1599 = vst [vmem:[#allocation2] sm:$0xff] %v1598
  %s1600 = scalar_lea.vmem %s6, 48
  %1601 = vst [vmem:[%s1600] sm:$0xff] %v1598
  %v1602 = vld [vmem:[#allocation2] sm:$0xff]
  %s1603 = smul.u32 7, 3
  %s1604 = smul.addr %s1603, 8
  %s1605 = scalar_lea.vmem [#allocation3], %s1604
  %v1606 = vld [vmem:[%s1605] sm:$0xff]
  %v1607 = vld [vmem:[%s1605 + $0x8] sm:$0xff]
  %v1608 = vld [vmem:[%s1605 + $0x10] sm:$0xff]
  %1609 = vmatprep.subr.mxu0 %v345
  %1610 = vmatpush1.msra.mxu0 %v344
  %1611 = vmatprep.subr.mxu0 %v348
  %1612 = vmatpush1.msra.mxu0 %v347
  %1613 = vmatprep.subr.mxu0 %v351
  %1614 = vmatpush1.msra.mxu0 %v350
  %1615 = vmatprep.subr.mxu0 %v354
  %1616 = vmatpush1.msra.mxu0 %v353
  %1617 = vmatprep.subr.mxu0 %v357
  %1618 = vmatpush1.msra.mxu0 %v356
  %1619 = vmatprep.subr.mxu0 %v360
  %1620 = vmatpush1.msra.mxu0 %v359
  %1621 = vmatprep.subr.mxu0 %v363
  %1622 = vmatpush1.msra.mxu0 %v362
  %1623 = vmatprep.subr.mxu0 %v366
  %1624 = vmatpush1.msra.mxu0 %v365
  %1625 = vmatprep.subr.mxu0 %v369
  %1626 = vmatpush1.msra.mxu0 %v368
  %1627 = vmatprep.subr.mxu0 %v372
  %1628 = vmatpush1.msra.mxu0 %v371
  %1629 = vmatprep.subr.mxu0 %v375
  %1630 = vmatpush1.msra.mxu0 %v374
  %1631 = vmatprep.subr.mxu0 %v378
  %1632 = vmatpush1.msra.mxu0 %v377
  %1633 = vmatprep.subr.mxu0 %v381
  %1634 = vmatpush1.msra.mxu0 %v380
  %1635 = vmatprep.subr.mxu0 %v384
  %1636 = vmatpush1.msra.mxu0 %v383
  %1637 = vmatprep.subr.mxu0 %v387
  %1638 = vmatpush1.msra.mxu0 %v386
  %1639 = vmatprep.subr.mxu0 %v390
  %1640 = vmatpush1.msra.mxu0 %v389
  %1641 = vmatprep.subr.mxu0 0.0
  %1642 = vmatpush1.msra.mxu0 0.0
  %1643 = vmatprep.subr.mxu0 0.0
  %1644 = vmatpush1.msra.mxu0 0.0
  %1645 = vmatprep.subr.mxu0 0.0
  %1646 = vmatpush1.msra.mxu0 0.0
  %1647 = vmatprep.subr.mxu0 0.0
  %1648 = vmatpush1.msra.mxu0 0.0
  %1649 = vmatprep.subr.mxu0 0.0
  %1650 = vmatpush1.msra.mxu0 0.0
  %1651 = vmatprep.subr.mxu0 0.0
  %1652 = vmatpush1.msra.mxu0 0.0
  %1653 = vmatprep.subr.mxu0 0.0
  %1654 = vmatpush1.msra.mxu0 0.0
  %1655 = vmatprep.subr.mxu0 0.0
  %1656 = vmatpush1.msra.mxu0 0.0
  %1657 = vmatprep.subr.mxu0 0.0
  %1658 = vmatpush1.msra.mxu0 0.0
  %1659 = vmatprep.subr.mxu0 0.0
  %1660 = vmatpush1.msra.mxu0 0.0
  %1661 = vmatprep.subr.mxu0 0.0
  %1662 = vmatpush1.msra.mxu0 0.0
  %1663 = vmatprep.subr.mxu0 0.0
  %1664 = vmatpush1.msra.mxu0 0.0
  %1665 = vmatprep.subr.mxu0 0.0
  %1666 = vmatpush1.msra.mxu0 0.0
  %1667 = vmatprep.subr.mxu0 0.0
  %1668 = vmatpush1.msra.mxu0 0.0
  %1669 = vmatprep.subr.mxu0 0.0
  %1670 = vmatpush1.msra.mxu0 0.0
  %1671 = vmatprep.subr.mxu0 0.0
  %1672 = vmatpush1.msra.mxu0 0.0
  %1673 = vmatprep.mubr.f32.mxu0 0.0
  %1674 = vmatmul.mubr.f32.gmra.mrb[0].mxu0 %v1602
  %v1675 = vpop.f32.mrb[0].mxu0
  %v1676 = vadd.f32 0.0, %v1675
  %v1677 = vpop.f32.mrb[0].mxu0
  %v1678 = vadd.f32 0.0, %v1677
  %1679 = vdwg.mxu0
  %1680 = vmatprep.subr.mxu0 0.0
  %1681 = vmatpush1.msra.mxu0 %v346
  %1682 = vmatprep.subr.mxu0 0.0
  %1683 = vmatpush1.msra.mxu0 %v349
  %1684 = vmatprep.subr.mxu0 0.0
  %1685 = vmatpush1.msra.mxu0 %v352
  %1686 = vmatprep.subr.mxu0 0.0
  %1687 = vmatpush1.msra.mxu0 %v355
  %1688 = vmatprep.subr.mxu0 0.0
  %1689 = vmatpush1.msra.mxu0 %v358
  %1690 = vmatprep.subr.mxu0 0.0
  %1691 = vmatpush1.msra.mxu0 %v361
  %1692 = vmatprep.subr.mxu0 0.0
  %1693 = vmatpush1.msra.mxu0 %v364
  %1694 = vmatprep.subr.mxu0 0.0
  %1695 = vmatpush1.msra.mxu0 %v367
  %1696 = vmatprep.subr.mxu0 0.0
  %1697 = vmatpush1.msra.mxu0 %v370
  %1698 = vmatprep.subr.mxu0 0.0
  %1699 = vmatpush1.msra.mxu0 %v373
  %1700 = vmatprep.subr.mxu0 0.0
  %1701 = vmatpush1.msra.mxu0 %v376
  %1702 = vmatprep.subr.mxu0 0.0
  %1703 = vmatpush1.msra.mxu0 %v379
  %1704 = vmatprep.subr.mxu0 0.0
  %1705 = vmatpush1.msra.mxu0 %v382
  %1706 = vmatprep.subr.mxu0 0.0
  %1707 = vmatpush1.msra.mxu0 %v385
  %1708 = vmatprep.subr.mxu0 0.0
  %1709 = vmatpush1.msra.mxu0 %v388
  %1710 = vmatprep.subr.mxu0 0.0
  %1711 = vmatpush1.msra.mxu0 %v391
  %1712 = vmatprep.subr.mxu0 0.0
  %1713 = vmatpush1.msra.mxu0 0.0
  %1714 = vmatprep.subr.mxu0 0.0
  %1715 = vmatpush1.msra.mxu0 0.0
  %1716 = vmatprep.subr.mxu0 0.0
  %1717 = vmatpush1.msra.mxu0 0.0
  %1718 = vmatprep.subr.mxu0 0.0
  %1719 = vmatpush1.msra.mxu0 0.0
  %1720 = vmatprep.subr.mxu0 0.0
  %1721 = vmatpush1.msra.mxu0 0.0
  %1722 = vmatprep.subr.mxu0 0.0
  %1723 = vmatpush1.msra.mxu0 0.0
  %1724 = vmatprep.subr.mxu0 0.0
  %1725 = vmatpush1.msra.mxu0 0.0
  %1726 = vmatprep.subr.mxu0 0.0
  %1727 = vmatpush1.msra.mxu0 0.0
  %1728 = vmatprep.subr.mxu0 0.0
  %1729 = vmatpush1.msra.mxu0 0.0
  %1730 = vmatprep.subr.mxu0 0.0
  %1731 = vmatpush1.msra.mxu0 0.0
  %1732 = vmatprep.subr.mxu0 0.0
  %1733 = vmatpush1.msra.mxu0 0.0
  %1734 = vmatprep.subr.mxu0 0.0
  %1735 = vmatpush1.msra.mxu0 0.0
  %1736 = vmatprep.subr.mxu0 0.0
  %1737 = vmatpush1.msra.mxu0 0.0
  %1738 = vmatprep.subr.mxu0 0.0
  %1739 = vmatpush1.msra.mxu0 0.0
  %1740 = vmatprep.subr.mxu0 0.0
  %1741 = vmatpush1.msra.mxu0 0.0
  %1742 = vmatprep.subr.mxu0 0.0
  %1743 = vmatpush1.msra.mxu0 0.0
  %1744 = vmatprep.mubr.f32.mxu0 0.0
  %1745 = vmatmul.mubr.f32.gmra.mrb[0].mxu0 %v1602
  %v1746 = vpop.f32.mrb[0].mxu0
  %v1747 = vadd.f32 0.0, %v1746
  %v1748 = vpop.f32.mrb[0].mxu0
  %1749 = vdwg.mxu0
  %v1750 = vadd.f32 %v1606, %v1676
  %v1751 = vxor.u32 %v1750, 2147483648
  %v1752 = vmul.f32 %v1751, 1.442695
  %v1753 = vpow.pop %v1752
  %v1754 = vadd.f32 %v1753, 1.0
  %v1755 = vrcp.pop %v1754
  %v1756 = vmul.f32 1.0, %v1755
  %v1757 = vadd.f32 %v1607, %v1678
  %v1758 = vxor.u32 %v1757, 2147483648
  %v1759 = vmul.f32 %v1758, 1.442695
  %v1760 = vpow.pop %v1759
  %v1761 = vadd.f32 %v1760, 1.0
  %v1762 = vrcp.pop %v1761
  %v1763 = vmul.f32 1.0, %v1762
  %v1764 = vadd.f32 %v1747, %v397
  %v1765 = vmul.f32 %v1756, %v1764
  %v1766 = vadd.f32 %v1608, %v1765
  %v1767 = vtanh.pop %v1766
  %v1768 = vsub.f32 %v1602, %v1767
  %v1769 = vmul.f32 %v1763, %v1768
  %v1770 = vadd.f32 %v1767, %v1769
  %1771 = vst [vmem:[#allocation2] sm:$0xff] %v1770
  %s1772 = scalar_lea.vmem %s6, 56
  %1773 = vst [vmem:[%s1772] sm:$0xff] %v1770
  // Predicated region
  $region30: #{gru_model_forward.2} parent=0 // pred_check
    _
  $region31: #{gru_model_forward.2} parent=0 // pred_check_branch
    %1775 = sbr.rel (0) target = $region33
  $region32: #{gru_model_forward.2} parent=0 // pred_region
    _
  $region33: #{gru_model_forward.2} parent=0 // pred_fallthru
    _
  // Predicated region
  $region34: #{gru_model_forward.2} parent=0 // pred_check
    _
  $region35: #{gru_model_forward.2} parent=0 // pred_check_branch
    %1777 = sbr.rel (0) target = $region37
  $region36: #{gru_model_forward.2} parent=0 // pred_region
    _
  $region37: #{gru_model_forward.2} parent=0 // pred_fallthru
    _

</llo_original>
